<compile_context>
chip_gen: v7x
topology: tpu7x:2x2x1
jax: 0.10.0
libtpu: 0.0.40
codegen_flags: <defaults>
</compile_context>

<pallas_src>
import functools

import numpy as np

import jax
import jax.numpy as jnp
from jax.experimental import pallas as pl
from jax.experimental.pallas import tpu as pltpu


# ---------------------------------------------------------------------------
# tiling helpers
# ---------------------------------------------------------------------------
def _device_kind():
    try:
        return jax.devices()[0].device_kind.lower()
    except Exception:  # pragma: no cover - CPU/unknown fallback
        return ""


def _vmem_estimate(Hh, W, Cin, Ct):
    """Rough per-step live-VMEM estimate (double-buffered blocks + temporaries)."""
    in_b, out_b, acc_b = 2, 2, 4                       # bf16 in/out, f32 acc
    xmain = Hh * (W + 2) * Cin * in_b * 2 * 2          # 2 frame slots x 2 bufs
    xhalo = 2 * (W + 2) * Cin * in_b * 2 * 2
    wgt = 32 * Cin * Ct * in_b * 2                     # one phase, 2 bufs
    outb = (2 * Hh) * (2 * W) * Ct * out_b * 2
    slabs = 6 * (Hh + 2) * W * Cin * in_b              # in-kernel shifted slabs
    accs = 4 * Hh * W * Ct * acc_b                     # 4 parity accumulators
    work = 2 * Hh * W * max(Cin * in_b, Ct * acc_b)    # patch + matmul result
    return xmain + xhalo + wgt + outb + slabs + accs + work


def _pick_row_tile(H, W, Cin, Ct, budget):
    """Largest even divisor of H whose VMEM estimate fits the budget."""
    divs = [d for d in range(H, 1, -1) if H % d == 0 and d % 2 == 0]
    assert divs, "spatial height must be even"
    for d in divs:
        if _vmem_estimate(d, W, Cin, Ct) <= budget:
            return d
    return divs[-1]


# ---------------------------------------------------------------------------
# fused nearest-upsample + CausalConv3d(K=3, replicate pad) kernel
# ---------------------------------------------------------------------------
def _upsample_conv_kernel(tab_ref, xa_ref, xah_ref, xb_ref, xbh_ref,
                          w_ref, b_ref, o_ref, *, Hh, W, Cin, Ct):
    """One (batch, cout-tile, output frame, row-tile) grid step.

    xa/xb       : (1,1,Hh,W+2,Cin) bf16 low-res row tile of frame slot A / B.
    xah/xbh     : (1,1,2 ,W+2,Cin) bf16 two halo rows below the tile.
    w_ref       : (32, Cin, Ct) bf16 phase-selected collapsed weights, block
                  index = (slot, ra, rb, i, j).
    b_ref       : (1, Ct) f32 bias tile.
    o_ref       : (1,1,2*Hh,2*W,Ct) bf16 output tile (lane-dense store).
    """
    del tab_ref  # consumed by the index_maps only
    bias = b_ref[...]                                        # (1, Ct) f32

    # Per frame slot, build the three column-shifted (Hh+2, W, Cin) slabs
    # (tile rows + 2-row halo).  No full W-axis im2col buffer is materialized.
    slabs = []
    for m_ref, h_ref in ((xa_ref, xah_ref), (xb_ref, xbh_ref)):
        xm = m_ref[0, 0]                                     # (Hh, W+2, Cin)
        xh = h_ref[0, 0]                                     # (2,  W+2, Cin)
        slabs.append([
            jnp.concatenate([xm[:, e:e + W, :], xh[:, e:e + W, :]], axis=0)
            for e in range(3)
        ])

    # f32 accumulators as plain values: '=' on the first contribution, no
    # zero-init pass, no scratch ref.
    acc = [[None, None], [None, None]]                       # (Hh*W, Ct) each
    for slot in range(2):
        for d in range(3):          # low-res row offset inside the halo window
            for e in range(3):      # low-res col offset
                patch = slabs[slot][e][d:d + Hh].reshape(Hh * W, Cin)
                for ra in range(max(d - 1, 0), min(d, 1) + 1):
                    i = d - ra
                    for rb in range(max(e - 1, 0), min(e, 1) + 1):
                        j = e - rb
                        blk = (((slot * 2 + ra) * 2 + rb) * 2 + i) * 2 + j
                        c = jnp.dot(patch, w_ref[blk],
                                    preferred_element_type=jnp.float32)
                        acc[ra][rb] = c if acc[ra][rb] is None else acc[ra][rb] + c

    # Epilogue: bias + cast to bf16, interleave the 4 parity planes into the
    # (2*Hh, 2*W) tile, one lane-dense store.
    # TODO(synk): replace the interleave copies with strided parity stores
    # (pl.ds(..., stride=2)) once that store path is validated on all targets.
    p = [[(acc[ra][rb] + bias).astype(o_ref.dtype).reshape(Hh, W, Ct)
          for rb in range(2)] for ra in range(2)]
    rows = [jnp.concatenate([p[ra][0][:, :, None, :], p[ra][1][:, :, None, :]],
                            axis=2).reshape(Hh, 2 * W, Ct) for ra in range(2)]
    tile = jnp.concatenate([rows[0][:, None], rows[1][:, None]],
                           axis=1).reshape(2 * Hh, 2 * W, Ct)
    o_ref[...] = tile[None, None]


def upsample_causal3d(x, w, b, *, upsample_factor=(2, 2, 2),
                      out_dtype=jnp.bfloat16, row_tile=None, cout_tile=None):
    """conv(nearest_upsample(x)) with causal temporal handling.

    x: (B,T,H,W,Cin) f32, w: (3,3,3,Cin,Cout), b: (Cout,).
    Returns (B, 1+(T-1)*ft, 2H, 2W, Cout) in `out_dtype` (bf16 by default:
    the 8x-upsampled output is the dominant HBM stream).
    """
    B, T, H, W, Cin = x.shape
    ft, fh, fw = upsample_factor
    assert fh == 2 and fw == 2, "fused kernel supports spatial factor 2"
    assert ft >= 2 or T == 1, "temporal tap merge requires ft >= 2"
    assert w.shape[:4] == (3, 3, 3, Cin), "kernel_size=3 CausalConv3d expected"
    assert H % 2 == 0, "spatial height must be even"
    Cout = w.shape[-1]
    assert b.shape == (Cout,)
    T_out = 1 + (T - 1) * ft

    # ---- temporal tap table: per output frame the two distinct low-res source
    # frames (A, B) plus the weight phase (0: taps A,A,B / 1: taps A,B,B).
    tab = np.zeros((T_out, 3), np.int32)
    for t in range(T_out):
        s = []
        for kt in range(3):
            u = max(t + kt - 2, 0)              # causal replicate front pad
            s.append(0 if u == 0 else 1 + (u - 1) // ft)
        assert s[1] == s[0] or s[1] == s[2]     # holds for ft >= 2
        tab[t] = (s[0], s[2], 0 if s[1] == s[0] else 1)
    tab = jnp.asarray(tab)

    # ---- sub-pixel collapse of the 3x3 spatial taps onto 2x2 low-res taps,
    # then the temporal merge into two phases of two frame slots each.
    r0 = jnp.array([[1., 0.], [0., 1.], [0., 1.]], jnp.float32)   # ra == 0
    r1 = jnp.array([[1., 0.], [1., 0.], [0., 1.]], jnp.float32)   # ra == 1
    rmat = jnp.stack([r0, r1])                                    # (2, 3, 2)
    wc = jnp.einsum("ahi,bwj,thwco->tabijco", rmat, rmat,
                    w.astype(jnp.float32))        # (kt, ra, rb, i, j, Cin, Cout)
    w_ph0 = jnp.stack([wc[0] + wc[1], wc[2]])     # taps (A, A, B)
    w_ph1 = jnp.stack([wc[0], wc[1] + wc[2]])     # taps (A, B, B)
    w_flat = jnp.stack([w_ph0, w_ph1]).reshape(
        2 * 32, Cin, Cout).astype(jnp.bfloat16)   # rows: phase*32 + blk

    # ---- low-res replicate spatial pad + bf16 MXU-operand cast.
    # TODO(synk): fold this 1-pixel halo into the kernel (clamped index maps)
    # to avoid the extra HBM materialization of the padded input.
    x_pad = jnp.pad(x, ((0, 0), (0, 0), (1, 1), (1, 1), (0, 0)),
                    mode="edge").astype(jnp.bfloat16)

    # ---- per-generation tiling.
    kind = _device_kind()
    is_v7 = ("v7" in kind) or ("tpu7" in kind)
    is_v5e = ("v5 lite" in kind) or ("v5e" in kind) or ("v5lite" in kind)
    if cout_tile is not None:
        Ct = cout_tile
    elif Cout % 256 == 0 and not is_v5e:
        Ct = 256          # matches v6e/v7x 256-wide MXU
    elif Cout % 128 == 0:
        Ct = 128          # v5e MXU is 128 wide; also halves on-chip pressure
    else:
        Ct = Cout         # slow fallback (masked stores) -- small test configs
    NC = Cout // Ct
    budget = (44 if is_v7 else 88) * 1024 * 1024   # v7x has only 64 MiB VMEM
    Hh = row_tile if row_tile is not None else _pick_row_tile(H, W, Cin, Ct, budget)
    assert H % Hh == 0 and Hh % 2 == 0, "row_tile must be an even divisor of H"
    NH = H // Hh
    vmem_limit = int(min(budget, max(32 * 1024 * 1024,
                                     int(1.35 * _vmem_estimate(Hh, W, Cin, Ct)))))

    def x_main_spec(slot):
        return pl.BlockSpec(
            (1, 1, Hh, W + 2, Cin),
            lambda bi, ci, ti, hi, tb, slot=slot: (bi, tb[ti, slot], hi, 0, 0))

    def x_halo_spec(slot):
        # two rows just below the tile: element offset (hi+1)*Hh, block size 2.
        return pl.BlockSpec(
            (1, 1, 2, W + 2, Cin),
            lambda bi, ci, ti, hi, tb, slot=slot:
                (bi, tb[ti, slot], (hi + 1) * (Hh // 2), 0, 0))

    kernel = functools.partial(_upsample_conv_kernel, Hh=Hh, W=W, Cin=Cin, Ct=Ct)
    grid_spec = pltpu.PrefetchScalarGridSpec(
        num_scalar_prefetch=1,
        grid=(B, NC, T_out, NH),
        in_specs=[
            x_main_spec(0), x_halo_spec(0), x_main_spec(1), x_halo_spec(1),
            # phase-selected weight block; constant across the inner H-tile axis
            pl.BlockSpec((32, Cin, Ct),
                         lambda bi, ci, ti, hi, tb: (tb[ti, 2], 0, ci)),
            pl.BlockSpec((1, Ct), lambda bi, ci, ti, hi, tb: (0, ci)),
        ],
        out_specs=pl.BlockSpec(
            (1, 1, 2 * Hh, 2 * W, Ct),
            lambda bi, ci, ti, hi, tb: (bi, ti, hi, 0, ci)),
    )
    return pl.pallas_call(
        kernel,
        grid_spec=grid_spec,
        out_shape=jax.ShapeDtypeStruct((B, T_out, 2 * H, 2 * W, Cout), out_dtype),
        compiler_params=pltpu.CompilerParams(
            dimension_semantics=("parallel",) * 4,
            vmem_limit_bytes=vmem_limit),
    )(tab, x_pad, x_pad, x_pad, x_pad, w_flat,
      b.reshape(1, Cout).astype(jnp.float32))


# ---------------------------------------------------------------------------
# plain-JAX pieces: conv-free path and reference
# ---------------------------------------------------------------------------
def upsample_nearest_causal(x, upsample_factor=(2, 2, 2)):
    """Nearest upsample with the causal first-frame rule (channels-last)."""
    ft, fh, fw = upsample_factor
    B, T, H, W, C = x.shape

    def spatial(v):
        n = v.shape[1]
        v = jnp.broadcast_to(v[:, :, :, None, :, None, :],
                             (B, n, H, fh, W, fw, C))
        return v.reshape(B, n, H * fh, W * fw, C)

    first = spatial(x[:, :1])
    if T == 1:
        return first
    other = x[:, 1:]
    other = jnp.broadcast_to(other[:, :, None], (B, T - 1, ft, H, W, C))
    other = other.reshape(B, (T - 1) * ft, H, W, C)
    return jnp.concatenate([first, spatial(other)], axis=1)


def upsample_causal3d_forward(x, conv_w=None, conv_b=None, *,
                              upsample_factor=(2, 2, 2), use_conv=True,
                              out_dtype=jnp.bfloat16, row_tile=None):
    """Forward pass of UpsampleCausal3D (channels-last NTHWC layout)."""
    if use_conv:
        return upsample_causal3d(x, conv_w, conv_b,
                                 upsample_factor=upsample_factor,
                                 out_dtype=out_dtype, row_tile=row_tile)
    # TODO(synk): conv-free path is pure data movement; kept in plain JAX.
    return upsample_nearest_causal(x, upsample_factor)


def _causal_conv3d_ref(x, w, b):
    """Reference CausalConv3d (replicate pad, stride 1) in plain JAX."""
    K = w.shape[0]
    xp = jnp.pad(x, ((0, 0), (K - 1, 0), (K // 2, K // 2), (K // 2, K // 2),
                     (0, 0)), mode="edge")
    y = jax.lax.conv_general_dilated(
        xp, w, window_strides=(1, 1, 1), padding="VALID",
        dimension_numbers=("NDHWC", "DHWIO", "NDHWC"),
        preferred_element_type=jnp.float32,
        precision=jax.lax.Precision.HIGHEST)
    return y + b


# ---------------------------------------------------------------------------
if __name__ == "__main__":
    key = jax.random.PRNGKey(0)

    def run_case(B, Cin, Cout, T, H, W, ft, row_tile):
        k1, k2, k3 = jax.random.split(jax.random.fold_in(key, B * 1000 + T), 3)
        x = jax.random.normal(k1, (B, T, H, W, Cin), jnp.float32)
        w = jax.random.normal(k2, (3, 3, 3, Cin, Cout),
                              jnp.float32) / np.sqrt(27 * Cin)
        b = 0.02 * jax.random.normal(k3, (Cout,), jnp.float32)
        factor = (ft, 2, 2)
        fwd = jax.jit(functools.partial(
            upsample_causal3d_forward, upsample_factor=factor,
            use_conv=True, row_tile=row_tile))
        out = fwd(x, w, b)
        jax.block_until_ready(out)
        T_out = 1 + (T - 1) * ft
        assert out.shape == (B, T_out, 2 * H, 2 * W, Cout), out.shape
        assert bool(jnp.all(jnp.isfinite(out.astype(jnp.float32))))
        # correctness vs the unfused reference (bf16-quantized operands, f32
        # math; kernel output is bf16 by design).
        xq = x.astype(jnp.bfloat16).astype(jnp.float32)
        wq = w.astype(jnp.bfloat16).astype(jnp.float32)
        ref = _causal_conv3d_ref(upsample_nearest_causal(xq, factor), wq, b)
        err = float(jnp.max(jnp.abs(out.astype(jnp.float32) - ref)))
        assert err < 1e-1, f"max abs err {err}"
        return err

    # main config: exercises temporal phases, row-tiling (2 tiles) + halo.
    run_case(B=2, Cin=32, Cout=32, T=3, H=8, W=8, ft=2, row_tile=4)
    # single-frame config, auto row tile, different channel counts.
    run_case(B=1, Cin=16, Cout=64, T=1, H=4, W=16, ft=2, row_tile=None)

    # conv-free path (use_conv=False) shape sanity check.
    x_nc = jax.random.normal(key, (2, 3, 8, 8, 32), jnp.float32)
    out_nc = upsample_causal3d_forward(x_nc, use_conv=False,
                                       upsample_factor=(2, 2, 2))
    assert out_nc.shape == (2, 5, 16, 16, 32)

    print("KERNEL_OK")
</pallas_src>

<mosaic_0001>
module attributes {stable_mosaic.version = 11 : i64} {
  func.func @_upsample_conv_kernel(%arg0: i32, %arg1: i32, %arg2: i32, %arg3: i32, %arg4: memref<5x3xi32, #tpu.memory_space<smem>>, %arg5: memref<1x1x4x10x32xbf16, #tpu.memory_space<vmem>>, %arg6: memref<1x1x2x10x32xbf16, #tpu.memory_space<vmem>>, %arg7: memref<1x1x4x10x32xbf16, #tpu.memory_space<vmem>>, %arg8: memref<1x1x2x10x32xbf16, #tpu.memory_space<vmem>>, %arg9: memref<32x32x32xbf16, #tpu.memory_space<vmem>>, %arg10: memref<1x32xf32, #tpu.memory_space<vmem>>, %arg11: memref<1x1x8x16x32xbf16, #tpu.memory_space<vmem>>) attributes {dimension_semantics = [#tpu.dimension_semantics<parallel>, #tpu.dimension_semantics<parallel>, #tpu.dimension_semantics<parallel>, #tpu.dimension_semantics<parallel>], iteration_bounds = array<i64: 2, 1, 5, 2>, scalar_prefetch = 1 : i64, scratch_operands = 0 : i64, tpu.core_type = #tpu.core_type<tc>, window_params = [{transform_indices = @transform_0, window_bounds = array<i64: 1, 1, 4, 10, 32>}, {transform_indices = @transform_1, window_bounds = array<i64: 1, 1, 2, 10, 32>}, {transform_indices = @transform_2, window_bounds = array<i64: 1, 1, 4, 10, 32>}, {transform_indices = @transform_3, window_bounds = array<i64: 1, 1, 2, 10, 32>}, {transform_indices = @transform_4, window_bounds = array<i64: 32, 32, 32>}, {transform_indices = @transform_5, window_bounds = array<i64: 1, 32>}, {transform_indices = @transform_6, window_bounds = array<i64: 1, 1, 8, 16, 32>}]} {
    %c0 = arith.constant 0 : index
    %c0_0 = arith.constant 0 : index
    %0 = vector.load %arg10[%c0, %c0_0] : memref<1x32xf32, #tpu.memory_space<vmem>>, vector<1x32xf32>
    %c0_1 = arith.constant 0 : index
    %c0_2 = arith.constant 0 : index
    %c0_3 = arith.constant 0 : index
    %c0_4 = arith.constant 0 : index
    %c0_5 = arith.constant 0 : index
    %1 = vector.load %arg5[%c0_1, %c0_2, %c0_3, %c0_4, %c0_5] : memref<1x1x4x10x32xbf16, #tpu.memory_space<vmem>>, vector<1x1x4x10x32xbf16>
    %2 = vector.shape_cast %1 : vector<1x1x4x10x32xbf16> to vector<4x10x32xbf16>
    %c0_6 = arith.constant 0 : index
    %c0_7 = arith.constant 0 : index
    %c0_8 = arith.constant 0 : index
    %c0_9 = arith.constant 0 : index
    %c0_10 = arith.constant 0 : index
    %3 = vector.load %arg6[%c0_6, %c0_7, %c0_8, %c0_9, %c0_10] : memref<1x1x2x10x32xbf16, #tpu.memory_space<vmem>>, vector<1x1x2x10x32xbf16>
    %4 = vector.shape_cast %3 : vector<1x1x2x10x32xbf16> to vector<2x10x32xbf16>
    %5 = vector.extract_strided_slice %2 {offsets = [0, 0, 0], sizes = [4, 8, 32], strides = [1, 1, 1]} : vector<4x10x32xbf16> to vector<4x8x32xbf16>
    %6 = vector.extract_strided_slice %4 {offsets = [0, 0, 0], sizes = [2, 8, 32], strides = [1, 1, 1]} : vector<2x10x32xbf16> to vector<2x8x32xbf16>
    %7 = tpu.concatenate %5, %6 in 0 : vector<4x8x32xbf16>, vector<2x8x32xbf16> -> vector<6x8x32xbf16>
    %8 = vector.extract_strided_slice %2 {offsets = [0, 1, 0], sizes = [4, 8, 32], strides = [1, 1, 1]} : vector<4x10x32xbf16> to vector<4x8x32xbf16>
    %9 = vector.extract_strided_slice %4 {offsets = [0, 1, 0], sizes = [2, 8, 32], strides = [1, 1, 1]} : vector<2x10x32xbf16> to vector<2x8x32xbf16>
    %10 = tpu.concatenate %8, %9 in 0 : vector<4x8x32xbf16>, vector<2x8x32xbf16> -> vector<6x8x32xbf16>
    %11 = vector.extract_strided_slice %2 {offsets = [0, 2, 0], sizes = [4, 8, 32], strides = [1, 1, 1]} : vector<4x10x32xbf16> to vector<4x8x32xbf16>
    %12 = vector.extract_strided_slice %4 {offsets = [0, 2, 0], sizes = [2, 8, 32], strides = [1, 1, 1]} : vector<2x10x32xbf16> to vector<2x8x32xbf16>
    %13 = tpu.concatenate %11, %12 in 0 : vector<4x8x32xbf16>, vector<2x8x32xbf16> -> vector<6x8x32xbf16>
    %c0_11 = arith.constant 0 : index
    %c0_12 = arith.constant 0 : index
    %c0_13 = arith.constant 0 : index
    %c0_14 = arith.constant 0 : index
    %c0_15 = arith.constant 0 : index
    %14 = vector.load %arg7[%c0_11, %c0_12, %c0_13, %c0_14, %c0_15] : memref<1x1x4x10x32xbf16, #tpu.memory_space<vmem>>, vector<1x1x4x10x32xbf16>
    %15 = vector.shape_cast %14 : vector<1x1x4x10x32xbf16> to vector<4x10x32xbf16>
    %c0_16 = arith.constant 0 : index
    %c0_17 = arith.constant 0 : index
    %c0_18 = arith.constant 0 : index
    %c0_19 = arith.constant 0 : index
    %c0_20 = arith.constant 0 : index
    %16 = vector.load %arg8[%c0_16, %c0_17, %c0_18, %c0_19, %c0_20] : memref<1x1x2x10x32xbf16, #tpu.memory_space<vmem>>, vector<1x1x2x10x32xbf16>
    %17 = vector.shape_cast %16 : vector<1x1x2x10x32xbf16> to vector<2x10x32xbf16>
    %18 = vector.extract_strided_slice %15 {offsets = [0, 0, 0], sizes = [4, 8, 32], strides = [1, 1, 1]} : vector<4x10x32xbf16> to vector<4x8x32xbf16>
    %19 = vector.extract_strided_slice %17 {offsets = [0, 0, 0], sizes = [2, 8, 32], strides = [1, 1, 1]} : vector<2x10x32xbf16> to vector<2x8x32xbf16>
    %20 = tpu.concatenate %18, %19 in 0 : vector<4x8x32xbf16>, vector<2x8x32xbf16> -> vector<6x8x32xbf16>
    %21 = vector.extract_strided_slice %15 {offsets = [0, 1, 0], sizes = [4, 8, 32], strides = [1, 1, 1]} : vector<4x10x32xbf16> to vector<4x8x32xbf16>
    %22 = vector.extract_strided_slice %17 {offsets = [0, 1, 0], sizes = [2, 8, 32], strides = [1, 1, 1]} : vector<2x10x32xbf16> to vector<2x8x32xbf16>
    %23 = tpu.concatenate %21, %22 in 0 : vector<4x8x32xbf16>, vector<2x8x32xbf16> -> vector<6x8x32xbf16>
    %24 = vector.extract_strided_slice %15 {offsets = [0, 2, 0], sizes = [4, 8, 32], strides = [1, 1, 1]} : vector<4x10x32xbf16> to vector<4x8x32xbf16>
    %25 = vector.extract_strided_slice %17 {offsets = [0, 2, 0], sizes = [2, 8, 32], strides = [1, 1, 1]} : vector<2x10x32xbf16> to vector<2x8x32xbf16>
    %26 = tpu.concatenate %24, %25 in 0 : vector<4x8x32xbf16>, vector<2x8x32xbf16> -> vector<6x8x32xbf16>
    %27 = vector.extract_strided_slice %7 {offsets = [0, 0, 0], sizes = [4, 8, 32], strides = [1, 1, 1]} : vector<6x8x32xbf16> to vector<4x8x32xbf16>
    %28 = vector.shape_cast %27 : vector<4x8x32xbf16> to vector<32x32xbf16>
    %c0_21 = arith.constant 0 : index
    %c0_22 = arith.constant 0 : index
    %c0_23 = arith.constant 0 : index
    %29 = vector.load %arg9[%c0_21, %c0_22, %c0_23] : memref<32x32x32xbf16, #tpu.memory_space<vmem>>, vector<1x32x32xbf16>
    %30 = vector.shape_cast %29 : vector<1x32x32xbf16> to vector<32x32xbf16>
    %cst = arith.constant dense<0.000000e+00> : vector<32x32xf32>
    %31 = tpu.matmul %28, %30, %cst {dimension_numbers = #tpu.dot_dimension_numbers<[1], [0], [0], [1], [0, 0, 1, 1], [], []>} : vector<32x32xbf16>, vector<32x32xbf16>, vector<32x32xf32> -> vector<32x32xf32>
    %32 = vector.extract_strided_slice %10 {offsets = [0, 0, 0], sizes = [4, 8, 32], strides = [1, 1, 1]} : vector<6x8x32xbf16> to vector<4x8x32xbf16>
    %33 = vector.shape_cast %32 : vector<4x8x32xbf16> to vector<32x32xbf16>
    %c1 = arith.constant 1 : index
    %c0_24 = arith.constant 0 : index
    %c0_25 = arith.constant 0 : index
    %34 = vector.load %arg9[%c1, %c0_24, %c0_25] : memref<32x32x32xbf16, #tpu.memory_space<vmem>>, vector<1x32x32xbf16>
    %35 = vector.shape_cast %34 : vector<1x32x32xbf16> to vector<32x32xbf16>
    %cst_26 = arith.constant dense<0.000000e+00> : vector<32x32xf32>
    %36 = tpu.matmul %33, %35, %cst_26 {dimension_numbers = #tpu.dot_dimension_numbers<[1], [0], [0], [1], [0, 0, 1, 1], [], []>} : vector<32x32xbf16>, vector<32x32xbf16>, vector<32x32xf32> -> vector<32x32xf32>
    %37 = arith.addf %31, %36 : vector<32x32xf32>
    %c4 = arith.constant 4 : index
    %c0_27 = arith.constant 0 : index
    %c0_28 = arith.constant 0 : index
    %38 = vector.load %arg9[%c4, %c0_27, %c0_28] : memref<32x32x32xbf16, #tpu.memory_space<vmem>>, vector<1x32x32xbf16>
    %39 = vector.shape_cast %38 : vector<1x32x32xbf16> to vector<32x32xbf16>
    %cst_29 = arith.constant dense<0.000000e+00> : vector<32x32xf32>
    %40 = tpu.matmul %33, %39, %cst_29 {dimension_numbers = #tpu.dot_dimension_numbers<[1], [0], [0], [1], [0, 0, 1, 1], [], []>} : vector<32x32xbf16>, vector<32x32xbf16>, vector<32x32xf32> -> vector<32x32xf32>
    %41 = vector.extract_strided_slice %13 {offsets = [0, 0, 0], sizes = [4, 8, 32], strides = [1, 1, 1]} : vector<6x8x32xbf16> to vector<4x8x32xbf16>
    %42 = vector.shape_cast %41 : vector<4x8x32xbf16> to vector<32x32xbf16>
    %c5 = arith.constant 5 : index
    %c0_30 = arith.constant 0 : index
    %c0_31 = arith.constant 0 : index
    %43 = vector.load %arg9[%c5, %c0_30, %c0_31] : memref<32x32x32xbf16, #tpu.memory_space<vmem>>, vector<1x32x32xbf16>
    %44 = vector.shape_cast %43 : vector<1x32x32xbf16> to vector<32x32xbf16>
    %cst_32 = arith.constant dense<0.000000e+00> : vector<32x32xf32>
    %45 = tpu.matmul %42, %44, %cst_32 {dimension_numbers = #tpu.dot_dimension_numbers<[1], [0], [0], [1], [0, 0, 1, 1], [], []>} : vector<32x32xbf16>, vector<32x32xbf16>, vector<32x32xf32> -> vector<32x32xf32>
    %46 = arith.addf %40, %45 : vector<32x32xf32>
    %47 = vector.extract_strided_slice %7 {offsets = [1, 0, 0], sizes = [4, 8, 32], strides = [1, 1, 1]} : vector<6x8x32xbf16> to vector<4x8x32xbf16>
    %48 = vector.shape_cast %47 : vector<4x8x32xbf16> to vector<32x32xbf16>
    %c2 = arith.constant 2 : index
    %c0_33 = arith.constant 0 : index
    %c0_34 = arith.constant 0 : index
    %49 = vector.load %arg9[%c2, %c0_33, %c0_34] : memref<32x32x32xbf16, #tpu.memory_space<vmem>>, vector<1x32x32xbf16>
    %50 = vector.shape_cast %49 : vector<1x32x32xbf16> to vector<32x32xbf16>
    %cst_35 = arith.constant dense<0.000000e+00> : vector<32x32xf32>
    %51 = tpu.matmul %48, %50, %cst_35 {dimension_numbers = #tpu.dot_dimension_numbers<[1], [0], [0], [1], [0, 0, 1, 1], [], []>} : vector<32x32xbf16>, vector<32x32xbf16>, vector<32x32xf32> -> vector<32x32xf32>
    %52 = arith.addf %37, %51 : vector<32x32xf32>
    %c8 = arith.constant 8 : index
    %c0_36 = arith.constant 0 : index
    %c0_37 = arith.constant 0 : index
    %53 = vector.load %arg9[%c8, %c0_36, %c0_37] : memref<32x32x32xbf16, #tpu.memory_space<vmem>>, vector<1x32x32xbf16>
    %54 = vector.shape_cast %53 : vector<1x32x32xbf16> to vector<32x32xbf16>
    %cst_38 = arith.constant dense<0.000000e+00> : vector<32x32xf32>
    %55 = tpu.matmul %48, %54, %cst_38 {dimension_numbers = #tpu.dot_dimension_numbers<[1], [0], [0], [1], [0, 0, 1, 1], [], []>} : vector<32x32xbf16>, vector<32x32xbf16>, vector<32x32xf32> -> vector<32x32xf32>
    %56 = vector.extract_strided_slice %10 {offsets = [1, 0, 0], sizes = [4, 8, 32], strides = [1, 1, 1]} : vector<6x8x32xbf16> to vector<4x8x32xbf16>
    %57 = vector.shape_cast %56 : vector<4x8x32xbf16> to vector<32x32xbf16>
    %c3 = arith.constant 3 : index
    %c0_39 = arith.constant 0 : index
    %c0_40 = arith.constant 0 : index
    %58 = vector.load %arg9[%c3, %c0_39, %c0_40] : memref<32x32x32xbf16, #tpu.memory_space<vmem>>, vector<1x32x32xbf16>
    %59 = vector.shape_cast %58 : vector<1x32x32xbf16> to vector<32x32xbf16>
    %cst_41 = arith.constant dense<0.000000e+00> : vector<32x32xf32>
    %60 = tpu.matmul %57, %59, %cst_41 {dimension_numbers = #tpu.dot_dimension_numbers<[1], [0], [0], [1], [0, 0, 1, 1], [], []>} : vector<32x32xbf16>, vector<32x32xbf16>, vector<32x32xf32> -> vector<32x32xf32>
    %61 = arith.addf %52, %60 : vector<32x32xf32>
    %c6 = arith.constant 6 : index
    %c0_42 = arith.constant 0 : index
    %c0_43 = arith.constant 0 : index
    %62 = vector.load %arg9[%c6, %c0_42, %c0_43] : memref<32x32x32xbf16, #tpu.memory_space<vmem>>, vector<1x32x32xbf16>
    %63 = vector.shape_cast %62 : vector<1x32x32xbf16> to vector<32x32xbf16>
    %cst_44 = arith.constant dense<0.000000e+00> : vector<32x32xf32>
    %64 = tpu.matmul %57, %63, %cst_44 {dimension_numbers = #tpu.dot_dimension_numbers<[1], [0], [0], [1], [0, 0, 1, 1], [], []>} : vector<32x32xbf16>, vector<32x32xbf16>, vector<32x32xf32> -> vector<32x32xf32>
    %65 = arith.addf %46, %64 : vector<32x32xf32>
    %c9 = arith.constant 9 : index
    %c0_45 = arith.constant 0 : index
    %c0_46 = arith.constant 0 : index
    %66 = vector.load %arg9[%c9, %c0_45, %c0_46] : memref<32x32x32xbf16, #tpu.memory_space<vmem>>, vector<1x32x32xbf16>
    %67 = vector.shape_cast %66 : vector<1x32x32xbf16> to vector<32x32xbf16>
    %cst_47 = arith.constant dense<0.000000e+00> : vector<32x32xf32>
    %68 = tpu.matmul %57, %67, %cst_47 {dimension_numbers = #tpu.dot_dimension_numbers<[1], [0], [0], [1], [0, 0, 1, 1], [], []>} : vector<32x32xbf16>, vector<32x32xbf16>, vector<32x32xf32> -> vector<32x32xf32>
    %69 = arith.addf %55, %68 : vector<32x32xf32>
    %c12 = arith.constant 12 : index
    %c0_48 = arith.constant 0 : index
    %c0_49 = arith.constant 0 : index
    %70 = vector.load %arg9[%c12, %c0_48, %c0_49] : memref<32x32x32xbf16, #tpu.memory_space<vmem>>, vector<1x32x32xbf16>
    %71 = vector.shape_cast %70 : vector<1x32x32xbf16> to vector<32x32xbf16>
    %cst_50 = arith.constant dense<0.000000e+00> : vector<32x32xf32>
    %72 = tpu.matmul %57, %71, %cst_50 {dimension_numbers = #tpu.dot_dimension_numbers<[1], [0], [0], [1], [0, 0, 1, 1], [], []>} : vector<32x32xbf16>, vector<32x32xbf16>, vector<32x32xf32> -> vector<32x32xf32>
    %73 = vector.extract_strided_slice %13 {offsets = [1, 0, 0], sizes = [4, 8, 32], strides = [1, 1, 1]} : vector<6x8x32xbf16> to vector<4x8x32xbf16>
    %74 = vector.shape_cast %73 : vector<4x8x32xbf16> to vector<32x32xbf16>
    %c7 = arith.constant 7 : index
    %c0_51 = arith.constant 0 : index
    %c0_52 = arith.constant 0 : index
    %75 = vector.load %arg9[%c7, %c0_51, %c0_52] : memref<32x32x32xbf16, #tpu.memory_space<vmem>>, vector<1x32x32xbf16>
    %76 = vector.shape_cast %75 : vector<1x32x32xbf16> to vector<32x32xbf16>
    %cst_53 = arith.constant dense<0.000000e+00> : vector<32x32xf32>
    %77 = tpu.matmul %74, %76, %cst_53 {dimension_numbers = #tpu.dot_dimension_numbers<[1], [0], [0], [1], [0, 0, 1, 1], [], []>} : vector<32x32xbf16>, vector<32x32xbf16>, vector<32x32xf32> -> vector<32x32xf32>
    %78 = arith.addf %65, %77 : vector<32x32xf32>
    %c13 = arith.constant 13 : index
    %c0_54 = arith.constant 0 : index
    %c0_55 = arith.constant 0 : index
    %79 = vector.load %arg9[%c13, %c0_54, %c0_55] : memref<32x32x32xbf16, #tpu.memory_space<vmem>>, vector<1x32x32xbf16>
    %80 = vector.shape_cast %79 : vector<1x32x32xbf16> to vector<32x32xbf16>
    %cst_56 = arith.constant dense<0.000000e+00> : vector<32x32xf32>
    %81 = tpu.matmul %74, %80, %cst_56 {dimension_numbers = #tpu.dot_dimension_numbers<[1], [0], [0], [1], [0, 0, 1, 1], [], []>} : vector<32x32xbf16>, vector<32x32xbf16>, vector<32x32xf32> -> vector<32x32xf32>
    %82 = arith.addf %72, %81 : vector<32x32xf32>
    %83 = vector.extract_strided_slice %7 {offsets = [2, 0, 0], sizes = [4, 8, 32], strides = [1, 1, 1]} : vector<6x8x32xbf16> to vector<4x8x32xbf16>
    %84 = vector.shape_cast %83 : vector<4x8x32xbf16> to vector<32x32xbf16>
    %c10 = arith.constant 10 : index
    %c0_57 = arith.constant 0 : index
    %c0_58 = arith.constant 0 : index
    %85 = vector.load %arg9[%c10, %c0_57, %c0_58] : memref<32x32x32xbf16, #tpu.memory_space<vmem>>, vector<1x32x32xbf16>
    %86 = vector.shape_cast %85 : vector<1x32x32xbf16> to vector<32x32xbf16>
    %cst_59 = arith.constant dense<0.000000e+00> : vector<32x32xf32>
    %87 = tpu.matmul %84, %86, %cst_59 {dimension_numbers = #tpu.dot_dimension_numbers<[1], [0], [0], [1], [0, 0, 1, 1], [], []>} : vector<32x32xbf16>, vector<32x32xbf16>, vector<32x32xf32> -> vector<32x32xf32>
    %88 = arith.addf %69, %87 : vector<32x32xf32>
    %89 = vector.extract_strided_slice %10 {offsets = [2, 0, 0], sizes = [4, 8, 32], strides = [1, 1, 1]} : vector<6x8x32xbf16> to vector<4x8x32xbf16>
    %90 = vector.shape_cast %89 : vector<4x8x32xbf16> to vector<32x32xbf16>
    %c11 = arith.constant 11 : index
    %c0_60 = arith.constant 0 : index
    %c0_61 = arith.constant 0 : index
    %91 = vector.load %arg9[%c11, %c0_60, %c0_61] : memref<32x32x32xbf16, #tpu.memory_space<vmem>>, vector<1x32x32xbf16>
    %92 = vector.shape_cast %91 : vector<1x32x32xbf16> to vector<32x32xbf16>
    %cst_62 = arith.constant dense<0.000000e+00> : vector<32x32xf32>
    %93 = tpu.matmul %90, %92, %cst_62 {dimension_numbers = #tpu.dot_dimension_numbers<[1], [0], [0], [1], [0, 0, 1, 1], [], []>} : vector<32x32xbf16>, vector<32x32xbf16>, vector<32x32xf32> -> vector<32x32xf32>
    %94 = arith.addf %88, %93 : vector<32x32xf32>
    %c14 = arith.constant 14 : index
    %c0_63 = arith.constant 0 : index
    %c0_64 = arith.constant 0 : index
    %95 = vector.load %arg9[%c14, %c0_63, %c0_64] : memref<32x32x32xbf16, #tpu.memory_space<vmem>>, vector<1x32x32xbf16>
    %96 = vector.shape_cast %95 : vector<1x32x32xbf16> to vector<32x32xbf16>
    %cst_65 = arith.constant dense<0.000000e+00> : vector<32x32xf32>
    %97 = tpu.matmul %90, %96, %cst_65 {dimension_numbers = #tpu.dot_dimension_numbers<[1], [0], [0], [1], [0, 0, 1, 1], [], []>} : vector<32x32xbf16>, vector<32x32xbf16>, vector<32x32xf32> -> vector<32x32xf32>
    %98 = arith.addf %82, %97 : vector<32x32xf32>
    %99 = vector.extract_strided_slice %13 {offsets = [2, 0, 0], sizes = [4, 8, 32], strides = [1, 1, 1]} : vector<6x8x32xbf16> to vector<4x8x32xbf16>
    %100 = vector.shape_cast %99 : vector<4x8x32xbf16> to vector<32x32xbf16>
    %c15 = arith.constant 15 : index
    %c0_66 = arith.constant 0 : index
    %c0_67 = arith.constant 0 : index
    %101 = vector.load %arg9[%c15, %c0_66, %c0_67] : memref<32x32x32xbf16, #tpu.memory_space<vmem>>, vector<1x32x32xbf16>
    %102 = vector.shape_cast %101 : vector<1x32x32xbf16> to vector<32x32xbf16>
    %cst_68 = arith.constant dense<0.000000e+00> : vector<32x32xf32>
    %103 = tpu.matmul %100, %102, %cst_68 {dimension_numbers = #tpu.dot_dimension_numbers<[1], [0], [0], [1], [0, 0, 1, 1], [], []>} : vector<32x32xbf16>, vector<32x32xbf16>, vector<32x32xf32> -> vector<32x32xf32>
    %104 = arith.addf %98, %103 : vector<32x32xf32>
    %105 = vector.extract_strided_slice %20 {offsets = [0, 0, 0], sizes = [4, 8, 32], strides = [1, 1, 1]} : vector<6x8x32xbf16> to vector<4x8x32xbf16>
    %106 = vector.shape_cast %105 : vector<4x8x32xbf16> to vector<32x32xbf16>
    %c16 = arith.constant 16 : index
    %c0_69 = arith.constant 0 : index
    %c0_70 = arith.constant 0 : index
    %107 = vector.load %arg9[%c16, %c0_69, %c0_70] : memref<32x32x32xbf16, #tpu.memory_space<vmem>>, vector<1x32x32xbf16>
    %108 = vector.shape_cast %107 : vector<1x32x32xbf16> to vector<32x32xbf16>
    %cst_71 = arith.constant dense<0.000000e+00> : vector<32x32xf32>
    %109 = tpu.matmul %106, %108, %cst_71 {dimension_numbers = #tpu.dot_dimension_numbers<[1], [0], [0], [1], [0, 0, 1, 1], [], []>} : vector<32x32xbf16>, vector<32x32xbf16>, vector<32x32xf32> -> vector<32x32xf32>
    %110 = arith.addf %61, %109 : vector<32x32xf32>
    %111 = vector.extract_strided_slice %23 {offsets = [0, 0, 0], sizes = [4, 8, 32], strides = [1, 1, 1]} : vector<6x8x32xbf16> to vector<4x8x32xbf16>
    %112 = vector.shape_cast %111 : vector<4x8x32xbf16> to vector<32x32xbf16>
    %c17 = arith.constant 17 : index
    %c0_72 = arith.constant 0 : index
    %c0_73 = arith.constant 0 : index
    %113 = vector.load %arg9[%c17, %c0_72, %c0_73] : memref<32x32x32xbf16, #tpu.memory_space<vmem>>, vector<1x32x32xbf16>
    %114 = vector.shape_cast %113 : vector<1x32x32xbf16> to vector<32x32xbf16>
    %cst_74 = arith.constant dense<0.000000e+00> : vector<32x32xf32>
    %115 = tpu.matmul %112, %114, %cst_74 {dimension_numbers = #tpu.dot_dimension_numbers<[1], [0], [0], [1], [0, 0, 1, 1], [], []>} : vector<32x32xbf16>, vector<32x32xbf16>, vector<32x32xf32> -> vector<32x32xf32>
    %116 = arith.addf %110, %115 : vector<32x32xf32>
    %c20 = arith.constant 20 : index
    %c0_75 = arith.constant 0 : index
    %c0_76 = arith.constant 0 : index
    %117 = vector.load %arg9[%c20, %c0_75, %c0_76] : memref<32x32x32xbf16, #tpu.memory_space<vmem>>, vector<1x32x32xbf16>
    %118 = vector.shape_cast %117 : vector<1x32x32xbf16> to vector<32x32xbf16>
    %cst_77 = arith.constant dense<0.000000e+00> : vector<32x32xf32>
    %119 = tpu.matmul %112, %118, %cst_77 {dimension_numbers = #tpu.dot_dimension_numbers<[1], [0], [0], [1], [0, 0, 1, 1], [], []>} : vector<32x32xbf16>, vector<32x32xbf16>, vector<32x32xf32> -> vector<32x32xf32>
    %120 = arith.addf %78, %119 : vector<32x32xf32>
    %121 = vector.extract_strided_slice %26 {offsets = [0, 0, 0], sizes = [4, 8, 32], strides = [1, 1, 1]} : vector<6x8x32xbf16> to vector<4x8x32xbf16>
    %122 = vector.shape_cast %121 : vector<4x8x32xbf16> to vector<32x32xbf16>
    %c21 = arith.constant 21 : index
    %c0_78 = arith.constant 0 : index
    %c0_79 = arith.constant 0 : index
    %123 = vector.load %arg9[%c21, %c0_78, %c0_79] : memref<32x32x32xbf16, #tpu.memory_space<vmem>>, vector<1x32x32xbf16>
    %124 = vector.shape_cast %123 : vector<1x32x32xbf16> to vector<32x32xbf16>
    %cst_80 = arith.constant dense<0.000000e+00> : vector<32x32xf32>
    %125 = tpu.matmul %122, %124, %cst_80 {dimension_numbers = #tpu.dot_dimension_numbers<[1], [0], [0], [1], [0, 0, 1, 1], [], []>} : vector<32x32xbf16>, vector<32x32xbf16>, vector<32x32xf32> -> vector<32x32xf32>
    %126 = arith.addf %120, %125 : vector<32x32xf32>
    %127 = vector.extract_strided_slice %20 {offsets = [1, 0, 0], sizes = [4, 8, 32], strides = [1, 1, 1]} : vector<6x8x32xbf16> to vector<4x8x32xbf16>
    %128 = vector.shape_cast %127 : vector<4x8x32xbf16> to vector<32x32xbf16>
    %c18 = arith.constant 18 : index
    %c0_81 = arith.constant 0 : index
    %c0_82 = arith.constant 0 : index
    %129 = vector.load %arg9[%c18, %c0_81, %c0_82] : memref<32x32x32xbf16, #tpu.memory_space<vmem>>, vector<1x32x32xbf16>
    %130 = vector.shape_cast %129 : vector<1x32x32xbf16> to vector<32x32xbf16>
    %cst_83 = arith.constant dense<0.000000e+00> : vector<32x32xf32>
    %131 = tpu.matmul %128, %130, %cst_83 {dimension_numbers = #tpu.dot_dimension_numbers<[1], [0], [0], [1], [0, 0, 1, 1], [], []>} : vector<32x32xbf16>, vector<32x32xbf16>, vector<32x32xf32> -> vector<32x32xf32>
    %132 = arith.addf %116, %131 : vector<32x32xf32>
    %c24 = arith.constant 24 : index
    %c0_84 = arith.constant 0 : index
    %c0_85 = arith.constant 0 : index
    %133 = vector.load %arg9[%c24, %c0_84, %c0_85] : memref<32x32x32xbf16, #tpu.memory_space<vmem>>, vector<1x32x32xbf16>
    %134 = vector.shape_cast %133 : vector<1x32x32xbf16> to vector<32x32xbf16>
    %cst_86 = arith.constant dense<0.000000e+00> : vector<32x32xf32>
    %135 = tpu.matmul %128, %134, %cst_86 {dimension_numbers = #tpu.dot_dimension_numbers<[1], [0], [0], [1], [0, 0, 1, 1], [], []>} : vector<32x32xbf16>, vector<32x32xbf16>, vector<32x32xf32> -> vector<32x32xf32>
    %136 = arith.addf %94, %135 : vector<32x32xf32>
    %137 = vector.extract_strided_slice %23 {offsets = [1, 0, 0], sizes = [4, 8, 32], strides = [1, 1, 1]} : vector<6x8x32xbf16> to vector<4x8x32xbf16>
    %138 = vector.shape_cast %137 : vector<4x8x32xbf16> to vector<32x32xbf16>
    %c19 = arith.constant 19 : index
    %c0_87 = arith.constant 0 : index
    %c0_88 = arith.constant 0 : index
    %139 = vector.load %arg9[%c19, %c0_87, %c0_88] : memref<32x32x32xbf16, #tpu.memory_space<vmem>>, vector<1x32x32xbf16>
    %140 = vector.shape_cast %139 : vector<1x32x32xbf16> to vector<32x32xbf16>
    %cst_89 = arith.constant dense<0.000000e+00> : vector<32x32xf32>
    %141 = tpu.matmul %138, %140, %cst_89 {dimension_numbers = #tpu.dot_dimension_numbers<[1], [0], [0], [1], [0, 0, 1, 1], [], []>} : vector<32x32xbf16>, vector<32x32xbf16>, vector<32x32xf32> -> vector<32x32xf32>
    %142 = arith.addf %132, %141 : vector<32x32xf32>
    %c22 = arith.constant 22 : index
    %c0_90 = arith.constant 0 : index
    %c0_91 = arith.constant 0 : index
    %143 = vector.load %arg9[%c22, %c0_90, %c0_91] : memref<32x32x32xbf16, #tpu.memory_space<vmem>>, vector<1x32x32xbf16>
    %144 = vector.shape_cast %143 : vector<1x32x32xbf16> to vector<32x32xbf16>
    %cst_92 = arith.constant dense<0.000000e+00> : vector<32x32xf32>
    %145 = tpu.matmul %138, %144, %cst_92 {dimension_numbers = #tpu.dot_dimension_numbers<[1], [0], [0], [1], [0, 0, 1, 1], [], []>} : vector<32x32xbf16>, vector<32x32xbf16>, vector<32x32xf32> -> vector<32x32xf32>
    %146 = arith.addf %126, %145 : vector<32x32xf32>
    %c25 = arith.constant 25 : index
    %c0_93 = arith.constant 0 : index
    %c0_94 = arith.constant 0 : index
    %147 = vector.load %arg9[%c25, %c0_93, %c0_94] : memref<32x32x32xbf16, #tpu.memory_space<vmem>>, vector<1x32x32xbf16>
    %148 = vector.shape_cast %147 : vector<1x32x32xbf16> to vector<32x32xbf16>
    %cst_95 = arith.constant dense<0.000000e+00> : vector<32x32xf32>
    %149 = tpu.matmul %138, %148, %cst_95 {dimension_numbers = #tpu.dot_dimension_numbers<[1], [0], [0], [1], [0, 0, 1, 1], [], []>} : vector<32x32xbf16>, vector<32x32xbf16>, vector<32x32xf32> -> vector<32x32xf32>
    %150 = arith.addf %136, %149 : vector<32x32xf32>
    %c28 = arith.constant 28 : index
    %c0_96 = arith.constant 0 : index
    %c0_97 = arith.constant 0 : index
    %151 = vector.load %arg9[%c28, %c0_96, %c0_97] : memref<32x32x32xbf16, #tpu.memory_space<vmem>>, vector<1x32x32xbf16>
    %152 = vector.shape_cast %151 : vector<1x32x32xbf16> to vector<32x32xbf16>
    %cst_98 = arith.constant dense<0.000000e+00> : vector<32x32xf32>
    %153 = tpu.matmul %138, %152, %cst_98 {dimension_numbers = #tpu.dot_dimension_numbers<[1], [0], [0], [1], [0, 0, 1, 1], [], []>} : vector<32x32xbf16>, vector<32x32xbf16>, vector<32x32xf32> -> vector<32x32xf32>
    %154 = arith.addf %104, %153 : vector<32x32xf32>
    %155 = vector.extract_strided_slice %26 {offsets = [1, 0, 0], sizes = [4, 8, 32], strides = [1, 1, 1]} : vector<6x8x32xbf16> to vector<4x8x32xbf16>
    %156 = vector.shape_cast %155 : vector<4x8x32xbf16> to vector<32x32xbf16>
    %c23 = arith.constant 23 : index
    %c0_99 = arith.constant 0 : index
    %c0_100 = arith.constant 0 : index
    %157 = vector.load %arg9[%c23, %c0_99, %c0_100] : memref<32x32x32xbf16, #tpu.memory_space<vmem>>, vector<1x32x32xbf16>
    %158 = vector.shape_cast %157 : vector<1x32x32xbf16> to vector<32x32xbf16>
    %cst_101 = arith.constant dense<0.000000e+00> : vector<32x32xf32>
    %159 = tpu.matmul %156, %158, %cst_101 {dimension_numbers = #tpu.dot_dimension_numbers<[1], [0], [0], [1], [0, 0, 1, 1], [], []>} : vector<32x32xbf16>, vector<32x32xbf16>, vector<32x32xf32> -> vector<32x32xf32>
    %160 = arith.addf %146, %159 : vector<32x32xf32>
    %c29 = arith.constant 29 : index
    %c0_102 = arith.constant 0 : index
    %c0_103 = arith.constant 0 : index
    %161 = vector.load %arg9[%c29, %c0_102, %c0_103] : memref<32x32x32xbf16, #tpu.memory_space<vmem>>, vector<1x32x32xbf16>
    %162 = vector.shape_cast %161 : vector<1x32x32xbf16> to vector<32x32xbf16>
    %cst_104 = arith.constant dense<0.000000e+00> : vector<32x32xf32>
    %163 = tpu.matmul %156, %162, %cst_104 {dimension_numbers = #tpu.dot_dimension_numbers<[1], [0], [0], [1], [0, 0, 1, 1], [], []>} : vector<32x32xbf16>, vector<32x32xbf16>, vector<32x32xf32> -> vector<32x32xf32>
    %164 = arith.addf %154, %163 : vector<32x32xf32>
    %165 = vector.extract_strided_slice %20 {offsets = [2, 0, 0], sizes = [4, 8, 32], strides = [1, 1, 1]} : vector<6x8x32xbf16> to vector<4x8x32xbf16>
    %166 = vector.shape_cast %165 : vector<4x8x32xbf16> to vector<32x32xbf16>
    %c26 = arith.constant 26 : index
    %c0_105 = arith.constant 0 : index
    %c0_106 = arith.constant 0 : index
    %167 = vector.load %arg9[%c26, %c0_105, %c0_106] : memref<32x32x32xbf16, #tpu.memory_space<vmem>>, vector<1x32x32xbf16>
    %168 = vector.shape_cast %167 : vector<1x32x32xbf16> to vector<32x32xbf16>
    %cst_107 = arith.constant dense<0.000000e+00> : vector<32x32xf32>
    %169 = tpu.matmul %166, %168, %cst_107 {dimension_numbers = #tpu.dot_dimension_numbers<[1], [0], [0], [1], [0, 0, 1, 1], [], []>} : vector<32x32xbf16>, vector<32x32xbf16>, vector<32x32xf32> -> vector<32x32xf32>
    %170 = arith.addf %150, %169 : vector<32x32xf32>
    %171 = vector.extract_strided_slice %23 {offsets = [2, 0, 0], sizes = [4, 8, 32], strides = [1, 1, 1]} : vector<6x8x32xbf16> to vector<4x8x32xbf16>
    %172 = vector.shape_cast %171 : vector<4x8x32xbf16> to vector<32x32xbf16>
    %c27 = arith.constant 27 : index
    %c0_108 = arith.constant 0 : index
    %c0_109 = arith.constant 0 : index
    %173 = vector.load %arg9[%c27, %c0_108, %c0_109] : memref<32x32x32xbf16, #tpu.memory_space<vmem>>, vector<1x32x32xbf16>
    %174 = vector.shape_cast %173 : vector<1x32x32xbf16> to vector<32x32xbf16>
    %cst_110 = arith.constant dense<0.000000e+00> : vector<32x32xf32>
    %175 = tpu.matmul %172, %174, %cst_110 {dimension_numbers = #tpu.dot_dimension_numbers<[1], [0], [0], [1], [0, 0, 1, 1], [], []>} : vector<32x32xbf16>, vector<32x32xbf16>, vector<32x32xf32> -> vector<32x32xf32>
    %176 = arith.addf %170, %175 : vector<32x32xf32>
    %c30 = arith.constant 30 : index
    %c0_111 = arith.constant 0 : index
    %c0_112 = arith.constant 0 : index
    %177 = vector.load %arg9[%c30, %c0_111, %c0_112] : memref<32x32x32xbf16, #tpu.memory_space<vmem>>, vector<1x32x32xbf16>
    %178 = vector.shape_cast %177 : vector<1x32x32xbf16> to vector<32x32xbf16>
    %cst_113 = arith.constant dense<0.000000e+00> : vector<32x32xf32>
    %179 = tpu.matmul %172, %178, %cst_113 {dimension_numbers = #tpu.dot_dimension_numbers<[1], [0], [0], [1], [0, 0, 1, 1], [], []>} : vector<32x32xbf16>, vector<32x32xbf16>, vector<32x32xf32> -> vector<32x32xf32>
    %180 = arith.addf %164, %179 : vector<32x32xf32>
    %181 = vector.extract_strided_slice %26 {offsets = [2, 0, 0], sizes = [4, 8, 32], strides = [1, 1, 1]} : vector<6x8x32xbf16> to vector<4x8x32xbf16>
    %182 = vector.shape_cast %181 : vector<4x8x32xbf16> to vector<32x32xbf16>
    %c31 = arith.constant 31 : index
    %c0_114 = arith.constant 0 : index
    %c0_115 = arith.constant 0 : index
    %183 = vector.load %arg9[%c31, %c0_114, %c0_115] : memref<32x32x32xbf16, #tpu.memory_space<vmem>>, vector<1x32x32xbf16>
    %184 = vector.shape_cast %183 : vector<1x32x32xbf16> to vector<32x32xbf16>
    %cst_116 = arith.constant dense<0.000000e+00> : vector<32x32xf32>
    %185 = tpu.matmul %182, %184, %cst_116 {dimension_numbers = #tpu.dot_dimension_numbers<[1], [0], [0], [1], [0, 0, 1, 1], [], []>} : vector<32x32xbf16>, vector<32x32xbf16>, vector<32x32xf32> -> vector<32x32xf32>
    %186 = arith.addf %180, %185 : vector<32x32xf32>
    %187 = vector.broadcast %0 : vector<1x32xf32> to vector<32x32xf32>
    %188 = arith.addf %142, %187 : vector<32x32xf32>
    %189 = arith.truncf %188 : vector<32x32xf32> to vector<32x32xbf16>
    %190 = vector.shape_cast %189 : vector<32x32xbf16> to vector<4x8x32xbf16>
    %191 = vector.broadcast %0 : vector<1x32xf32> to vector<32x32xf32>
    %192 = arith.addf %160, %191 : vector<32x32xf32>
    %193 = arith.truncf %192 : vector<32x32xf32> to vector<32x32xbf16>
    %194 = vector.shape_cast %193 : vector<32x32xbf16> to vector<4x8x32xbf16>
    %195 = vector.broadcast %0 : vector<1x32xf32> to vector<32x32xf32>
    %196 = arith.addf %176, %195 : vector<32x32xf32>
    %197 = arith.truncf %196 : vector<32x32xf32> to vector<32x32xbf16>
    %198 = vector.shape_cast %197 : vector<32x32xbf16> to vector<4x8x32xbf16>
    %199 = vector.broadcast %0 : vector<1x32xf32> to vector<32x32xf32>
    %200 = arith.addf %186, %199 : vector<32x32xf32>
    %201 = arith.truncf %200 : vector<32x32xf32> to vector<32x32xbf16>
    %202 = vector.shape_cast %201 : vector<32x32xbf16> to vector<4x8x32xbf16>
    %203 = vector.shape_cast %190 : vector<4x8x32xbf16> to vector<4x8x1x32xbf16>
    %204 = vector.shape_cast %194 : vector<4x8x32xbf16> to vector<4x8x1x32xbf16>
    %205 = tpu.concatenate %203, %204 in 2 : vector<4x8x1x32xbf16>, vector<4x8x1x32xbf16> -> vector<4x8x2x32xbf16>
    %206 = vector.shape_cast %205 : vector<4x8x2x32xbf16> to vector<4x16x32xbf16>
    %207 = vector.shape_cast %198 : vector<4x8x32xbf16> to vector<4x8x1x32xbf16>
    %208 = vector.shape_cast %202 : vector<4x8x32xbf16> to vector<4x8x1x32xbf16>
    %209 = tpu.concatenate %207, %208 in 2 : vector<4x8x1x32xbf16>, vector<4x8x1x32xbf16> -> vector<4x8x2x32xbf16>
    %210 = vector.shape_cast %209 : vector<4x8x2x32xbf16> to vector<4x16x32xbf16>
    %211 = vector.shape_cast %206 : vector<4x16x32xbf16> to vector<4x1x16x32xbf16>
    %212 = vector.shape_cast %210 : vector<4x16x32xbf16> to vector<4x1x16x32xbf16>
    %213 = tpu.concatenate %211, %212 in 1 : vector<4x1x16x32xbf16>, vector<4x1x16x32xbf16> -> vector<4x2x16x32xbf16>
    %214 = vector.shape_cast %213 : vector<4x2x16x32xbf16> to vector<8x16x32xbf16>
    %215 = vector.shape_cast %214 : vector<8x16x32xbf16> to vector<1x1x8x16x32xbf16>
    %c0_117 = arith.constant 0 : index
    %c0_118 = arith.constant 0 : index
    %c0_119 = arith.constant 0 : index
    %c0_120 = arith.constant 0 : index
    %c0_121 = arith.constant 0 : index
    %216 = vector.load %arg11[%c0_117, %c0_118, %c0_119, %c0_120, %c0_121] : memref<1x1x8x16x32xbf16, #tpu.memory_space<vmem>>, vector<1x1x8x16x32xbf16>
    tpu.vector_store %arg11[%c0_117, %c0_118, %c0_119, %c0_120, %c0_121], %215 {strides = array<i32>} : memref<1x1x8x16x32xbf16, #tpu.memory_space<vmem>>, vector<1x1x8x16x32xbf16>,
    return
  }
  func.func @transform_0(%arg0: i32, %arg1: i32, %arg2: i32, %arg3: i32, %arg4: memref<5x3xi32, #tpu.memory_space<smem>>) -> (i32, i32, i32, i32, i32) {
    %0 = arith.index_cast %arg2 : i32 to index
    %c0 = arith.constant 0 : index
    %1 = memref.load %arg4[%0, %c0] : memref<5x3xi32, #tpu.memory_space<smem>>
    %c0_i32 = arith.constant 0 : i32
    %c0_i32_0 = arith.constant 0 : i32
    %c0_i32_1 = arith.constant 0 : i32
    return %arg0, %1, %arg3, %c0_i32, %c0_i32_0 : i32, i32, i32, i32, i32
  }
  func.func @transform_1(%arg0: i32, %arg1: i32, %arg2: i32, %arg3: i32, %arg4: memref<5x3xi32, #tpu.memory_space<smem>>) -> (i32, i32, i32, i32, i32) {
    %0 = arith.index_cast %arg2 : i32 to index
    %c0 = arith.constant 0 : index
    %1 = memref.load %arg4[%0, %c0] : memref<5x3xi32, #tpu.memory_space<smem>>
    %c1_i32 = arith.constant 1 : i32
    %2 = arith.addi %arg3, %c1_i32 : i32
    %c2_i32 = arith.constant 2 : i32
    %3 = arith.muli %2, %c2_i32 : i32
    %c0_i32 = arith.constant 0 : i32
    %c0_i32_0 = arith.constant 0 : i32
    %c0_i32_1 = arith.constant 0 : i32
    return %arg0, %1, %3, %c0_i32, %c0_i32_0 : i32, i32, i32, i32, i32
  }
  func.func @transform_2(%arg0: i32, %arg1: i32, %arg2: i32, %arg3: i32, %arg4: memref<5x3xi32, #tpu.memory_space<smem>>) -> (i32, i32, i32, i32, i32) {
    %0 = arith.index_cast %arg2 : i32 to index
    %c1 = arith.constant 1 : index
    %1 = memref.load %arg4[%0, %c1] : memref<5x3xi32, #tpu.memory_space<smem>>
    %c0_i32 = arith.constant 0 : i32
    %c0_i32_0 = arith.constant 0 : i32
    %c0_i32_1 = arith.constant 0 : i32
    return %arg0, %1, %arg3, %c0_i32, %c0_i32_0 : i32, i32, i32, i32, i32
  }
  func.func @transform_3(%arg0: i32, %arg1: i32, %arg2: i32, %arg3: i32, %arg4: memref<5x3xi32, #tpu.memory_space<smem>>) -> (i32, i32, i32, i32, i32) {
    %0 = arith.index_cast %arg2 : i32 to index
    %c1 = arith.constant 1 : index
    %1 = memref.load %arg4[%0, %c1] : memref<5x3xi32, #tpu.memory_space<smem>>
    %c1_i32 = arith.constant 1 : i32
    %2 = arith.addi %arg3, %c1_i32 : i32
    %c2_i32 = arith.constant 2 : i32
    %3 = arith.muli %2, %c2_i32 : i32
    %c0_i32 = arith.constant 0 : i32
    %c0_i32_0 = arith.constant 0 : i32
    %c0_i32_1 = arith.constant 0 : i32
    return %arg0, %1, %3, %c0_i32, %c0_i32_0 : i32, i32, i32, i32, i32
  }
  func.func @transform_4(%arg0: i32, %arg1: i32, %arg2: i32, %arg3: i32, %arg4: memref<5x3xi32, #tpu.memory_space<smem>>) -> (i32, i32, i32) {
    %0 = arith.index_cast %arg2 : i32 to index
    %c2 = arith.constant 2 : index
    %1 = memref.load %arg4[%0, %c2] : memref<5x3xi32, #tpu.memory_space<smem>>
    %c0_i32 = arith.constant 0 : i32
    %c0_i32_0 = arith.constant 0 : i32
    return %1, %c0_i32, %arg1 : i32, i32, i32
  }
  func.func @transform_5(%arg0: i32, %arg1: i32, %arg2: i32, %arg3: i32, %arg4: memref<5x3xi32, #tpu.memory_space<smem>>) -> (i32, i32) {
    %c0_i32 = arith.constant 0 : i32
    %c0_i32_0 = arith.constant 0 : i32
    return %c0_i32, %arg1 : i32, i32
  }
  func.func @transform_6(%arg0: i32, %arg1: i32, %arg2: i32, %arg3: i32, %arg4: memref<5x3xi32, #tpu.memory_space<smem>>) -> (i32, i32, i32, i32, i32) {
    %c0_i32 = arith.constant 0 : i32
    %c0_i32_0 = arith.constant 0 : i32
    return %arg0, %arg2, %arg3, %c0_i32, %arg1 : i32, i32, i32, i32, i32
  }
}

</mosaic_0001>

<llo_original>
// kernel: upsample_causal3d_forward.1
$region0: #{upsample_causal3d_forward.1}
  #allocation0 [shape = 'u32[]', space=smem, size = 0x4, offset = 0x4, fixed_abs, tag = 'smem constant byte address 0x4 - core index']
  #allocation1 [shape = 'u32[144,128]{1,0:T(1,128)}', space=vmem, size = 0x12000, scoped, tag = 'internal scratch']
  #allocation2 [shape = 's32[1]{0}', space=sflag, size = 0x4, scoped, tag = 'scoped memory for upsample_causal3d_forward.1']
  #allocation3 [shape = 'u8[4096]{0}', space=smem, size = 0x1000, scoped, tag = 'prefetched SMEM operand 0']
  %s0 = inlined_call_operand.vmem [shape: s32[5,3], index: 0, kind: input, shape index: {}]
  %s1 = inlined_call_operand.vmem [shape: bf16[2,3,10,10,32], index: 1, kind: input, shape index: {}, may-alias: {1,2,3,4}]
  %s2 = inlined_call_operand.vmem [shape: bf16[2,3,10,10,32], index: 2, kind: input, shape index: {}, may-alias: {1,2,3,4}]
  %s3 = inlined_call_operand.vmem [shape: bf16[2,3,10,10,32], index: 3, kind: input, shape index: {}, may-alias: {1,2,3,4}]
  %s4 = inlined_call_operand.vmem [shape: bf16[2,3,10,10,32], index: 4, kind: input, shape index: {}, may-alias: {1,2,3,4}]
  %s5 = inlined_call_operand.vmem [shape: bf16[64,32,32], index: 5, kind: input, shape index: {}]
  %s6 = inlined_call_operand.vmem [shape: f32[1,32], index: 6, kind: input, shape index: {}]
  %s7 = inlined_call_operand.hbm [shape: bf16[2,5,16,16,32], index: 7, kind: output, shape index: {}]
  %s8 = sld [smem:[#allocation0]]
  $region57: #{upsample_causal3d_forward.1} parent=0
    _
  %s10 = ssub.s32 1, %s8
  %s11 = scalar_select 0, %s10, %s8
  %s12 = sshll.u32 %s0, 4
  %s13 = int_to_ptr.vmem [resolvable:$true] %s12
  %15 = dma.vmem_to_smem %s13, 128, [#allocation3], [#allocation2]
  %16 = dma.done [#allocation2], 128
  %17 = sfence
  $region1: #{upsample_causal3d_forward.1} parent=0
    #allocation4 [shape = 'u8[65536]{0}', space=vmem, size = 0x10000, scoped, tag = 'output window, operand 0']
    #allocation5 [shape = 's32[2]{0}', space=sflag, size = 0x8, scoped, tag = 'scoped memory for upsample_causal3d_forward.1']
    %18 = vsyncpa [#allocation5], 0
    %s19 = scalar_lea.sflag [#allocation5], 1
    %20 = vsyncpa %s19, 0
    loop: start=0, step=1, limit=22
    $region2: #{upsample_causal3d_forward.1} parent=1 // loop_pre_header
      _
    $region3: #{upsample_causal3d_forward.1} parent=1 // loop_header
      %s22 = sphi 0, %s26
      %p23 = scmp.ge.s32.totalorder %s22, 22
      %s29 = sphi 0, %s55
      %s30 = sphi 0, %s51
      %s31 = sphi 0, %s47
      %s32 = sphi 0, %s43
      %s33 = sphi 0, %s29
      %s34 = sphi 0, %s30
      %s35 = sphi 0, %s31
      %s36 = sphi 0, %s32
      %s37 = sphi 0, %s33
      %s38 = sphi 0, %s34
      %s39 = sphi 0, %s35
      %s40 = sphi 0, %s36
      %s66 = sphi 0, %s68
      %s69 = sphi 0, %s66
      %s70 = sphi 0, %s69
      %s86 = sphi 0, %s70
      %s104 = sphi 0, %s106
      %s107 = sphi 0, %s104
      %s108 = sphi 0, %s107
      %s124 = sphi 0, %s108
      %s140 = sphi 0, %s142
      %s143 = sphi 0, %s140
      %s144 = sphi 0, %s143
      %s160 = sphi 0, %s144
      %s180 = sphi 0, %s182
      %s183 = sphi 0, %s180
      %s184 = sphi 0, %s183
      %s200 = sphi 0, %s184
      %s214 = sphi 0, %s216
      %s217 = sphi 0, %s214
      %s218 = sphi 0, %s217
      %s234 = sphi 0, %s218
      %s240 = sphi 0, %s242
      %s243 = sphi 0, %s240
      %s244 = sphi 0, %s243
      %s260 = sphi 0, %s244
      %s272 = sphi 0, %s274
      %s275 = sphi 0, %s272
      %s276 = sphi 0, %s275
      %s292 = sphi 0, %s276
    $region4: #{upsample_causal3d_forward.1} parent=1 // loop_header_branch
      %25 = sbr.rel (%p23) target = $region8
    $region5: #{upsample_causal3d_forward.1} parent=1 // loop_body
      %s27 = ssub.s32 %s22, 1
      %s28 = ssub.s32 %s22, 2
      %s41 = sadd.s32 1, %s32
      %p42 = scmp.ge.s32.totalorder %s41, 2
      %s43 = scalar_select %p42, 0, %s41
      %s44 = sadd.s32 1, %s31
      %s45 = scalar_select %p42, %s44, %s31
      %p46 = scmp.ge.s32.totalorder %s45, 5
      %s47 = scalar_select %p46, 0, %s45
      %s48 = sadd.s32 1, %s30
      %s49 = scalar_select %p46, %s48, %s30
      %p50 = scmp.ge.s32.totalorder %s49, 1
      %s51 = scalar_select %p50, 0, %s49
      %s52 = sadd.s32 1, %s29
      %s53 = scalar_select %p50, %s52, %s29
      %p54 = scmp.ge.s32.totalorder %s53, 2
      %s55 = scalar_select %p54, 0, %s53
      %s56 = smul.u32 %s31, 128
      %s57 = sld [smem:[#allocation3 + %s56]]
      %s58 = smul.u32 %s47, 128
      %s59 = sld [smem:[#allocation3 + %s58]]
      %s60 = ssub.s32 %s29, %s55
      %s61 = ssub.s32 %s57, %s59
      %s62 = sor.u32 %s60, %s61
      %s63 = ssub.s32 %s32, %s43
      %s64 = sor.u32 %s62, %s63
      %p65 = scmp.eq.s32.totalorder %s64, 0
      %s67 = sadd.s32 %s66, 1
      %s68 = scalar_select %p65, %s66, %s67
      %p71 = pneg %p65
      %p72 = scmp.eq.s32.totalorder %s22, 19
      %p73 = por %p71, %p72
      %p74 = scmp.ne.s32.totalorder %s66, %s69
      %p75 = scmp.eq.s32.totalorder %s22, 0
      %p76 = por %p74, %p75
      %p77 = scmp.ne.s32.totalorder %s66, %s69
      %p78 = scmp.eq.s32.totalorder %s27, 19
      %p79 = por %p77, %p78
      %p80 = scmp.ne.s32.totalorder %s69, %s70
      %p81 = scmp.eq.s32.totalorder %s27, 0
      %p82 = por %p80, %p81
      %p83 = scmp.ne.s32.totalorder %s69, %s70
      %p84 = scmp.eq.s32.totalorder %s28, 19
      %p85 = por %p83, %p84
      %p87 = scmp.ne.s32.totalorder %s70, %s86
      %p88 = scmp.eq.s32.totalorder %s28, 0
      %p89 = por %p87, %p88
      %s90 = smul.u32 %s31, 128
      %s91 = sld [smem:[#allocation3 + %s90]]
      %s92 = sadd.s32 %s32, 1
      %s93 = smul.u32 %s92, 2
      %s94 = smul.u32 %s47, 128
      %s95 = sld [smem:[#allocation3 + %s94]]
      %s96 = sadd.s32 %s43, 1
      %s97 = smul.u32 %s96, 2
      %s98 = ssub.s32 %s29, %s55
      %s99 = ssub.s32 %s91, %s95
      %s100 = sor.u32 %s98, %s99
      %s101 = ssub.s32 %s93, %s97
      %s102 = sor.u32 %s100, %s101
      %p103 = scmp.eq.s32.totalorder %s102, 0
      %s105 = sadd.s32 %s104, 1
      %s106 = scalar_select %p103, %s104, %s105
      %p109 = pneg %p103
      %p110 = scmp.eq.s32.totalorder %s22, 19
      %p111 = por %p109, %p110
      %p112 = scmp.ne.s32.totalorder %s104, %s107
      %p113 = scmp.eq.s32.totalorder %s22, 0
      %p114 = por %p112, %p113
      %p115 = scmp.ne.s32.totalorder %s104, %s107
      %p116 = scmp.eq.s32.totalorder %s27, 19
      %p117 = por %p115, %p116
      %p118 = scmp.ne.s32.totalorder %s107, %s108
      %p119 = scmp.eq.s32.totalorder %s27, 0
      %p120 = por %p118, %p119
      %p121 = scmp.ne.s32.totalorder %s107, %s108
      %p122 = scmp.eq.s32.totalorder %s28, 19
      %p123 = por %p121, %p122
      %p125 = scmp.ne.s32.totalorder %s108, %s124
      %p126 = scmp.eq.s32.totalorder %s28, 0
      %p127 = por %p125, %p126
      %s128 = smul.u32 %s31, 128
      %s129 = sadd.s32 %s128, 1
      %s130 = sld [smem:[#allocation3 + %s129]]
      %s131 = smul.u32 %s47, 128
      %s132 = sadd.s32 %s131, 1
      %s133 = sld [smem:[#allocation3 + %s132]]
      %s134 = ssub.s32 %s29, %s55
      %s135 = ssub.s32 %s130, %s133
      %s136 = sor.u32 %s134, %s135
      %s137 = ssub.s32 %s32, %s43
      %s138 = sor.u32 %s136, %s137
      %p139 = scmp.eq.s32.totalorder %s138, 0
      %s141 = sadd.s32 %s140, 1
      %s142 = scalar_select %p139, %s140, %s141
      %p145 = pneg %p139
      %p146 = scmp.eq.s32.totalorder %s22, 19
      %p147 = por %p145, %p146
      %p148 = scmp.ne.s32.totalorder %s140, %s143
      %p149 = scmp.eq.s32.totalorder %s22, 0
      %p150 = por %p148, %p149
      %p151 = scmp.ne.s32.totalorder %s140, %s143
      %p152 = scmp.eq.s32.totalorder %s27, 19
      %p153 = por %p151, %p152
      %p154 = scmp.ne.s32.totalorder %s143, %s144
      %p155 = scmp.eq.s32.totalorder %s27, 0
      %p156 = por %p154, %p155
      %p157 = scmp.ne.s32.totalorder %s143, %s144
      %p158 = scmp.eq.s32.totalorder %s28, 19
      %p159 = por %p157, %p158
      %p161 = scmp.ne.s32.totalorder %s144, %s160
      %p162 = scmp.eq.s32.totalorder %s28, 0
      %p163 = por %p161, %p162
      %s164 = smul.u32 %s31, 128
      %s165 = sadd.s32 %s164, 1
      %s166 = sld [smem:[#allocation3 + %s165]]
      %s167 = sadd.s32 %s32, 1
      %s168 = smul.u32 %s167, 2
      %s169 = smul.u32 %s47, 128
      %s170 = sadd.s32 %s169, 1
      %s171 = sld [smem:[#allocation3 + %s170]]
      %s172 = sadd.s32 %s43, 1
      %s173 = smul.u32 %s172, 2
      %s174 = ssub.s32 %s29, %s55
      %s175 = ssub.s32 %s166, %s171
      %s176 = sor.u32 %s174, %s175
      %s177 = ssub.s32 %s168, %s173
      %s178 = sor.u32 %s176, %s177
      %p179 = scmp.eq.s32.totalorder %s178, 0
      %s181 = sadd.s32 %s180, 1
      %s182 = scalar_select %p179, %s180, %s181
      %p185 = pneg %p179
      %p186 = scmp.eq.s32.totalorder %s22, 19
      %p187 = por %p185, %p186
      %p188 = scmp.ne.s32.totalorder %s180, %s183
      %p189 = scmp.eq.s32.totalorder %s22, 0
      %p190 = por %p188, %p189
      %p191 = scmp.ne.s32.totalorder %s180, %s183
      %p192 = scmp.eq.s32.totalorder %s27, 19
      %p193 = por %p191, %p192
      %p194 = scmp.ne.s32.totalorder %s183, %s184
      %p195 = scmp.eq.s32.totalorder %s27, 0
      %p196 = por %p194, %p195
      %p197 = scmp.ne.s32.totalorder %s183, %s184
      %p198 = scmp.eq.s32.totalorder %s28, 19
      %p199 = por %p197, %p198
      %p201 = scmp.ne.s32.totalorder %s184, %s200
      %p202 = scmp.eq.s32.totalorder %s28, 0
      %p203 = por %p201, %p202
      %s204 = smul.u32 %s31, 128
      %s205 = sadd.s32 %s204, 2
      %s206 = sld [smem:[#allocation3 + %s205]]
      %s207 = smul.u32 %s47, 128
      %s208 = sadd.s32 %s207, 2
      %s209 = sld [smem:[#allocation3 + %s208]]
      %s210 = ssub.s32 %s206, %s209
      %s211 = ssub.s32 %s30, %s51
      %s212 = sor.u32 %s210, %s211
      %p213 = scmp.eq.s32.totalorder %s212, 0
      %s215 = sadd.s32 %s214, 1
      %s216 = scalar_select %p213, %s214, %s215
      %p219 = pneg %p213
      %p220 = scmp.eq.s32.totalorder %s22, 19
      %p221 = por %p219, %p220
      %p222 = scmp.ne.s32.totalorder %s214, %s217
      %p223 = scmp.eq.s32.totalorder %s22, 0
      %p224 = por %p222, %p223
      %p225 = scmp.ne.s32.totalorder %s214, %s217
      %p226 = scmp.eq.s32.totalorder %s27, 19
      %p227 = por %p225, %p226
      %p228 = scmp.ne.s32.totalorder %s217, %s218
      %p229 = scmp.eq.s32.totalorder %s27, 0
      %p230 = por %p228, %p229
      %p231 = scmp.ne.s32.totalorder %s217, %s218
      %p232 = scmp.eq.s32.totalorder %s28, 19
      %p233 = por %p231, %p232
      %p235 = scmp.ne.s32.totalorder %s218, %s234
      %p236 = scmp.eq.s32.totalorder %s28, 0
      %p237 = por %p235, %p236
      %s238 = ssub.s32 %s30, %s51
      %p239 = scmp.eq.s32.totalorder %s238, 0
      %s241 = sadd.s32 %s240, 1
      %s242 = scalar_select %p239, %s240, %s241
      %p245 = pneg %p239
      %p246 = scmp.eq.s32.totalorder %s22, 19
      %p247 = por %p245, %p246
      %p248 = scmp.ne.s32.totalorder %s240, %s243
      %p249 = scmp.eq.s32.totalorder %s22, 0
      %p250 = por %p248, %p249
      %p251 = scmp.ne.s32.totalorder %s240, %s243
      %p252 = scmp.eq.s32.totalorder %s27, 19
      %p253 = por %p251, %p252
      %p254 = scmp.ne.s32.totalorder %s243, %s244
      %p255 = scmp.eq.s32.totalorder %s27, 0
      %p256 = por %p254, %p255
      %p257 = scmp.ne.s32.totalorder %s243, %s244
      %p258 = scmp.eq.s32.totalorder %s28, 19
      %p259 = por %p257, %p258
      %p261 = scmp.ne.s32.totalorder %s244, %s260
      %p262 = scmp.eq.s32.totalorder %s28, 0
      %p263 = por %p261, %p262
      %s264 = ssub.s32 %s29, %s55
      %s265 = ssub.s32 %s31, %s47
      %s266 = sor.u32 %s264, %s265
      %s267 = ssub.s32 %s32, %s43
      %s268 = sor.u32 %s266, %s267
      %s269 = ssub.s32 %s30, %s51
      %s270 = sor.u32 %s268, %s269
      %p271 = scmp.eq.s32.totalorder %s270, 0
      %s273 = sadd.s32 %s272, 1
      %s274 = scalar_select %p271, %s272, %s273
      %p277 = pneg %p271
      %p278 = scmp.eq.s32.totalorder %s22, 19
      %p279 = por %p277, %p278
      %p280 = scmp.ne.s32.totalorder %s272, %s275
      %p281 = scmp.eq.s32.totalorder %s22, 0
      %p282 = por %p280, %p281
      %p283 = scmp.ne.s32.totalorder %s272, %s275
      %p284 = scmp.eq.s32.totalorder %s27, 19
      %p285 = por %p283, %p284
      %p286 = scmp.ne.s32.totalorder %s275, %s276
      %p287 = scmp.eq.s32.totalorder %s27, 0
      %p288 = por %p286, %p287
      %p289 = scmp.ne.s32.totalorder %s275, %s276
      %p290 = scmp.eq.s32.totalorder %s28, 19
      %p291 = por %p289, %p290
      %p293 = scmp.ne.s32.totalorder %s276, %s292
      %p294 = scmp.eq.s32.totalorder %s28, 0
      %p295 = por %p293, %p294
      %p296 = scmp.le.s32.totalorder 1, %s22
      %p297 = scmp.lt.s32.totalorder %s22, 21
      %p298 = pnand %p296, %p297
      %p299 = pneg %p298
      // Predicated region
      $region9: #{upsample_causal3d_forward.1} parent=5 // pred_check
        _
      $region10: #{upsample_causal3d_forward.1} parent=5 // pred_check_branch
        %301 = sbr.rel (%p298) target = $region12
      $region11: #{upsample_causal3d_forward.1} parent=5 // pred_region
        %s302 = ssub.s32 %s22, 1
        // Predicated region
        $region13: #{upsample_causal3d_forward.1} parent=11 // pred_check
          %p303 = pneg %p256
        $region14: #{upsample_causal3d_forward.1} parent=11 // pred_check_branch
          %305 = sbr.rel (%p303) target = $region16
        $region15: #{upsample_causal3d_forward.1} parent=11 // pred_region
          %p306 = scmp.lt.s32.totalorder %s34, 0
          %s307 = scalar_select %p306, %s34, 0
          %s308 = scalar_lea.vmem %s6, %s307
        $region16: #{upsample_causal3d_forward.1} parent=11 // pred_fallthru
          _
      $region12: #{upsample_causal3d_forward.1} parent=5 // pred_fallthru
        _
      %p309 = scmp.lt.s32.totalorder %s22, 20
      // Predicated region
      $region17: #{upsample_causal3d_forward.1} parent=5 // pred_check
        %p310 = pneg %p309
      $region18: #{upsample_causal3d_forward.1} parent=5 // pred_check_branch
        %312 = sbr.rel (%p310) target = $region20
      $region19: #{upsample_causal3d_forward.1} parent=5 // pred_region
        // Predicated region
        $region21: #{upsample_causal3d_forward.1} parent=19 // pred_check
          %p313 = pneg %p76
        $region22: #{upsample_causal3d_forward.1} parent=19 // pred_check_branch
          %315 = sbr.rel (%p313) target = $region24
        $region23: #{upsample_causal3d_forward.1} parent=19 // pred_region
          %s316 = smul.u32 %s31, 128
          %s317 = sld [smem:[#allocation3 + %s316]]
          %s318 = smul.u32 4, %s32
          %s319 = ssub.s32 10, %s318
          %p320 = scmp.lt.s32.totalorder %s319, 4
          %s321 = scalar_select %p320, %s319, 4
          %s322 = smul.u32 64, %s321
          %s323 = smul.u32 %s322, 2
          %p324 = scmp.lt.s32.totalorder %s29, 1
          %s325 = scalar_select %p324, %s29, 1
          %p326 = scmp.lt.s32.totalorder %s317, 2
          %s327 = scalar_select %p326, %s317, 2
          %p328 = scmp.lt.s32.totalorder %s318, 9
          %s329 = scalar_select %p328, %s318, 9
          %s330 = smul.addr %s329, 2
          %s331 = smul.addr %s327, 20
          %s332 = sadd.s32 %s330, %s331
          %s333 = smul.addr %s325, 60
          %s334 = sadd.s32 %s332, %s333
          %s335 = smul.addr %s334, 4
          %s336 = scalar_lea.vmem %s1, %s335
          %s337 = smul.u32 %s31, 128
          %s338 = sld [smem:[#allocation3 + %s337]]
          %s339 = smul.u32 4, %s32
          %s340 = ssub.s32 10, %s339
          %p341 = scmp.lt.s32.totalorder %s340, 4
          %s342 = scalar_select %p341, %s340, 4
          %s343 = smul.u32 64, %s342
          %s344 = smul.u32 %s343, 2
        $region24: #{upsample_causal3d_forward.1} parent=19 // pred_fallthru
          _
        // Predicated region
        $region25: #{upsample_causal3d_forward.1} parent=19 // pred_check
          %p345 = pneg %p114
        $region26: #{upsample_causal3d_forward.1} parent=19 // pred_check_branch
          %347 = sbr.rel (%p345) target = $region28
        $region27: #{upsample_causal3d_forward.1} parent=19 // pred_region
          %s348 = smul.u32 %s31, 128
          %s349 = sld [smem:[#allocation3 + %s348]]
          %s350 = sadd.s32 %s32, 1
          %s351 = smul.u32 %s350, 2
          %s352 = smul.u32 2, %s351
          %p353 = scmp.lt.s32.totalorder %s29, 1
          %s354 = scalar_select %p353, %s29, 1
          %p355 = scmp.lt.s32.totalorder %s349, 2
          %s356 = scalar_select %p355, %s349, 2
          %p357 = scmp.lt.s32.totalorder %s352, 9
          %s358 = scalar_select %p357, %s352, 9
          %s359 = smul.addr %s358, 2
          %s360 = smul.addr %s356, 20
          %s361 = sadd.s32 %s359, %s360
          %s362 = smul.addr %s354, 60
          %s363 = sadd.s32 %s361, %s362
          %s364 = smul.addr %s363, 4
          %s365 = scalar_lea.vmem %s2, %s364
          %s366 = smul.u32 %s31, 128
          %s367 = sld [smem:[#allocation3 + %s366]]
          %s368 = sadd.s32 %s32, 1
          %s369 = smul.u32 %s368, 2
          %s370 = smul.u32 2, %s369
        $region28: #{upsample_causal3d_forward.1} parent=19 // pred_fallthru
          _
        // Predicated region
        $region29: #{upsample_causal3d_forward.1} parent=19 // pred_check
          %p371 = pneg %p150
        $region30: #{upsample_causal3d_forward.1} parent=19 // pred_check_branch
          %373 = sbr.rel (%p371) target = $region32
        $region31: #{upsample_causal3d_forward.1} parent=19 // pred_region
          %s374 = smul.u32 %s31, 128
          %s375 = sadd.s32 %s374, 1
          %s376 = sld [smem:[#allocation3 + %s375]]
          %s377 = smul.u32 4, %s32
          %s378 = ssub.s32 10, %s377
          %p379 = scmp.lt.s32.totalorder %s378, 4
          %s380 = scalar_select %p379, %s378, 4
          %s381 = smul.u32 64, %s380
          %s382 = smul.u32 %s381, 2
          %p383 = scmp.lt.s32.totalorder %s29, 1
          %s384 = scalar_select %p383, %s29, 1
          %p385 = scmp.lt.s32.totalorder %s376, 2
          %s386 = scalar_select %p385, %s376, 2
          %p387 = scmp.lt.s32.totalorder %s377, 9
          %s388 = scalar_select %p387, %s377, 9
          %s389 = smul.addr %s388, 2
          %s390 = smul.addr %s386, 20
          %s391 = sadd.s32 %s389, %s390
          %s392 = smul.addr %s384, 60
          %s393 = sadd.s32 %s391, %s392
          %s394 = smul.addr %s393, 4
          %s395 = scalar_lea.vmem %s3, %s394
          %s396 = smul.u32 %s31, 128
          %s397 = sadd.s32 %s396, 1
          %s398 = sld [smem:[#allocation3 + %s397]]
          %s399 = smul.u32 4, %s32
          %s400 = ssub.s32 10, %s399
          %p401 = scmp.lt.s32.totalorder %s400, 4
          %s402 = scalar_select %p401, %s400, 4
          %s403 = smul.u32 64, %s402
          %s404 = smul.u32 %s403, 2
        $region32: #{upsample_causal3d_forward.1} parent=19 // pred_fallthru
          _
        // Predicated region
        $region33: #{upsample_causal3d_forward.1} parent=19 // pred_check
          %p405 = pneg %p190
        $region34: #{upsample_causal3d_forward.1} parent=19 // pred_check_branch
          %407 = sbr.rel (%p405) target = $region36
        $region35: #{upsample_causal3d_forward.1} parent=19 // pred_region
          %s408 = smul.u32 %s31, 128
          %s409 = sadd.s32 %s408, 1
          %s410 = sld [smem:[#allocation3 + %s409]]
          %s411 = sadd.s32 %s32, 1
          %s412 = smul.u32 %s411, 2
          %s413 = smul.u32 2, %s412
          %p414 = scmp.lt.s32.totalorder %s29, 1
          %s415 = scalar_select %p414, %s29, 1
          %p416 = scmp.lt.s32.totalorder %s410, 2
          %s417 = scalar_select %p416, %s410, 2
          %p418 = scmp.lt.s32.totalorder %s413, 9
          %s419 = scalar_select %p418, %s413, 9
          %s420 = smul.addr %s419, 2
          %s421 = smul.addr %s417, 20
          %s422 = sadd.s32 %s420, %s421
          %s423 = smul.addr %s415, 60
          %s424 = sadd.s32 %s422, %s423
          %s425 = smul.addr %s424, 4
          %s426 = scalar_lea.vmem %s4, %s425
          %s427 = smul.u32 %s31, 128
          %s428 = sadd.s32 %s427, 1
          %s429 = sld [smem:[#allocation3 + %s428]]
          %s430 = sadd.s32 %s32, 1
          %s431 = smul.u32 %s430, 2
          %s432 = smul.u32 2, %s431
        $region36: #{upsample_causal3d_forward.1} parent=19 // pred_fallthru
          _
        // Predicated region
        $region37: #{upsample_causal3d_forward.1} parent=19 // pred_check
          %p433 = pneg %p224
        $region38: #{upsample_causal3d_forward.1} parent=19 // pred_check_branch
          %435 = sbr.rel (%p433) target = $region40
        $region39: #{upsample_causal3d_forward.1} parent=19 // pred_region
          %s436 = smul.u32 %s31, 128
          %s437 = sadd.s32 %s436, 2
          %s438 = sld [smem:[#allocation3 + %s437]]
          %s439 = smul.u32 32, %s438
          %p440 = scmp.lt.s32.totalorder %s439, 63
          %s441 = scalar_select %p440, %s439, 63
          %p442 = scmp.lt.s32.totalorder %s30, 0
          %s443 = scalar_select %p442, %s30, 0
          %s444 = smul.addr %s441, 4
          %s445 = sadd.s32 %s443, %s444
          %s446 = smul.addr %s445, 4
          %s447 = scalar_lea.vmem %s5, %s446
          %s448 = smul.u32 %s31, 128
          %s449 = sadd.s32 %s448, 2
          %s450 = sld [smem:[#allocation3 + %s449]]
          %s451 = smul.u32 32, %s450
        $region40: #{upsample_causal3d_forward.1} parent=19 // pred_fallthru
          _
      $region20: #{upsample_causal3d_forward.1} parent=5 // pred_fallthru
        _
      %p452 = scmp.le.s32.totalorder 1, %s22
      %p453 = scmp.lt.s32.totalorder %s22, 21
      %p454 = pnand %p452, %p453
      %p455 = pneg %p454
      // Predicated region
      $region41: #{upsample_causal3d_forward.1} parent=5 // pred_check
        _
      $region42: #{upsample_causal3d_forward.1} parent=5 // pred_check_branch
        %457 = sbr.rel (%p454) target = $region44
      $region43: #{upsample_causal3d_forward.1} parent=5 // pred_region
        %s458 = ssub.s32 %s22, 1
        %s459 = smul.u32 %s35, 128
        %s460 = sld [smem:[#allocation3 + %s459]]
        %s461 = smul.u32 4, %s36
        %s462 = ssub.s32 10, %s461
        %p463 = scmp.lt.s32.totalorder %s462, 4
        %s464 = scalar_select %p463, %s462, 4
        %s465 = smul.u32 64, %s464
        %s466 = smul.u32 %s465, 2
        %p467 = scmp.lt.s32.totalorder %s33, 1
        %s468 = scalar_select %p467, %s33, 1
        %p469 = scmp.lt.s32.totalorder %s460, 2
        %s470 = scalar_select %p469, %s460, 2
        %p471 = scmp.lt.s32.totalorder %s461, 9
        %s472 = scalar_select %p471, %s461, 9
        %s473 = smul.addr %s472, 2
        %s474 = smul.addr %s470, 20
        %s475 = sadd.s32 %s473, %s474
        %s476 = smul.addr %s468, 60
        %s477 = sadd.s32 %s475, %s476
        %s478 = smul.addr %s477, 4
        %s479 = scalar_lea.vmem %s1, %s478
        %p480 = pneg %p82
        %p481 = pneg %p79
        %s482 = smul.u32 %s35, 128
        %s483 = sld [smem:[#allocation3 + %s482]]
        %s484 = sadd.s32 %s36, 1
        %s485 = smul.u32 %s484, 2
        %s486 = smul.u32 2, %s485
        %p487 = scmp.lt.s32.totalorder %s33, 1
        %s488 = scalar_select %p487, %s33, 1
        %p489 = scmp.lt.s32.totalorder %s483, 2
        %s490 = scalar_select %p489, %s483, 2
        %p491 = scmp.lt.s32.totalorder %s486, 9
        %s492 = scalar_select %p491, %s486, 9
        %s493 = smul.addr %s492, 2
        %s494 = smul.addr %s490, 20
        %s495 = sadd.s32 %s493, %s494
        %s496 = smul.addr %s488, 60
        %s497 = sadd.s32 %s495, %s496
        %s498 = smul.addr %s497, 4
        %s499 = scalar_lea.vmem %s2, %s498
        %p500 = pneg %p120
        %p501 = pneg %p117
        %s502 = smul.u32 %s35, 128
        %s503 = sadd.s32 %s502, 1
        %s504 = sld [smem:[#allocation3 + %s503]]
        %s505 = smul.u32 4, %s36
        %s506 = ssub.s32 10, %s505
        %p507 = scmp.lt.s32.totalorder %s506, 4
        %s508 = scalar_select %p507, %s506, 4
        %s509 = smul.u32 64, %s508
        %s510 = smul.u32 %s509, 2
        %p511 = scmp.lt.s32.totalorder %s33, 1
        %s512 = scalar_select %p511, %s33, 1
        %p513 = scmp.lt.s32.totalorder %s504, 2
        %s514 = scalar_select %p513, %s504, 2
        %p515 = scmp.lt.s32.totalorder %s505, 9
        %s516 = scalar_select %p515, %s505, 9
        %s517 = smul.addr %s516, 2
        %s518 = smul.addr %s514, 20
        %s519 = sadd.s32 %s517, %s518
        %s520 = smul.addr %s512, 60
        %s521 = sadd.s32 %s519, %s520
        %s522 = smul.addr %s521, 4
        %s523 = scalar_lea.vmem %s3, %s522
        %p524 = pneg %p156
        %p525 = pneg %p153
        %s526 = smul.u32 %s35, 128
        %s527 = sadd.s32 %s526, 1
        %s528 = sld [smem:[#allocation3 + %s527]]
        %s529 = sadd.s32 %s36, 1
        %s530 = smul.u32 %s529, 2
        %s531 = smul.u32 2, %s530
        %p532 = scmp.lt.s32.totalorder %s33, 1
        %s533 = scalar_select %p532, %s33, 1
        %p534 = scmp.lt.s32.totalorder %s528, 2
        %s535 = scalar_select %p534, %s528, 2
        %p536 = scmp.lt.s32.totalorder %s531, 9
        %s537 = scalar_select %p536, %s531, 9
        %s538 = smul.addr %s537, 2
        %s539 = smul.addr %s535, 20
        %s540 = sadd.s32 %s538, %s539
        %s541 = smul.addr %s533, 60
        %s542 = sadd.s32 %s540, %s541
        %s543 = smul.addr %s542, 4
        %s544 = scalar_lea.vmem %s4, %s543
        %p545 = pneg %p196
        %p546 = pneg %p193
        %s547 = smul.u32 %s35, 128
        %s548 = sadd.s32 %s547, 2
        %s549 = sld [smem:[#allocation3 + %s548]]
        %s550 = smul.u32 32, %s549
        %p551 = scmp.lt.s32.totalorder %s550, 63
        %s552 = scalar_select %p551, %s550, 63
        %p553 = scmp.lt.s32.totalorder %s34, 0
        %s554 = scalar_select %p553, %s34, 0
        %s555 = smul.addr %s552, 4
        %s556 = sadd.s32 %s554, %s555
        %s557 = smul.addr %s556, 4
        %s558 = scalar_lea.vmem %s5, %s557
        %p559 = pneg %p230
        %p560 = pneg %p227
        %p561 = scmp.lt.s32.totalorder %s34, 0
        %s562 = scalar_select %p561, %s34, 0
        %s563 = scalar_lea.vmem %s6, %s562
        %p564 = pneg %p256
        %p565 = pneg %p253
        %p566 = pneg %p288
        %p567 = pneg %p285
        %s568 = sand.u32 %s275, 1
        %s569 = scalar_lea.sflag [#allocation5], %s568
        %s570 = sand.u32 %s275, 1
        %s571 = smul.addr %s570, 64
        %s572 = scalar_lea.vmem [#allocation4], %s571
        %s573 = smul.u32 %s35, 128
        %s574 = sld [smem:[#allocation3 + %s573]]
        %s575 = smul.u32 4, %s36
        %s576 = ssub.s32 10, %s575
        %p577 = scmp.lt.s32.totalorder %s576, 4
        %s578 = scalar_select %p577, %s576, 4
        %s579 = smul.u32 64, %s578
        %s580 = smul.u32 %s579, 2
        %p581 = scmp.lt.s32.totalorder %s33, 1
        %s582 = scalar_select %p581, %s33, 1
        %p583 = scmp.lt.s32.totalorder %s574, 2
        %s584 = scalar_select %p583, %s574, 2
        %p585 = scmp.lt.s32.totalorder %s575, 9
        %s586 = scalar_select %p585, %s575, 9
        %s587 = smul.addr %s586, 2
        %s588 = smul.addr %s584, 20
        %s589 = sadd.s32 %s587, %s588
        %s590 = smul.addr %s582, 60
        %s591 = sadd.s32 %s589, %s590
        %s592 = smul.addr %s591, 4
        %s593 = scalar_lea.vmem %s1, %s592
        %s594 = smul.u32 %s35, 128
        %s595 = sld [smem:[#allocation3 + %s594]]
        %s596 = smul.u32 4, %s36
        %s597 = ssub.s32 10, %s596
        %p598 = scmp.lt.s32.totalorder %s597, 4
        %s599 = scalar_select %p598, %s597, 4
        %s600 = smul.u32 64, %s599
        %s601 = smul.u32 %s600, 2
        %s602 = smul.u32 %s35, 128
        %s603 = sld [smem:[#allocation3 + %s602]]
        %s604 = sadd.s32 %s36, 1
        %s605 = smul.u32 %s604, 2
        %s606 = smul.u32 2, %s605
        %p607 = scmp.lt.s32.totalorder %s33, 1
        %s608 = scalar_select %p607, %s33, 1
        %p609 = scmp.lt.s32.totalorder %s603, 2
        %s610 = scalar_select %p609, %s603, 2
        %p611 = scmp.lt.s32.totalorder %s606, 9
        %s612 = scalar_select %p611, %s606, 9
        %s613 = smul.addr %s612, 2
        %s614 = smul.addr %s610, 20
        %s615 = sadd.s32 %s613, %s614
        %s616 = smul.addr %s608, 60
        %s617 = sadd.s32 %s615, %s616
        %s618 = smul.addr %s617, 4
        %s619 = scalar_lea.vmem %s2, %s618
        %s620 = smul.u32 %s35, 128
        %s621 = sld [smem:[#allocation3 + %s620]]
        %s622 = sadd.s32 %s36, 1
        %s623 = smul.u32 %s622, 2
        %s624 = smul.u32 2, %s623
        %s625 = smul.u32 %s35, 128
        %s626 = sadd.s32 %s625, 1
        %s627 = sld [smem:[#allocation3 + %s626]]
        %s628 = smul.u32 4, %s36
        %s629 = ssub.s32 10, %s628
        %p630 = scmp.lt.s32.totalorder %s629, 4
        %s631 = scalar_select %p630, %s629, 4
        %s632 = smul.u32 64, %s631
        %s633 = smul.u32 %s632, 2
        %p634 = scmp.lt.s32.totalorder %s33, 1
        %s635 = scalar_select %p634, %s33, 1
        %p636 = scmp.lt.s32.totalorder %s627, 2
        %s637 = scalar_select %p636, %s627, 2
        %p638 = scmp.lt.s32.totalorder %s628, 9
        %s639 = scalar_select %p638, %s628, 9
        %s640 = smul.addr %s639, 2
        %s641 = smul.addr %s637, 20
        %s642 = sadd.s32 %s640, %s641
        %s643 = smul.addr %s635, 60
        %s644 = sadd.s32 %s642, %s643
        %s645 = smul.addr %s644, 4
        %s646 = scalar_lea.vmem %s3, %s645
        %s647 = smul.u32 %s35, 128
        %s648 = sadd.s32 %s647, 1
        %s649 = sld [smem:[#allocation3 + %s648]]
        %s650 = smul.u32 4, %s36
        %s651 = ssub.s32 10, %s650
        %p652 = scmp.lt.s32.totalorder %s651, 4
        %s653 = scalar_select %p652, %s651, 4
        %s654 = smul.u32 64, %s653
        %s655 = smul.u32 %s654, 2
        %s656 = smul.u32 %s35, 128
        %s657 = sadd.s32 %s656, 1
        %s658 = sld [smem:[#allocation3 + %s657]]
        %s659 = sadd.s32 %s36, 1
        %s660 = smul.u32 %s659, 2
        %s661 = smul.u32 2, %s660
        %p662 = scmp.lt.s32.totalorder %s33, 1
        %s663 = scalar_select %p662, %s33, 1
        %p664 = scmp.lt.s32.totalorder %s658, 2
        %s665 = scalar_select %p664, %s658, 2
        %p666 = scmp.lt.s32.totalorder %s661, 9
        %s667 = scalar_select %p666, %s661, 9
        %s668 = smul.addr %s667, 2
        %s669 = smul.addr %s665, 20
        %s670 = sadd.s32 %s668, %s669
        %s671 = smul.addr %s663, 60
        %s672 = sadd.s32 %s670, %s671
        %s673 = smul.addr %s672, 4
        %s674 = scalar_lea.vmem %s4, %s673
        %s675 = smul.u32 %s35, 128
        %s676 = sadd.s32 %s675, 1
        %s677 = sld [smem:[#allocation3 + %s676]]
        %s678 = sadd.s32 %s36, 1
        %s679 = smul.u32 %s678, 2
        %s680 = smul.u32 2, %s679
        %s681 = smul.u32 %s35, 128
        %s682 = sadd.s32 %s681, 2
        %s683 = sld [smem:[#allocation3 + %s682]]
        %s684 = smul.u32 32, %s683
        %p685 = scmp.lt.s32.totalorder %s684, 63
        %s686 = scalar_select %p685, %s684, 63
        %p687 = scmp.lt.s32.totalorder %s34, 0
        %s688 = scalar_select %p687, %s34, 0
        %s689 = smul.addr %s686, 4
        %s690 = sadd.s32 %s688, %s689
        %s691 = smul.addr %s690, 4
        %s692 = scalar_lea.vmem %s5, %s691
        %s693 = smul.u32 %s35, 128
        %s694 = sadd.s32 %s693, 2
        %s695 = sld [smem:[#allocation3 + %s694]]
        %s696 = smul.u32 32, %s695
        %p697 = scmp.lt.s32.totalorder %s34, 0
        %s698 = scalar_select %p697, %s34, 0
        %s699 = scalar_lea.vmem %s6, %s698
        %s700 = smul.u32 8, %s36
        %v702 = vld [vmem:[%s699] sm:$0x1]
        %v703 = vld [vmem:[%s593] sm:$0xf]
        %v704 = vld [vmem:[%s593 + $0x4] sm:$0x1]
        %v705 = vld [vmem:[%s593 + $0x8] sm:$0xf]
        %v706 = vld [vmem:[%s593 + $0xc] sm:$0x1]
        %v707 = vld [vmem:[%s593 + $0x10] sm:$0xf]
        %v708 = vld [vmem:[%s593 + $0x14] sm:$0x1]
        %v709 = vld [vmem:[%s593 + $0x18] sm:$0xf]
        %v710 = vld [vmem:[%s593 + $0x1c] sm:$0x1]
        %v711 = vld [vmem:[%s619] sm:$0xf]
        %v712 = vld [vmem:[%s619 + $0x4] sm:$0x1]
        %v713 = vld [vmem:[%s619 + $0x8] sm:$0xf]
        %v714 = vld [vmem:[%s619 + $0xc] sm:$0x1]
        %v715 = vld [vmem:[%s646] sm:$0xf]
        %v716 = vld [vmem:[%s646 + $0x4] sm:$0x1]
        %v717 = vld [vmem:[%s646 + $0x8] sm:$0xf]
        %v718 = vld [vmem:[%s646 + $0xc] sm:$0x1]
        %v719 = vld [vmem:[%s646 + $0x10] sm:$0xf]
        %v720 = vld [vmem:[%s646 + $0x14] sm:$0x1]
        %v721 = vld [vmem:[%s646 + $0x18] sm:$0xf]
        %v722 = vld [vmem:[%s646 + $0x1c] sm:$0x1]
        %v723 = vld [vmem:[%s674] sm:$0xf]
        %v724 = vld [vmem:[%s674 + $0x4] sm:$0x1]
        %v725 = vld [vmem:[%s674 + $0x8] sm:$0xf]
        %v726 = vld [vmem:[%s674 + $0xc] sm:$0x1]
        %v727 = vld [vmem:[%s692] sm:$0xf]
        %v728 = vld [vmem:[%s692 + $0x4] sm:$0xf]
        %v729 = vld [vmem:[%s692 + $0x8] sm:$0xf]
        %v730 = vld [vmem:[%s692 + $0xc] sm:$0xf]
        %vm731 = vsmask.f32 3328
        %vm732 = vsmask.f32 7440
        %vm733 = vmor %vm731, %vm732
        %v735 = vshrl.u32 %v703, 16
        %v737 = vrot.slane %v735, 4
        %v738 = vshll.u32 %v703, 16
        %v740 = vrot.slane %v738, 5
        %v741 = vor.u32 %v737, %v740
        %v742 = vrot.slane %v741, 4
        %v744 = vshll.u32 %v704, 16
        %v746 = vrot.slane %v744, 5
        %v747 = vsel %vm733, %v742, %v746
        %v749 = vshrl.u32 %v705, 16
        %v751 = vrot.slane %v749, 4
        %v752 = vshll.u32 %v705, 16
        %v754 = vrot.slane %v752, 5
        %v755 = vor.u32 %v751, %v754
        %v756 = vrot.slane %v755, 4
        %v758 = vshll.u32 %v706, 16
        %v760 = vrot.slane %v758, 5
        %v761 = vsel %vm733, %v756, %v760
        %v763 = vshrl.u32 %v707, 16
        %v765 = vrot.slane %v763, 4
        %v766 = vshll.u32 %v707, 16
        %v768 = vrot.slane %v766, 5
        %v769 = vor.u32 %v765, %v768
        %v770 = vrot.slane %v769, 4
        %v772 = vshll.u32 %v708, 16
        %v774 = vrot.slane %v772, 5
        %v775 = vsel %vm733, %v770, %v774
        %v777 = vshrl.u32 %v709, 16
        %v779 = vrot.slane %v777, 4
        %v780 = vshll.u32 %v709, 16
        %v782 = vrot.slane %v780, 5
        %v783 = vor.u32 %v779, %v782
        %v784 = vrot.slane %v783, 4
        %v786 = vshll.u32 %v710, 16
        %v788 = vrot.slane %v786, 5
        %v789 = vsel %vm733, %v784, %v788
        %s790 = scalar_lea.vmem %s692, 16
        %v791 = vld [vmem:[%s790] sm:$0xf]
        %v792 = vld [vmem:[%s790 + $0x4] sm:$0xf]
        %v793 = vld [vmem:[%s790 + $0x8] sm:$0xf]
        %v794 = vld [vmem:[%s790 + $0xc] sm:$0xf]
        %v795 = vunpack.c.l.b16 %v747
        %v796 = vunpack.c.l.b16 %v761
        %v797 = vunpack.c.l.b16 %v775
        %v798 = vunpack.c.l.b16 %v789
        %v799 = vpack.c.b16 %v796, %v795
        %v800 = vpack.c.b16 %v798, %v797
        %v805 = vunpack.c.l.b16 %v791
        %v806 = vunpack.c.l.b16 %v792
        %v807 = vunpack.c.l.b16 %v793
        %v808 = vunpack.c.l.b16 %v794
        %v809 = vpack.c.b16 %v806, %v805
        %v810 = vpack.c.b16 %v808, %v807
        %vm813 = vcmask 261120
        %v815 = vsel %vm813, %v799, 0
        %v818 = vsel %vm813, %v800, 0
        %820 = vmatprep.subr.bf16.mxu0 0
        %821 = vmatpush1.bf16.msra.mxu0 %v809
        %822 = vmatprep.subr.bf16.mxu0 0
        %823 = vmatpush1.bf16.msra.mxu0 %v810
        %824 = vmatprep.subr.bf16.mxu0 0
        %825 = vmatpush1.bf16.msra.mxu0 0
        %826 = vmatprep.subr.bf16.mxu0 0
        %827 = vmatpush1.bf16.msra.mxu0 0
        %828 = vmatprep.subr.bf16.mxu0 0
        %829 = vmatpush1.bf16.msra.mxu0 0
        %830 = vmatprep.subr.bf16.mxu0 0
        %831 = vmatpush1.bf16.msra.mxu0 0
        %832 = vmatprep.subr.bf16.mxu0 0
        %833 = vmatpush1.bf16.msra.mxu0 0
        %834 = vmatprep.subr.bf16.mxu0 0
        %835 = vmatpush1.bf16.msra.mxu0 0
        %836 = vmatprep.subr.bf16.mxu0 0
        %837 = vmatpush1.bf16.msra.mxu0 0
        %838 = vmatprep.subr.bf16.mxu0 0
        %839 = vmatpush1.bf16.msra.mxu0 0
        %840 = vmatprep.subr.bf16.mxu0 0
        %841 = vmatpush1.bf16.msra.mxu0 0
        %842 = vmatprep.subr.bf16.mxu0 0
        %843 = vmatpush1.bf16.msra.mxu0 0
        %844 = vmatprep.subr.bf16.mxu0 0
        %845 = vmatpush1.bf16.msra.mxu0 0
        %846 = vmatprep.subr.bf16.mxu0 0
        %847 = vmatpush1.bf16.msra.mxu0 0
        %848 = vmatprep.subr.bf16.mxu0 0
        %849 = vmatpush1.bf16.msra.mxu0 0
        %850 = vmatprep.subr.bf16.mxu0 0
        %851 = vmatpush1.bf16.msra.mxu0 0
        %852 = vmatprep.mubr.bf16.mxu0 0
        %853 = vmatmul.mubr.bf16.gmra.mrb[0].mxu0 %v815
        %v854 = vpop.f32.mrb[0].mxu0
        %v855 = vadd.f32 0.0, %v854
        %v856 = vpop.f32.mrb[0].mxu0
        %v857 = vpop.f32.mrb[0].mxu0
        %v858 = vadd.f32 0.0, %v857
        %v859 = vpop.f32.mrb[0].mxu0
        %860 = vmatprep.mubr.bf16.mxu0 0
        %861 = vmatmul.mubr.bf16.gmra.mrb[0].mxu0 %v818
        %v862 = vpop.f32.mrb[0].mxu0
        %v863 = vadd.f32 0.0, %v862
        %v864 = vpop.f32.mrb[0].mxu0
        %v865 = vpop.f32.mrb[0].mxu0
        %v866 = vadd.f32 0.0, %v865
        %v867 = vpop.f32.mrb[0].mxu0
        %868 = vdwg.mxu0
        %v873 = vunpack.c.l.b16 %v703
        %v874 = vunpack.c.l.b16 %v705
        %v875 = vunpack.c.l.b16 %v707
        %v876 = vunpack.c.l.b16 %v709
        %v877 = vpack.c.b16 %v874, %v873
        %v878 = vpack.c.b16 %v876, %v875
        %v883 = vunpack.c.l.b16 %v727
        %v884 = vunpack.c.l.b16 %v728
        %v885 = vunpack.c.l.b16 %v729
        %v886 = vunpack.c.l.b16 %v730
        %v887 = vpack.c.b16 %v884, %v883
        %v888 = vpack.c.b16 %v886, %v885
        %v892 = vsel %vm813, %v877, 0
        %v895 = vsel %vm813, %v878, 0
        %897 = vmatprep.subr.bf16.mxu0 0
        %898 = vmatpush1.bf16.msra.mxu0 %v887
        %899 = vmatprep.subr.bf16.mxu0 0
        %900 = vmatpush1.bf16.msra.mxu0 %v888
        %901 = vmatprep.subr.bf16.mxu0 0
        %902 = vmatpush1.bf16.msra.mxu0 0
        %903 = vmatprep.subr.bf16.mxu0 0
        %904 = vmatpush1.bf16.msra.mxu0 0
        %905 = vmatprep.subr.bf16.mxu0 0
        %906 = vmatpush1.bf16.msra.mxu0 0
        %907 = vmatprep.subr.bf16.mxu0 0
        %908 = vmatpush1.bf16.msra.mxu0 0
        %909 = vmatprep.subr.bf16.mxu0 0
        %910 = vmatpush1.bf16.msra.mxu0 0
        %911 = vmatprep.subr.bf16.mxu0 0
        %912 = vmatpush1.bf16.msra.mxu0 0
        %913 = vmatprep.subr.bf16.mxu0 0
        %914 = vmatpush1.bf16.msra.mxu0 0
        %915 = vmatprep.subr.bf16.mxu0 0
        %916 = vmatpush1.bf16.msra.mxu0 0
        %917 = vmatprep.subr.bf16.mxu0 0
        %918 = vmatpush1.bf16.msra.mxu0 0
        %919 = vmatprep.subr.bf16.mxu0 0
        %920 = vmatpush1.bf16.msra.mxu0 0
        %921 = vmatprep.subr.bf16.mxu0 0
        %922 = vmatpush1.bf16.msra.mxu0 0
        %923 = vmatprep.subr.bf16.mxu0 0
        %924 = vmatpush1.bf16.msra.mxu0 0
        %925 = vmatprep.subr.bf16.mxu0 0
        %926 = vmatpush1.bf16.msra.mxu0 0
        %927 = vmatprep.subr.bf16.mxu0 0
        %928 = vmatpush1.bf16.msra.mxu0 0
        %929 = vmatprep.mubr.bf16.mxu0 0
        %930 = vmatmul.mubr.bf16.gmra.mrb[0].mxu0 %v892
        %v931 = vpop.f32.mrb[0].mxu0
        %v932 = vadd.f32 %v855, %v931
        %v933 = vpop.f32.mrb[0].mxu0
        %v934 = vpop.f32.mrb[0].mxu0
        %v935 = vadd.f32 %v858, %v934
        %v936 = vpop.f32.mrb[0].mxu0
        %937 = vmatprep.mubr.bf16.mxu0 0
        %938 = vmatmul.mubr.bf16.gmra.mrb[0].mxu0 %v895
        %v939 = vpop.f32.mrb[0].mxu0
        %v940 = vadd.f32 %v863, %v939
        %v941 = vpop.f32.mrb[0].mxu0
        %v942 = vpop.f32.mrb[0].mxu0
        %v943 = vadd.f32 %v866, %v942
        %v944 = vpop.f32.mrb[0].mxu0
        %945 = vdwg.mxu0
        %s946 = scalar_lea.vmem %s692, 64
        %v947 = vld [vmem:[%s946] sm:$0xf]
        %v948 = vld [vmem:[%s946 + $0x4] sm:$0xf]
        %v949 = vld [vmem:[%s946 + $0x8] sm:$0xf]
        %v950 = vld [vmem:[%s946 + $0xc] sm:$0xf]
        %vm955 = vcmask 1042432
        %vm956 = vcmask 1046532
        %vm957 = vmor %vm955, %vm956
        %v958 = vrot.slane %v703, 5
        %v959 = vrot.slane %v958, 4
        %v960 = vrot.slane %v704, 5
        %v961 = vsel %vm957, %v959, %v960
        %v962 = vrot.slane %v705, 5
        %v963 = vrot.slane %v962, 4
        %v964 = vrot.slane %v706, 5
        %v965 = vsel %vm957, %v963, %v964
        %v966 = vrot.slane %v707, 5
        %v967 = vrot.slane %v966, 4
        %v968 = vrot.slane %v708, 5
        %v969 = vsel %vm957, %v967, %v968
        %v970 = vrot.slane %v709, 5
        %v971 = vrot.slane %v970, 4
        %v972 = vrot.slane %v710, 5
        %v973 = vsel %vm957, %v971, %v972
        %s974 = scalar_lea.vmem %s692, 80
        %v975 = vld [vmem:[%s974] sm:$0xf]
        %v976 = vld [vmem:[%s974 + $0x4] sm:$0xf]
        %v977 = vld [vmem:[%s974 + $0x8] sm:$0xf]
        %v978 = vld [vmem:[%s974 + $0xc] sm:$0xf]
        %v979 = vunpack.c.l.b16 %v961
        %v980 = vunpack.c.l.b16 %v965
        %v981 = vunpack.c.l.b16 %v969
        %v982 = vunpack.c.l.b16 %v973
        %v983 = vpack.c.b16 %v980, %v979
        %v984 = vpack.c.b16 %v982, %v981
        %v989 = vunpack.c.l.b16 %v975
        %v990 = vunpack.c.l.b16 %v976
        %v991 = vunpack.c.l.b16 %v977
        %v992 = vunpack.c.l.b16 %v978
        %v993 = vpack.c.b16 %v990, %v989
        %v994 = vpack.c.b16 %v992, %v991
        %v998 = vsel %vm813, %v983, 0
        %v1001 = vsel %vm813, %v984, 0
        %1003 = vmatprep.subr.bf16.mxu0 0
        %1004 = vmatpush1.bf16.msra.mxu0 %v993
        %1005 = vmatprep.subr.bf16.mxu0 0
        %1006 = vmatpush1.bf16.msra.mxu0 %v994
        %1007 = vmatprep.subr.bf16.mxu0 0
        %1008 = vmatpush1.bf16.msra.mxu0 0
        %1009 = vmatprep.subr.bf16.mxu0 0
        %1010 = vmatpush1.bf16.msra.mxu0 0
        %1011 = vmatprep.subr.bf16.mxu0 0
        %1012 = vmatpush1.bf16.msra.mxu0 0
        %1013 = vmatprep.subr.bf16.mxu0 0
        %1014 = vmatpush1.bf16.msra.mxu0 0
        %1015 = vmatprep.subr.bf16.mxu0 0
        %1016 = vmatpush1.bf16.msra.mxu0 0
        %1017 = vmatprep.subr.bf16.mxu0 0
        %1018 = vmatpush1.bf16.msra.mxu0 0
        %1019 = vmatprep.subr.bf16.mxu0 0
        %1020 = vmatpush1.bf16.msra.mxu0 0
        %1021 = vmatprep.subr.bf16.mxu0 0
        %1022 = vmatpush1.bf16.msra.mxu0 0
        %1023 = vmatprep.subr.bf16.mxu0 0
        %1024 = vmatpush1.bf16.msra.mxu0 0
        %1025 = vmatprep.subr.bf16.mxu0 0
        %1026 = vmatpush1.bf16.msra.mxu0 0
        %1027 = vmatprep.subr.bf16.mxu0 0
        %1028 = vmatpush1.bf16.msra.mxu0 0
        %1029 = vmatprep.subr.bf16.mxu0 0
        %1030 = vmatpush1.bf16.msra.mxu0 0
        %1031 = vmatprep.subr.bf16.mxu0 0
        %1032 = vmatpush1.bf16.msra.mxu0 0
        %1033 = vmatprep.subr.bf16.mxu0 0
        %1034 = vmatpush1.bf16.msra.mxu0 0
        %1035 = vmatprep.mubr.bf16.mxu0 0
        %1036 = vmatmul.mubr.bf16.gmra.mrb[0].mxu0 %v998
        %v1037 = vpop.f32.mrb[0].mxu0
        %v1038 = vadd.f32 0.0, %v1037
        %v1039 = vpop.f32.mrb[0].mxu0
        %v1040 = vpop.f32.mrb[0].mxu0
        %v1041 = vadd.f32 0.0, %v1040
        %v1042 = vpop.f32.mrb[0].mxu0
        %1043 = vmatprep.mubr.bf16.mxu0 0
        %1044 = vmatmul.mubr.bf16.gmra.mrb[0].mxu0 %v1001
        %v1045 = vpop.f32.mrb[0].mxu0
        %v1046 = vadd.f32 0.0, %v1045
        %v1047 = vpop.f32.mrb[0].mxu0
        %v1048 = vpop.f32.mrb[0].mxu0
        %v1049 = vadd.f32 0.0, %v1048
        %v1050 = vpop.f32.mrb[0].mxu0
        %1051 = vdwg.mxu0
        %v1056 = vunpack.c.l.b16 %v947
        %v1057 = vunpack.c.l.b16 %v948
        %v1058 = vunpack.c.l.b16 %v949
        %v1059 = vunpack.c.l.b16 %v950
        %v1060 = vpack.c.b16 %v1057, %v1056
        %v1061 = vpack.c.b16 %v1059, %v1058
        %1064 = vmatprep.subr.bf16.mxu0 0
        %1065 = vmatpush1.bf16.msra.mxu0 %v1060
        %1066 = vmatprep.subr.bf16.mxu0 0
        %1067 = vmatpush1.bf16.msra.mxu0 %v1061
        %1068 = vmatprep.subr.bf16.mxu0 0
        %1069 = vmatpush1.bf16.msra.mxu0 0
        %1070 = vmatprep.subr.bf16.mxu0 0
        %1071 = vmatpush1.bf16.msra.mxu0 0
        %1072 = vmatprep.subr.bf16.mxu0 0
        %1073 = vmatpush1.bf16.msra.mxu0 0
        %1074 = vmatprep.subr.bf16.mxu0 0
        %1075 = vmatpush1.bf16.msra.mxu0 0
        %1076 = vmatprep.subr.bf16.mxu0 0
        %1077 = vmatpush1.bf16.msra.mxu0 0
        %1078 = vmatprep.subr.bf16.mxu0 0
        %1079 = vmatpush1.bf16.msra.mxu0 0
        %1080 = vmatprep.subr.bf16.mxu0 0
        %1081 = vmatpush1.bf16.msra.mxu0 0
        %1082 = vmatprep.subr.bf16.mxu0 0
        %1083 = vmatpush1.bf16.msra.mxu0 0
        %1084 = vmatprep.subr.bf16.mxu0 0
        %1085 = vmatpush1.bf16.msra.mxu0 0
        %1086 = vmatprep.subr.bf16.mxu0 0
        %1087 = vmatpush1.bf16.msra.mxu0 0
        %1088 = vmatprep.subr.bf16.mxu0 0
        %1089 = vmatpush1.bf16.msra.mxu0 0
        %1090 = vmatprep.subr.bf16.mxu0 0
        %1091 = vmatpush1.bf16.msra.mxu0 0
        %1092 = vmatprep.subr.bf16.mxu0 0
        %1093 = vmatpush1.bf16.msra.mxu0 0
        %1094 = vmatprep.subr.bf16.mxu0 0
        %1095 = vmatpush1.bf16.msra.mxu0 0
        %1096 = vmatprep.mubr.bf16.mxu0 0
        %1097 = vmatmul.mubr.bf16.gmra.mrb[0].mxu0 %v815
        %v1098 = vpop.f32.mrb[0].mxu0
        %v1099 = vadd.f32 %v1038, %v1098
        %v1100 = vpop.f32.mrb[0].mxu0
        %v1101 = vpop.f32.mrb[0].mxu0
        %v1102 = vadd.f32 %v1041, %v1101
        %v1103 = vpop.f32.mrb[0].mxu0
        %1104 = vmatprep.mubr.bf16.mxu0 0
        %1105 = vmatmul.mubr.bf16.gmra.mrb[0].mxu0 %v818
        %v1106 = vpop.f32.mrb[0].mxu0
        %v1107 = vadd.f32 %v1046, %v1106
        %v1108 = vpop.f32.mrb[0].mxu0
        %v1109 = vpop.f32.mrb[0].mxu0
        %v1110 = vadd.f32 %v1049, %v1109
        %v1111 = vpop.f32.mrb[0].mxu0
        %1112 = vdwg.mxu0
        %s1113 = scalar_lea.vmem %s692, 32
        %v1114 = vld [vmem:[%s1113] sm:$0xf]
        %v1115 = vld [vmem:[%s1113 + $0x4] sm:$0xf]
        %v1116 = vld [vmem:[%s1113 + $0x8] sm:$0xf]
        %v1117 = vld [vmem:[%s1113 + $0xc] sm:$0xf]
        %v1119 = vunpack.c.l.b16 %v711
        %v1120 = vpack.c.b16 %v875, %v874
        %v1121 = vpack.c.b16 %v1119, %v876
        %v1126 = vunpack.c.l.b16 %v1114
        %v1127 = vunpack.c.l.b16 %v1115
        %v1128 = vunpack.c.l.b16 %v1116
        %v1129 = vunpack.c.l.b16 %v1117
        %v1130 = vpack.c.b16 %v1127, %v1126
        %v1131 = vpack.c.b16 %v1129, %v1128
        %v1135 = vsel %vm813, %v1120, 0
        %v1138 = vsel %vm813, %v1121, 0
        %1140 = vmatprep.subr.bf16.mxu0 0
        %1141 = vmatpush1.bf16.msra.mxu0 %v1130
        %1142 = vmatprep.subr.bf16.mxu0 0
        %1143 = vmatpush1.bf16.msra.mxu0 %v1131
        %1144 = vmatprep.subr.bf16.mxu0 0
        %1145 = vmatpush1.bf16.msra.mxu0 0
        %1146 = vmatprep.subr.bf16.mxu0 0
        %1147 = vmatpush1.bf16.msra.mxu0 0
        %1148 = vmatprep.subr.bf16.mxu0 0
        %1149 = vmatpush1.bf16.msra.mxu0 0
        %1150 = vmatprep.subr.bf16.mxu0 0
        %1151 = vmatpush1.bf16.msra.mxu0 0
        %1152 = vmatprep.subr.bf16.mxu0 0
        %1153 = vmatpush1.bf16.msra.mxu0 0
        %1154 = vmatprep.subr.bf16.mxu0 0
        %1155 = vmatpush1.bf16.msra.mxu0 0
        %1156 = vmatprep.subr.bf16.mxu0 0
        %1157 = vmatpush1.bf16.msra.mxu0 0
        %1158 = vmatprep.subr.bf16.mxu0 0
        %1159 = vmatpush1.bf16.msra.mxu0 0
        %1160 = vmatprep.subr.bf16.mxu0 0
        %1161 = vmatpush1.bf16.msra.mxu0 0
        %1162 = vmatprep.subr.bf16.mxu0 0
        %1163 = vmatpush1.bf16.msra.mxu0 0
        %1164 = vmatprep.subr.bf16.mxu0 0
        %1165 = vmatpush1.bf16.msra.mxu0 0
        %1166 = vmatprep.subr.bf16.mxu0 0
        %1167 = vmatpush1.bf16.msra.mxu0 0
        %1168 = vmatprep.subr.bf16.mxu0 0
        %1169 = vmatpush1.bf16.msra.mxu0 0
        %1170 = vmatprep.subr.bf16.mxu0 0
        %1171 = vmatpush1.bf16.msra.mxu0 0
        %1172 = vmatprep.mubr.bf16.mxu0 0
        %1173 = vmatmul.mubr.bf16.gmra.mrb[0].mxu0 %v1135
        %v1174 = vpop.f32.mrb[0].mxu0
        %v1175 = vadd.f32 0.0, %v1174
        %v1176 = vpop.f32.mrb[0].mxu0
        %v1177 = vpop.f32.mrb[0].mxu0
        %v1178 = vadd.f32 0.0, %v1177
        %v1179 = vpop.f32.mrb[0].mxu0
        %1180 = vmatprep.mubr.bf16.mxu0 0
        %1181 = vmatmul.mubr.bf16.gmra.mrb[0].mxu0 %v1138
        %v1182 = vpop.f32.mrb[0].mxu0
        %v1183 = vadd.f32 0.0, %v1182
        %v1184 = vpop.f32.mrb[0].mxu0
        %v1185 = vpop.f32.mrb[0].mxu0
        %v1186 = vadd.f32 0.0, %v1185
        %v1187 = vpop.f32.mrb[0].mxu0
        %1188 = vdwg.mxu0
        %v1189 = vadd.f32 %v932, %v1175
        %v1190 = vadd.f32 %v935, %v1178
        %v1191 = vadd.f32 %v940, %v1183
        %v1192 = vadd.f32 %v943, %v1186
        %s1193 = scalar_lea.vmem %s692, 128
        %v1194 = vld [vmem:[%s1193] sm:$0xf]
        %v1195 = vld [vmem:[%s1193 + $0x4] sm:$0xf]
        %v1196 = vld [vmem:[%s1193 + $0x8] sm:$0xf]
        %v1197 = vld [vmem:[%s1193 + $0xc] sm:$0xf]
        %v1199 = vshrl.u32 %v711, 16
        %v1201 = vrot.slane %v1199, 4
        %v1202 = vshll.u32 %v711, 16
        %v1204 = vrot.slane %v1202, 5
        %v1205 = vor.u32 %v1201, %v1204
        %v1206 = vrot.slane %v1205, 4
        %v1208 = vshll.u32 %v712, 16
        %v1210 = vrot.slane %v1208, 5
        %v1211 = vsel %vm733, %v1206, %v1210
        %s1212 = scalar_lea.vmem %s692, 48
        %v1213 = vld [vmem:[%s1212] sm:$0xf]
        %v1214 = vld [vmem:[%s1212 + $0x4] sm:$0xf]
        %v1215 = vld [vmem:[%s1212 + $0x8] sm:$0xf]
        %v1216 = vld [vmem:[%s1212 + $0xc] sm:$0xf]
        %v1217 = vunpack.c.l.b16 %v1211
        %v1218 = vpack.c.b16 %v797, %v796
        %v1219 = vpack.c.b16 %v1217, %v798
        %v1224 = vunpack.c.l.b16 %v1213
        %v1225 = vunpack.c.l.b16 %v1214
        %v1226 = vunpack.c.l.b16 %v1215
        %v1227 = vunpack.c.l.b16 %v1216
        %v1228 = vpack.c.b16 %v1225, %v1224
        %v1229 = vpack.c.b16 %v1227, %v1226
        %v1233 = vsel %vm813, %v1218, 0
        %v1236 = vsel %vm813, %v1219, 0
        %1238 = vmatprep.subr.bf16.mxu0 0
        %1239 = vmatpush1.bf16.msra.mxu0 %v1228
        %1240 = vmatprep.subr.bf16.mxu0 0
        %1241 = vmatpush1.bf16.msra.mxu0 %v1229
        %1242 = vmatprep.subr.bf16.mxu0 0
        %1243 = vmatpush1.bf16.msra.mxu0 0
        %1244 = vmatprep.subr.bf16.mxu0 0
        %1245 = vmatpush1.bf16.msra.mxu0 0
        %1246 = vmatprep.subr.bf16.mxu0 0
        %1247 = vmatpush1.bf16.msra.mxu0 0
        %1248 = vmatprep.subr.bf16.mxu0 0
        %1249 = vmatpush1.bf16.msra.mxu0 0
        %1250 = vmatprep.subr.bf16.mxu0 0
        %1251 = vmatpush1.bf16.msra.mxu0 0
        %1252 = vmatprep.subr.bf16.mxu0 0
        %1253 = vmatpush1.bf16.msra.mxu0 0
        %1254 = vmatprep.subr.bf16.mxu0 0
        %1255 = vmatpush1.bf16.msra.mxu0 0
        %1256 = vmatprep.subr.bf16.mxu0 0
        %1257 = vmatpush1.bf16.msra.mxu0 0
        %1258 = vmatprep.subr.bf16.mxu0 0
        %1259 = vmatpush1.bf16.msra.mxu0 0
        %1260 = vmatprep.subr.bf16.mxu0 0
        %1261 = vmatpush1.bf16.msra.mxu0 0
        %1262 = vmatprep.subr.bf16.mxu0 0
        %1263 = vmatpush1.bf16.msra.mxu0 0
        %1264 = vmatprep.subr.bf16.mxu0 0
        %1265 = vmatpush1.bf16.msra.mxu0 0
        %1266 = vmatprep.subr.bf16.mxu0 0
        %1267 = vmatpush1.bf16.msra.mxu0 0
        %1268 = vmatprep.subr.bf16.mxu0 0
        %1269 = vmatpush1.bf16.msra.mxu0 0
        %1270 = vmatprep.mubr.bf16.mxu0 0
        %1271 = vmatmul.mubr.bf16.gmra.mrb[0].mxu0 %v1233
        %v1272 = vpop.f32.mrb[0].mxu0
        %v1273 = vadd.f32 0.0, %v1272
        %v1274 = vpop.f32.mrb[0].mxu0
        %v1275 = vpop.f32.mrb[0].mxu0
        %v1276 = vadd.f32 0.0, %v1275
        %v1277 = vpop.f32.mrb[0].mxu0
        %1278 = vmatprep.mubr.bf16.mxu0 0
        %1279 = vmatmul.mubr.bf16.gmra.mrb[0].mxu0 %v1236
        %v1280 = vpop.f32.mrb[0].mxu0
        %v1281 = vadd.f32 0.0, %v1280
        %v1282 = vpop.f32.mrb[0].mxu0
        %v1283 = vpop.f32.mrb[0].mxu0
        %v1284 = vadd.f32 0.0, %v1283
        %v1285 = vpop.f32.mrb[0].mxu0
        %1286 = vdwg.mxu0
        %v1287 = vadd.f32 %v1189, %v1273
        %v1288 = vadd.f32 %v1190, %v1276
        %v1289 = vadd.f32 %v1191, %v1281
        %v1290 = vadd.f32 %v1192, %v1284
        %s1291 = scalar_lea.vmem %s692, 96
        %v1292 = vld [vmem:[%s1291] sm:$0xf]
        %v1293 = vld [vmem:[%s1291 + $0x4] sm:$0xf]
        %v1294 = vld [vmem:[%s1291 + $0x8] sm:$0xf]
        %v1295 = vld [vmem:[%s1291 + $0xc] sm:$0xf]
        %v1300 = vunpack.c.l.b16 %v1292
        %v1301 = vunpack.c.l.b16 %v1293
        %v1302 = vunpack.c.l.b16 %v1294
        %v1303 = vunpack.c.l.b16 %v1295
        %v1304 = vpack.c.b16 %v1301, %v1300
        %v1305 = vpack.c.b16 %v1303, %v1302
        %1308 = vmatprep.subr.bf16.mxu0 0
        %1309 = vmatpush1.bf16.msra.mxu0 %v1304
        %1310 = vmatprep.subr.bf16.mxu0 0
        %1311 = vmatpush1.bf16.msra.mxu0 %v1305
        %1312 = vmatprep.subr.bf16.mxu0 0
        %1313 = vmatpush1.bf16.msra.mxu0 0
        %1314 = vmatprep.subr.bf16.mxu0 0
        %1315 = vmatpush1.bf16.msra.mxu0 0
        %1316 = vmatprep.subr.bf16.mxu0 0
        %1317 = vmatpush1.bf16.msra.mxu0 0
        %1318 = vmatprep.subr.bf16.mxu0 0
        %1319 = vmatpush1.bf16.msra.mxu0 0
        %1320 = vmatprep.subr.bf16.mxu0 0
        %1321 = vmatpush1.bf16.msra.mxu0 0
        %1322 = vmatprep.subr.bf16.mxu0 0
        %1323 = vmatpush1.bf16.msra.mxu0 0
        %1324 = vmatprep.subr.bf16.mxu0 0
        %1325 = vmatpush1.bf16.msra.mxu0 0
        %1326 = vmatprep.subr.bf16.mxu0 0
        %1327 = vmatpush1.bf16.msra.mxu0 0
        %1328 = vmatprep.subr.bf16.mxu0 0
        %1329 = vmatpush1.bf16.msra.mxu0 0
        %1330 = vmatprep.subr.bf16.mxu0 0
        %1331 = vmatpush1.bf16.msra.mxu0 0
        %1332 = vmatprep.subr.bf16.mxu0 0
        %1333 = vmatpush1.bf16.msra.mxu0 0
        %1334 = vmatprep.subr.bf16.mxu0 0
        %1335 = vmatpush1.bf16.msra.mxu0 0
        %1336 = vmatprep.subr.bf16.mxu0 0
        %1337 = vmatpush1.bf16.msra.mxu0 0
        %1338 = vmatprep.subr.bf16.mxu0 0
        %1339 = vmatpush1.bf16.msra.mxu0 0
        %1340 = vmatprep.mubr.bf16.mxu0 0
        %1341 = vmatmul.mubr.bf16.gmra.mrb[0].mxu0 %v1233
        %v1342 = vpop.f32.mrb[0].mxu0
        %v1343 = vadd.f32 0.0, %v1342
        %v1344 = vpop.f32.mrb[0].mxu0
        %v1345 = vpop.f32.mrb[0].mxu0
        %v1346 = vadd.f32 0.0, %v1345
        %v1347 = vpop.f32.mrb[0].mxu0
        %1348 = vmatprep.mubr.bf16.mxu0 0
        %1349 = vmatmul.mubr.bf16.gmra.mrb[0].mxu0 %v1236
        %v1350 = vpop.f32.mrb[0].mxu0
        %v1351 = vadd.f32 0.0, %v1350
        %v1352 = vpop.f32.mrb[0].mxu0
        %v1353 = vpop.f32.mrb[0].mxu0
        %v1354 = vadd.f32 0.0, %v1353
        %v1355 = vpop.f32.mrb[0].mxu0
        %1356 = vdwg.mxu0
        %v1357 = vadd.f32 %v1099, %v1343
        %v1358 = vadd.f32 %v1102, %v1346
        %v1359 = vadd.f32 %v1107, %v1351
        %v1360 = vadd.f32 %v1110, %v1354
        %s1361 = scalar_lea.vmem %s692, 144
        %v1362 = vld [vmem:[%s1361] sm:$0xf]
        %v1363 = vld [vmem:[%s1361 + $0x4] sm:$0xf]
        %v1364 = vld [vmem:[%s1361 + $0x8] sm:$0xf]
        %v1365 = vld [vmem:[%s1361 + $0xc] sm:$0xf]
        %v1370 = vunpack.c.l.b16 %v1362
        %v1371 = vunpack.c.l.b16 %v1363
        %v1372 = vunpack.c.l.b16 %v1364
        %v1373 = vunpack.c.l.b16 %v1365
        %v1374 = vpack.c.b16 %v1371, %v1370
        %v1375 = vpack.c.b16 %v1373, %v1372
        %1378 = vmatprep.subr.bf16.mxu0 0
        %1379 = vmatpush1.bf16.msra.mxu0 %v1374
        %1380 = vmatprep.subr.bf16.mxu0 0
        %1381 = vmatpush1.bf16.msra.mxu0 %v1375
        %1382 = vmatprep.subr.bf16.mxu0 0
        %1383 = vmatpush1.bf16.msra.mxu0 0
        %1384 = vmatprep.subr.bf16.mxu0 0
        %1385 = vmatpush1.bf16.msra.mxu0 0
        %1386 = vmatprep.subr.bf16.mxu0 0
        %1387 = vmatpush1.bf16.msra.mxu0 0
        %1388 = vmatprep.subr.bf16.mxu0 0
        %1389 = vmatpush1.bf16.msra.mxu0 0
        %1390 = vmatprep.subr.bf16.mxu0 0
        %1391 = vmatpush1.bf16.msra.mxu0 0
        %1392 = vmatprep.subr.bf16.mxu0 0
        %1393 = vmatpush1.bf16.msra.mxu0 0
        %1394 = vmatprep.subr.bf16.mxu0 0
        %1395 = vmatpush1.bf16.msra.mxu0 0
        %1396 = vmatprep.subr.bf16.mxu0 0
        %1397 = vmatpush1.bf16.msra.mxu0 0
        %1398 = vmatprep.subr.bf16.mxu0 0
        %1399 = vmatpush1.bf16.msra.mxu0 0
        %1400 = vmatprep.subr.bf16.mxu0 0
        %1401 = vmatpush1.bf16.msra.mxu0 0
        %1402 = vmatprep.subr.bf16.mxu0 0
        %1403 = vmatpush1.bf16.msra.mxu0 0
        %1404 = vmatprep.subr.bf16.mxu0 0
        %1405 = vmatpush1.bf16.msra.mxu0 0
        %1406 = vmatprep.subr.bf16.mxu0 0
        %1407 = vmatpush1.bf16.msra.mxu0 0
        %1408 = vmatprep.subr.bf16.mxu0 0
        %1409 = vmatpush1.bf16.msra.mxu0 0
        %1410 = vmatprep.mubr.bf16.mxu0 0
        %1411 = vmatmul.mubr.bf16.gmra.mrb[0].mxu0 %v1233
        %v1412 = vpop.f32.mrb[0].mxu0
        %v1413 = vadd.f32 0.0, %v1412
        %v1414 = vpop.f32.mrb[0].mxu0
        %v1415 = vpop.f32.mrb[0].mxu0
        %v1416 = vadd.f32 0.0, %v1415
        %v1417 = vpop.f32.mrb[0].mxu0
        %1418 = vmatprep.mubr.bf16.mxu0 0
        %1419 = vmatmul.mubr.bf16.gmra.mrb[0].mxu0 %v1236
        %v1420 = vpop.f32.mrb[0].mxu0
        %v1421 = vadd.f32 0.0, %v1420
        %v1422 = vpop.f32.mrb[0].mxu0
        %v1423 = vpop.f32.mrb[0].mxu0
        %v1424 = vadd.f32 0.0, %v1423
        %v1425 = vpop.f32.mrb[0].mxu0
        %1426 = vdwg.mxu0
        %v1431 = vunpack.c.l.b16 %v1194
        %v1432 = vunpack.c.l.b16 %v1195
        %v1433 = vunpack.c.l.b16 %v1196
        %v1434 = vunpack.c.l.b16 %v1197
        %v1435 = vpack.c.b16 %v1432, %v1431
        %v1436 = vpack.c.b16 %v1434, %v1433
        %1439 = vmatprep.subr.bf16.mxu0 0
        %1440 = vmatpush1.bf16.msra.mxu0 %v1435
        %1441 = vmatprep.subr.bf16.mxu0 0
        %1442 = vmatpush1.bf16.msra.mxu0 %v1436
        %1443 = vmatprep.subr.bf16.mxu0 0
        %1444 = vmatpush1.bf16.msra.mxu0 0
        %1445 = vmatprep.subr.bf16.mxu0 0
        %1446 = vmatpush1.bf16.msra.mxu0 0
        %1447 = vmatprep.subr.bf16.mxu0 0
        %1448 = vmatpush1.bf16.msra.mxu0 0
        %1449 = vmatprep.subr.bf16.mxu0 0
        %1450 = vmatpush1.bf16.msra.mxu0 0
        %1451 = vmatprep.subr.bf16.mxu0 0
        %1452 = vmatpush1.bf16.msra.mxu0 0
        %1453 = vmatprep.subr.bf16.mxu0 0
        %1454 = vmatpush1.bf16.msra.mxu0 0
        %1455 = vmatprep.subr.bf16.mxu0 0
        %1456 = vmatpush1.bf16.msra.mxu0 0
        %1457 = vmatprep.subr.bf16.mxu0 0
        %1458 = vmatpush1.bf16.msra.mxu0 0
        %1459 = vmatprep.subr.bf16.mxu0 0
        %1460 = vmatpush1.bf16.msra.mxu0 0
        %1461 = vmatprep.subr.bf16.mxu0 0
        %1462 = vmatpush1.bf16.msra.mxu0 0
        %1463 = vmatprep.subr.bf16.mxu0 0
        %1464 = vmatpush1.bf16.msra.mxu0 0
        %1465 = vmatprep.subr.bf16.mxu0 0
        %1466 = vmatpush1.bf16.msra.mxu0 0
        %1467 = vmatprep.subr.bf16.mxu0 0
        %1468 = vmatpush1.bf16.msra.mxu0 0
        %1469 = vmatprep.subr.bf16.mxu0 0
        %1470 = vmatpush1.bf16.msra.mxu0 0
        %1471 = vmatprep.mubr.bf16.mxu0 0
        %1472 = vmatmul.mubr.bf16.gmra.mrb[0].mxu0 %v1135
        %v1473 = vpop.f32.mrb[0].mxu0
        %v1474 = vadd.f32 %v1413, %v1473
        %v1475 = vpop.f32.mrb[0].mxu0
        %v1476 = vpop.f32.mrb[0].mxu0
        %v1477 = vadd.f32 %v1416, %v1476
        %v1478 = vpop.f32.mrb[0].mxu0
        %1479 = vmatprep.mubr.bf16.mxu0 0
        %1480 = vmatmul.mubr.bf16.gmra.mrb[0].mxu0 %v1138
        %v1481 = vpop.f32.mrb[0].mxu0
        %v1482 = vadd.f32 %v1421, %v1481
        %v1483 = vpop.f32.mrb[0].mxu0
        %v1484 = vpop.f32.mrb[0].mxu0
        %v1485 = vadd.f32 %v1424, %v1484
        %v1486 = vpop.f32.mrb[0].mxu0
        %1487 = vdwg.mxu0
        %s1488 = scalar_lea.vmem %s692, 192
        %v1489 = vld [vmem:[%s1488] sm:$0xf]
        %v1490 = vld [vmem:[%s1488 + $0x4] sm:$0xf]
        %v1491 = vld [vmem:[%s1488 + $0x8] sm:$0xf]
        %v1492 = vld [vmem:[%s1488 + $0xc] sm:$0xf]
        %v1494 = vrot.slane %v711, 5
        %v1495 = vrot.slane %v1494, 4
        %v1496 = vrot.slane %v712, 5
        %v1497 = vsel %vm957, %v1495, %v1496
        %s1498 = scalar_lea.vmem %s692, 112
        %v1499 = vld [vmem:[%s1498] sm:$0xf]
        %v1500 = vld [vmem:[%s1498 + $0x4] sm:$0xf]
        %v1501 = vld [vmem:[%s1498 + $0x8] sm:$0xf]
        %v1502 = vld [vmem:[%s1498 + $0xc] sm:$0xf]
        %v1503 = vunpack.c.l.b16 %v1497
        %v1504 = vpack.c.b16 %v981, %v980
        %v1505 = vpack.c.b16 %v1503, %v982
        %v1510 = vunpack.c.l.b16 %v1499
        %v1511 = vunpack.c.l.b16 %v1500
        %v1512 = vunpack.c.l.b16 %v1501
        %v1513 = vunpack.c.l.b16 %v1502
        %v1514 = vpack.c.b16 %v1511, %v1510
        %v1515 = vpack.c.b16 %v1513, %v1512
        %v1519 = vsel %vm813, %v1504, 0
        %v1522 = vsel %vm813, %v1505, 0
        %1524 = vmatprep.subr.bf16.mxu0 0
        %1525 = vmatpush1.bf16.msra.mxu0 %v1514
        %1526 = vmatprep.subr.bf16.mxu0 0
        %1527 = vmatpush1.bf16.msra.mxu0 %v1515
        %1528 = vmatprep.subr.bf16.mxu0 0
        %1529 = vmatpush1.bf16.msra.mxu0 0
        %1530 = vmatprep.subr.bf16.mxu0 0
        %1531 = vmatpush1.bf16.msra.mxu0 0
        %1532 = vmatprep.subr.bf16.mxu0 0
        %1533 = vmatpush1.bf16.msra.mxu0 0
        %1534 = vmatprep.subr.bf16.mxu0 0
        %1535 = vmatpush1.bf16.msra.mxu0 0
        %1536 = vmatprep.subr.bf16.mxu0 0
        %1537 = vmatpush1.bf16.msra.mxu0 0
        %1538 = vmatprep.subr.bf16.mxu0 0
        %1539 = vmatpush1.bf16.msra.mxu0 0
        %1540 = vmatprep.subr.bf16.mxu0 0
        %1541 = vmatpush1.bf16.msra.mxu0 0
        %1542 = vmatprep.subr.bf16.mxu0 0
        %1543 = vmatpush1.bf16.msra.mxu0 0
        %1544 = vmatprep.subr.bf16.mxu0 0
        %1545 = vmatpush1.bf16.msra.mxu0 0
        %1546 = vmatprep.subr.bf16.mxu0 0
        %1547 = vmatpush1.bf16.msra.mxu0 0
        %1548 = vmatprep.subr.bf16.mxu0 0
        %1549 = vmatpush1.bf16.msra.mxu0 0
        %1550 = vmatprep.subr.bf16.mxu0 0
        %1551 = vmatpush1.bf16.msra.mxu0 0
        %1552 = vmatprep.subr.bf16.mxu0 0
        %1553 = vmatpush1.bf16.msra.mxu0 0
        %1554 = vmatprep.subr.bf16.mxu0 0
        %1555 = vmatpush1.bf16.msra.mxu0 0
        %1556 = vmatprep.mubr.bf16.mxu0 0
        %1557 = vmatmul.mubr.bf16.gmra.mrb[0].mxu0 %v1519
        %v1558 = vpop.f32.mrb[0].mxu0
        %v1559 = vadd.f32 0.0, %v1558
        %v1560 = vpop.f32.mrb[0].mxu0
        %v1561 = vpop.f32.mrb[0].mxu0
        %v1562 = vadd.f32 0.0, %v1561
        %v1563 = vpop.f32.mrb[0].mxu0
        %1564 = vmatprep.mubr.bf16.mxu0 0
        %1565 = vmatmul.mubr.bf16.gmra.mrb[0].mxu0 %v1522
        %v1566 = vpop.f32.mrb[0].mxu0
        %v1567 = vadd.f32 0.0, %v1566
        %v1568 = vpop.f32.mrb[0].mxu0
        %v1569 = vpop.f32.mrb[0].mxu0
        %v1570 = vadd.f32 0.0, %v1569
        %v1571 = vpop.f32.mrb[0].mxu0
        %1572 = vdwg.mxu0
        %v1573 = vadd.f32 %v1357, %v1559
        %v1574 = vadd.f32 %v1358, %v1562
        %v1575 = vadd.f32 %v1359, %v1567
        %v1576 = vadd.f32 %v1360, %v1570
        %s1577 = scalar_lea.vmem %s692, 208
        %v1578 = vld [vmem:[%s1577] sm:$0xf]
        %v1579 = vld [vmem:[%s1577 + $0x4] sm:$0xf]
        %v1580 = vld [vmem:[%s1577 + $0x8] sm:$0xf]
        %v1581 = vld [vmem:[%s1577 + $0xc] sm:$0xf]
        %v1586 = vunpack.c.l.b16 %v1578
        %v1587 = vunpack.c.l.b16 %v1579
        %v1588 = vunpack.c.l.b16 %v1580
        %v1589 = vunpack.c.l.b16 %v1581
        %v1590 = vpack.c.b16 %v1587, %v1586
        %v1591 = vpack.c.b16 %v1589, %v1588
        %1594 = vmatprep.subr.bf16.mxu0 0
        %1595 = vmatpush1.bf16.msra.mxu0 %v1590
        %1596 = vmatprep.subr.bf16.mxu0 0
        %1597 = vmatpush1.bf16.msra.mxu0 %v1591
        %1598 = vmatprep.subr.bf16.mxu0 0
        %1599 = vmatpush1.bf16.msra.mxu0 0
        %1600 = vmatprep.subr.bf16.mxu0 0
        %1601 = vmatpush1.bf16.msra.mxu0 0
        %1602 = vmatprep.subr.bf16.mxu0 0
        %1603 = vmatpush1.bf16.msra.mxu0 0
        %1604 = vmatprep.subr.bf16.mxu0 0
        %1605 = vmatpush1.bf16.msra.mxu0 0
        %1606 = vmatprep.subr.bf16.mxu0 0
        %1607 = vmatpush1.bf16.msra.mxu0 0
        %1608 = vmatprep.subr.bf16.mxu0 0
        %1609 = vmatpush1.bf16.msra.mxu0 0
        %1610 = vmatprep.subr.bf16.mxu0 0
        %1611 = vmatpush1.bf16.msra.mxu0 0
        %1612 = vmatprep.subr.bf16.mxu0 0
        %1613 = vmatpush1.bf16.msra.mxu0 0
        %1614 = vmatprep.subr.bf16.mxu0 0
        %1615 = vmatpush1.bf16.msra.mxu0 0
        %1616 = vmatprep.subr.bf16.mxu0 0
        %1617 = vmatpush1.bf16.msra.mxu0 0
        %1618 = vmatprep.subr.bf16.mxu0 0
        %1619 = vmatpush1.bf16.msra.mxu0 0
        %1620 = vmatprep.subr.bf16.mxu0 0
        %1621 = vmatpush1.bf16.msra.mxu0 0
        %1622 = vmatprep.subr.bf16.mxu0 0
        %1623 = vmatpush1.bf16.msra.mxu0 0
        %1624 = vmatprep.subr.bf16.mxu0 0
        %1625 = vmatpush1.bf16.msra.mxu0 0
        %1626 = vmatprep.mubr.bf16.mxu0 0
        %1627 = vmatmul.mubr.bf16.gmra.mrb[0].mxu0 %v1519
        %v1628 = vpop.f32.mrb[0].mxu0
        %v1629 = vadd.f32 0.0, %v1628
        %v1630 = vpop.f32.mrb[0].mxu0
        %v1631 = vpop.f32.mrb[0].mxu0
        %v1632 = vadd.f32 0.0, %v1631
        %v1633 = vpop.f32.mrb[0].mxu0
        %1634 = vmatprep.mubr.bf16.mxu0 0
        %1635 = vmatmul.mubr.bf16.gmra.mrb[0].mxu0 %v1522
        %v1636 = vpop.f32.mrb[0].mxu0
        %v1637 = vadd.f32 0.0, %v1636
        %v1638 = vpop.f32.mrb[0].mxu0
        %v1639 = vpop.f32.mrb[0].mxu0
        %v1640 = vadd.f32 0.0, %v1639
        %v1641 = vpop.f32.mrb[0].mxu0
        %1642 = vdwg.mxu0
        %v1647 = vunpack.c.l.b16 %v1489
        %v1648 = vunpack.c.l.b16 %v1490
        %v1649 = vunpack.c.l.b16 %v1491
        %v1650 = vunpack.c.l.b16 %v1492
        %v1651 = vpack.c.b16 %v1648, %v1647
        %v1652 = vpack.c.b16 %v1650, %v1649
        %1655 = vmatprep.subr.bf16.mxu0 0
        %1656 = vmatpush1.bf16.msra.mxu0 %v1651
        %1657 = vmatprep.subr.bf16.mxu0 0
        %1658 = vmatpush1.bf16.msra.mxu0 %v1652
        %1659 = vmatprep.subr.bf16.mxu0 0
        %1660 = vmatpush1.bf16.msra.mxu0 0
        %1661 = vmatprep.subr.bf16.mxu0 0
        %1662 = vmatpush1.bf16.msra.mxu0 0
        %1663 = vmatprep.subr.bf16.mxu0 0
        %1664 = vmatpush1.bf16.msra.mxu0 0
        %1665 = vmatprep.subr.bf16.mxu0 0
        %1666 = vmatpush1.bf16.msra.mxu0 0
        %1667 = vmatprep.subr.bf16.mxu0 0
        %1668 = vmatpush1.bf16.msra.mxu0 0
        %1669 = vmatprep.subr.bf16.mxu0 0
        %1670 = vmatpush1.bf16.msra.mxu0 0
        %1671 = vmatprep.subr.bf16.mxu0 0
        %1672 = vmatpush1.bf16.msra.mxu0 0
        %1673 = vmatprep.subr.bf16.mxu0 0
        %1674 = vmatpush1.bf16.msra.mxu0 0
        %1675 = vmatprep.subr.bf16.mxu0 0
        %1676 = vmatpush1.bf16.msra.mxu0 0
        %1677 = vmatprep.subr.bf16.mxu0 0
        %1678 = vmatpush1.bf16.msra.mxu0 0
        %1679 = vmatprep.subr.bf16.mxu0 0
        %1680 = vmatpush1.bf16.msra.mxu0 0
        %1681 = vmatprep.subr.bf16.mxu0 0
        %1682 = vmatpush1.bf16.msra.mxu0 0
        %1683 = vmatprep.subr.bf16.mxu0 0
        %1684 = vmatpush1.bf16.msra.mxu0 0
        %1685 = vmatprep.subr.bf16.mxu0 0
        %1686 = vmatpush1.bf16.msra.mxu0 0
        %1687 = vmatprep.mubr.bf16.mxu0 0
        %1688 = vmatmul.mubr.bf16.gmra.mrb[0].mxu0 %v1233
        %v1689 = vpop.f32.mrb[0].mxu0
        %v1690 = vadd.f32 %v1629, %v1689
        %v1691 = vpop.f32.mrb[0].mxu0
        %v1692 = vpop.f32.mrb[0].mxu0
        %v1693 = vadd.f32 %v1632, %v1692
        %v1694 = vpop.f32.mrb[0].mxu0
        %1695 = vmatprep.mubr.bf16.mxu0 0
        %1696 = vmatmul.mubr.bf16.gmra.mrb[0].mxu0 %v1236
        %v1697 = vpop.f32.mrb[0].mxu0
        %v1698 = vadd.f32 %v1637, %v1697
        %v1699 = vpop.f32.mrb[0].mxu0
        %v1700 = vpop.f32.mrb[0].mxu0
        %v1701 = vadd.f32 %v1640, %v1700
        %v1702 = vpop.f32.mrb[0].mxu0
        %1703 = vdwg.mxu0
        %s1704 = scalar_lea.vmem %s692, 160
        %v1705 = vld [vmem:[%s1704] sm:$0xf]
        %v1706 = vld [vmem:[%s1704 + $0x4] sm:$0xf]
        %v1707 = vld [vmem:[%s1704 + $0x8] sm:$0xf]
        %v1708 = vld [vmem:[%s1704 + $0xc] sm:$0xf]
        %v1710 = vunpack.c.l.b16 %v713
        %v1711 = vpack.c.b16 %v1710, %v1119
        %v1716 = vunpack.c.l.b16 %v1705
        %v1717 = vunpack.c.l.b16 %v1706
        %v1718 = vunpack.c.l.b16 %v1707
        %v1719 = vunpack.c.l.b16 %v1708
        %v1720 = vpack.c.b16 %v1717, %v1716
        %v1721 = vpack.c.b16 %v1719, %v1718
        %v1725 = vsel %vm813, %v1711, 0
        %1727 = vmatprep.subr.bf16.mxu0 0
        %1728 = vmatpush1.bf16.msra.mxu0 %v1720
        %1729 = vmatprep.subr.bf16.mxu0 0
        %1730 = vmatpush1.bf16.msra.mxu0 %v1721
        %1731 = vmatprep.subr.bf16.mxu0 0
        %1732 = vmatpush1.bf16.msra.mxu0 0
        %1733 = vmatprep.subr.bf16.mxu0 0
        %1734 = vmatpush1.bf16.msra.mxu0 0
        %1735 = vmatprep.subr.bf16.mxu0 0
        %1736 = vmatpush1.bf16.msra.mxu0 0
        %1737 = vmatprep.subr.bf16.mxu0 0
        %1738 = vmatpush1.bf16.msra.mxu0 0
        %1739 = vmatprep.subr.bf16.mxu0 0
        %1740 = vmatpush1.bf16.msra.mxu0 0
        %1741 = vmatprep.subr.bf16.mxu0 0
        %1742 = vmatpush1.bf16.msra.mxu0 0
        %1743 = vmatprep.subr.bf16.mxu0 0
        %1744 = vmatpush1.bf16.msra.mxu0 0
        %1745 = vmatprep.subr.bf16.mxu0 0
        %1746 = vmatpush1.bf16.msra.mxu0 0
        %1747 = vmatprep.subr.bf16.mxu0 0
        %1748 = vmatpush1.bf16.msra.mxu0 0
        %1749 = vmatprep.subr.bf16.mxu0 0
        %1750 = vmatpush1.bf16.msra.mxu0 0
        %1751 = vmatprep.subr.bf16.mxu0 0
        %1752 = vmatpush1.bf16.msra.mxu0 0
        %1753 = vmatprep.subr.bf16.mxu0 0
        %1754 = vmatpush1.bf16.msra.mxu0 0
        %1755 = vmatprep.subr.bf16.mxu0 0
        %1756 = vmatpush1.bf16.msra.mxu0 0
        %1757 = vmatprep.subr.bf16.mxu0 0
        %1758 = vmatpush1.bf16.msra.mxu0 0
        %1759 = vmatprep.mubr.bf16.mxu0 0
        %1760 = vmatmul.mubr.bf16.gmra.mrb[0].mxu0 %v895
        %v1761 = vpop.f32.mrb[0].mxu0
        %v1762 = vadd.f32 0.0, %v1761
        %v1763 = vpop.f32.mrb[0].mxu0
        %v1764 = vpop.f32.mrb[0].mxu0
        %v1765 = vadd.f32 0.0, %v1764
        %v1766 = vpop.f32.mrb[0].mxu0
        %1767 = vmatprep.mubr.bf16.mxu0 0
        %1768 = vmatmul.mubr.bf16.gmra.mrb[0].mxu0 %v1725
        %v1769 = vpop.f32.mrb[0].mxu0
        %v1770 = vadd.f32 0.0, %v1769
        %v1771 = vpop.f32.mrb[0].mxu0
        %v1772 = vpop.f32.mrb[0].mxu0
        %v1773 = vadd.f32 0.0, %v1772
        %v1774 = vpop.f32.mrb[0].mxu0
        %1775 = vdwg.mxu0
        %v1776 = vadd.f32 %v1474, %v1762
        %v1777 = vadd.f32 %v1477, %v1765
        %v1778 = vadd.f32 %v1482, %v1770
        %v1779 = vadd.f32 %v1485, %v1773
        %v1781 = vshrl.u32 %v713, 16
        %v1783 = vrot.slane %v1781, 4
        %v1784 = vshll.u32 %v713, 16
        %v1786 = vrot.slane %v1784, 5
        %v1787 = vor.u32 %v1783, %v1786
        %v1788 = vrot.slane %v1787, 4
        %v1790 = vshll.u32 %v714, 16
        %v1792 = vrot.slane %v1790, 5
        %v1793 = vsel %vm733, %v1788, %v1792
        %s1794 = scalar_lea.vmem %s692, 176
        %v1795 = vld [vmem:[%s1794] sm:$0xf]
        %v1796 = vld [vmem:[%s1794 + $0x4] sm:$0xf]
        %v1797 = vld [vmem:[%s1794 + $0x8] sm:$0xf]
        %v1798 = vld [vmem:[%s1794 + $0xc] sm:$0xf]
        %v1799 = vunpack.c.l.b16 %v1793
        %v1800 = vpack.c.b16 %v1799, %v1217
        %v1805 = vunpack.c.l.b16 %v1795
        %v1806 = vunpack.c.l.b16 %v1796
        %v1807 = vunpack.c.l.b16 %v1797
        %v1808 = vunpack.c.l.b16 %v1798
        %v1809 = vpack.c.b16 %v1806, %v1805
        %v1810 = vpack.c.b16 %v1808, %v1807
        %v1814 = vsel %vm813, %v1800, 0
        %1816 = vmatprep.subr.bf16.mxu0 0
        %1817 = vmatpush1.bf16.msra.mxu0 %v1809
        %1818 = vmatprep.subr.bf16.mxu0 0
        %1819 = vmatpush1.bf16.msra.mxu0 %v1810
        %1820 = vmatprep.subr.bf16.mxu0 0
        %1821 = vmatpush1.bf16.msra.mxu0 0
        %1822 = vmatprep.subr.bf16.mxu0 0
        %1823 = vmatpush1.bf16.msra.mxu0 0
        %1824 = vmatprep.subr.bf16.mxu0 0
        %1825 = vmatpush1.bf16.msra.mxu0 0
        %1826 = vmatprep.subr.bf16.mxu0 0
        %1827 = vmatpush1.bf16.msra.mxu0 0
        %1828 = vmatprep.subr.bf16.mxu0 0
        %1829 = vmatpush1.bf16.msra.mxu0 0
        %1830 = vmatprep.subr.bf16.mxu0 0
        %1831 = vmatpush1.bf16.msra.mxu0 0
        %1832 = vmatprep.subr.bf16.mxu0 0
        %1833 = vmatpush1.bf16.msra.mxu0 0
        %1834 = vmatprep.subr.bf16.mxu0 0
        %1835 = vmatpush1.bf16.msra.mxu0 0
        %1836 = vmatprep.subr.bf16.mxu0 0
        %1837 = vmatpush1.bf16.msra.mxu0 0
        %1838 = vmatprep.subr.bf16.mxu0 0
        %1839 = vmatpush1.bf16.msra.mxu0 0
        %1840 = vmatprep.subr.bf16.mxu0 0
        %1841 = vmatpush1.bf16.msra.mxu0 0
        %1842 = vmatprep.subr.bf16.mxu0 0
        %1843 = vmatpush1.bf16.msra.mxu0 0
        %1844 = vmatprep.subr.bf16.mxu0 0
        %1845 = vmatpush1.bf16.msra.mxu0 0
        %1846 = vmatprep.subr.bf16.mxu0 0
        %1847 = vmatpush1.bf16.msra.mxu0 0
        %1848 = vmatprep.mubr.bf16.mxu0 0
        %1849 = vmatmul.mubr.bf16.gmra.mrb[0].mxu0 %v818
        %v1850 = vpop.f32.mrb[0].mxu0
        %v1851 = vadd.f32 0.0, %v1850
        %v1852 = vpop.f32.mrb[0].mxu0
        %v1853 = vpop.f32.mrb[0].mxu0
        %v1854 = vadd.f32 0.0, %v1853
        %v1855 = vpop.f32.mrb[0].mxu0
        %1856 = vmatprep.mubr.bf16.mxu0 0
        %1857 = vmatmul.mubr.bf16.gmra.mrb[0].mxu0 %v1814
        %v1858 = vpop.f32.mrb[0].mxu0
        %v1859 = vadd.f32 0.0, %v1858
        %v1860 = vpop.f32.mrb[0].mxu0
        %v1861 = vpop.f32.mrb[0].mxu0
        %v1862 = vadd.f32 0.0, %v1861
        %v1863 = vpop.f32.mrb[0].mxu0
        %1864 = vdwg.mxu0
        %v1865 = vadd.f32 %v1776, %v1851
        %v1866 = vadd.f32 %v1777, %v1854
        %v1867 = vadd.f32 %v1778, %v1859
        %v1868 = vadd.f32 %v1779, %v1862
        %s1869 = scalar_lea.vmem %s692, 224
        %v1870 = vld [vmem:[%s1869] sm:$0xf]
        %v1871 = vld [vmem:[%s1869 + $0x4] sm:$0xf]
        %v1872 = vld [vmem:[%s1869 + $0x8] sm:$0xf]
        %v1873 = vld [vmem:[%s1869 + $0xc] sm:$0xf]
        %v1878 = vunpack.c.l.b16 %v1870
        %v1879 = vunpack.c.l.b16 %v1871
        %v1880 = vunpack.c.l.b16 %v1872
        %v1881 = vunpack.c.l.b16 %v1873
        %v1882 = vpack.c.b16 %v1879, %v1878
        %v1883 = vpack.c.b16 %v1881, %v1880
        %1886 = vmatprep.subr.bf16.mxu0 0
        %1887 = vmatpush1.bf16.msra.mxu0 %v1882
        %1888 = vmatprep.subr.bf16.mxu0 0
        %1889 = vmatpush1.bf16.msra.mxu0 %v1883
        %1890 = vmatprep.subr.bf16.mxu0 0
        %1891 = vmatpush1.bf16.msra.mxu0 0
        %1892 = vmatprep.subr.bf16.mxu0 0
        %1893 = vmatpush1.bf16.msra.mxu0 0
        %1894 = vmatprep.subr.bf16.mxu0 0
        %1895 = vmatpush1.bf16.msra.mxu0 0
        %1896 = vmatprep.subr.bf16.mxu0 0
        %1897 = vmatpush1.bf16.msra.mxu0 0
        %1898 = vmatprep.subr.bf16.mxu0 0
        %1899 = vmatpush1.bf16.msra.mxu0 0
        %1900 = vmatprep.subr.bf16.mxu0 0
        %1901 = vmatpush1.bf16.msra.mxu0 0
        %1902 = vmatprep.subr.bf16.mxu0 0
        %1903 = vmatpush1.bf16.msra.mxu0 0
        %1904 = vmatprep.subr.bf16.mxu0 0
        %1905 = vmatpush1.bf16.msra.mxu0 0
        %1906 = vmatprep.subr.bf16.mxu0 0
        %1907 = vmatpush1.bf16.msra.mxu0 0
        %1908 = vmatprep.subr.bf16.mxu0 0
        %1909 = vmatpush1.bf16.msra.mxu0 0
        %1910 = vmatprep.subr.bf16.mxu0 0
        %1911 = vmatpush1.bf16.msra.mxu0 0
        %1912 = vmatprep.subr.bf16.mxu0 0
        %1913 = vmatpush1.bf16.msra.mxu0 0
        %1914 = vmatprep.subr.bf16.mxu0 0
        %1915 = vmatpush1.bf16.msra.mxu0 0
        %1916 = vmatprep.subr.bf16.mxu0 0
        %1917 = vmatpush1.bf16.msra.mxu0 0
        %1918 = vmatprep.mubr.bf16.mxu0 0
        %1919 = vmatmul.mubr.bf16.gmra.mrb[0].mxu0 %v818
        %v1920 = vpop.f32.mrb[0].mxu0
        %v1921 = vadd.f32 0.0, %v1920
        %v1922 = vpop.f32.mrb[0].mxu0
        %v1923 = vpop.f32.mrb[0].mxu0
        %v1924 = vadd.f32 0.0, %v1923
        %v1925 = vpop.f32.mrb[0].mxu0
        %1926 = vmatprep.mubr.bf16.mxu0 0
        %1927 = vmatmul.mubr.bf16.gmra.mrb[0].mxu0 %v1814
        %v1928 = vpop.f32.mrb[0].mxu0
        %v1929 = vadd.f32 0.0, %v1928
        %v1930 = vpop.f32.mrb[0].mxu0
        %v1931 = vpop.f32.mrb[0].mxu0
        %v1932 = vadd.f32 0.0, %v1931
        %v1933 = vpop.f32.mrb[0].mxu0
        %1934 = vdwg.mxu0
        %v1935 = vadd.f32 %v1690, %v1921
        %v1936 = vadd.f32 %v1693, %v1924
        %v1937 = vadd.f32 %v1698, %v1929
        %v1938 = vadd.f32 %v1701, %v1932
        %v1940 = vrot.slane %v713, 5
        %v1941 = vrot.slane %v1940, 4
        %v1942 = vrot.slane %v714, 5
        %v1943 = vsel %vm957, %v1941, %v1942
        %s1944 = scalar_lea.vmem %s692, 240
        %v1945 = vld [vmem:[%s1944] sm:$0xf]
        %v1946 = vld [vmem:[%s1944 + $0x4] sm:$0xf]
        %v1947 = vld [vmem:[%s1944 + $0x8] sm:$0xf]
        %v1948 = vld [vmem:[%s1944 + $0xc] sm:$0xf]
        %v1949 = vunpack.c.l.b16 %v1943
        %v1950 = vpack.c.b16 %v1949, %v1503
        %v1955 = vunpack.c.l.b16 %v1945
        %v1956 = vunpack.c.l.b16 %v1946
        %v1957 = vunpack.c.l.b16 %v1947
        %v1958 = vunpack.c.l.b16 %v1948
        %v1959 = vpack.c.b16 %v1956, %v1955
        %v1960 = vpack.c.b16 %v1958, %v1957
        %v1964 = vsel %vm813, %v1950, 0
        %1966 = vmatprep.subr.bf16.mxu0 0
        %1967 = vmatpush1.bf16.msra.mxu0 %v1959
        %1968 = vmatprep.subr.bf16.mxu0 0
        %1969 = vmatpush1.bf16.msra.mxu0 %v1960
        %1970 = vmatprep.subr.bf16.mxu0 0
        %1971 = vmatpush1.bf16.msra.mxu0 0
        %1972 = vmatprep.subr.bf16.mxu0 0
        %1973 = vmatpush1.bf16.msra.mxu0 0
        %1974 = vmatprep.subr.bf16.mxu0 0
        %1975 = vmatpush1.bf16.msra.mxu0 0
        %1976 = vmatprep.subr.bf16.mxu0 0
        %1977 = vmatpush1.bf16.msra.mxu0 0
        %1978 = vmatprep.subr.bf16.mxu0 0
        %1979 = vmatpush1.bf16.msra.mxu0 0
        %1980 = vmatprep.subr.bf16.mxu0 0
        %1981 = vmatpush1.bf16.msra.mxu0 0
        %1982 = vmatprep.subr.bf16.mxu0 0
        %1983 = vmatpush1.bf16.msra.mxu0 0
        %1984 = vmatprep.subr.bf16.mxu0 0
        %1985 = vmatpush1.bf16.msra.mxu0 0
        %1986 = vmatprep.subr.bf16.mxu0 0
        %1987 = vmatpush1.bf16.msra.mxu0 0
        %1988 = vmatprep.subr.bf16.mxu0 0
        %1989 = vmatpush1.bf16.msra.mxu0 0
        %1990 = vmatprep.subr.bf16.mxu0 0
        %1991 = vmatpush1.bf16.msra.mxu0 0
        %1992 = vmatprep.subr.bf16.mxu0 0
        %1993 = vmatpush1.bf16.msra.mxu0 0
        %1994 = vmatprep.subr.bf16.mxu0 0
        %1995 = vmatpush1.bf16.msra.mxu0 0
        %1996 = vmatprep.subr.bf16.mxu0 0
        %1997 = vmatpush1.bf16.msra.mxu0 0
        %1998 = vmatprep.mubr.bf16.mxu0 0
        %1999 = vmatmul.mubr.bf16.gmra.mrb[0].mxu0 %v1001
        %v2000 = vpop.f32.mrb[0].mxu0
        %v2001 = vadd.f32 0.0, %v2000
        %v2002 = vpop.f32.mrb[0].mxu0
        %v2003 = vpop.f32.mrb[0].mxu0
        %v2004 = vadd.f32 0.0, %v2003
        %v2005 = vpop.f32.mrb[0].mxu0
        %2006 = vmatprep.mubr.bf16.mxu0 0
        %2007 = vmatmul.mubr.bf16.gmra.mrb[0].mxu0 %v1964
        %v2008 = vpop.f32.mrb[0].mxu0
        %v2009 = vadd.f32 0.0, %v2008
        %v2010 = vpop.f32.mrb[0].mxu0
        %v2011 = vpop.f32.mrb[0].mxu0
        %v2012 = vadd.f32 0.0, %v2011
        %v2013 = vpop.f32.mrb[0].mxu0
        %2014 = vdwg.mxu0
        %v2015 = vadd.f32 %v1935, %v2001
        %v2016 = vadd.f32 %v1936, %v2004
        %v2017 = vadd.f32 %v1937, %v2009
        %v2018 = vadd.f32 %v1938, %v2012
        %s2019 = scalar_lea.vmem %s692, 256
        %v2020 = vld [vmem:[%s2019] sm:$0xf]
        %v2021 = vld [vmem:[%s2019 + $0x4] sm:$0xf]
        %v2022 = vld [vmem:[%s2019 + $0x8] sm:$0xf]
        %v2023 = vld [vmem:[%s2019 + $0xc] sm:$0xf]
        %v2028 = vunpack.c.l.b16 %v715
        %v2029 = vunpack.c.l.b16 %v717
        %v2030 = vunpack.c.l.b16 %v719
        %v2031 = vunpack.c.l.b16 %v721
        %v2032 = vpack.c.b16 %v2029, %v2028
        %v2033 = vpack.c.b16 %v2031, %v2030
        %v2038 = vunpack.c.l.b16 %v2020
        %v2039 = vunpack.c.l.b16 %v2021
        %v2040 = vunpack.c.l.b16 %v2022
        %v2041 = vunpack.c.l.b16 %v2023
        %v2042 = vpack.c.b16 %v2039, %v2038
        %v2043 = vpack.c.b16 %v2041, %v2040
        %v2047 = vsel %vm813, %v2032, 0
        %v2050 = vsel %vm813, %v2033, 0
        %2052 = vmatprep.subr.bf16.mxu0 0
        %2053 = vmatpush1.bf16.msra.mxu0 %v2042
        %2054 = vmatprep.subr.bf16.mxu0 0
        %2055 = vmatpush1.bf16.msra.mxu0 %v2043
        %2056 = vmatprep.subr.bf16.mxu0 0
        %2057 = vmatpush1.bf16.msra.mxu0 0
        %2058 = vmatprep.subr.bf16.mxu0 0
        %2059 = vmatpush1.bf16.msra.mxu0 0
        %2060 = vmatprep.subr.bf16.mxu0 0
        %2061 = vmatpush1.bf16.msra.mxu0 0
        %2062 = vmatprep.subr.bf16.mxu0 0
        %2063 = vmatpush1.bf16.msra.mxu0 0
        %2064 = vmatprep.subr.bf16.mxu0 0
        %2065 = vmatpush1.bf16.msra.mxu0 0
        %2066 = vmatprep.subr.bf16.mxu0 0
        %2067 = vmatpush1.bf16.msra.mxu0 0
        %2068 = vmatprep.subr.bf16.mxu0 0
        %2069 = vmatpush1.bf16.msra.mxu0 0
        %2070 = vmatprep.subr.bf16.mxu0 0
        %2071 = vmatpush1.bf16.msra.mxu0 0
        %2072 = vmatprep.subr.bf16.mxu0 0
        %2073 = vmatpush1.bf16.msra.mxu0 0
        %2074 = vmatprep.subr.bf16.mxu0 0
        %2075 = vmatpush1.bf16.msra.mxu0 0
        %2076 = vmatprep.subr.bf16.mxu0 0
        %2077 = vmatpush1.bf16.msra.mxu0 0
        %2078 = vmatprep.subr.bf16.mxu0 0
        %2079 = vmatpush1.bf16.msra.mxu0 0
        %2080 = vmatprep.subr.bf16.mxu0 0
        %2081 = vmatpush1.bf16.msra.mxu0 0
        %2082 = vmatprep.subr.bf16.mxu0 0
        %2083 = vmatpush1.bf16.msra.mxu0 0
        %2084 = vmatprep.mubr.bf16.mxu0 0
        %2085 = vmatmul.mubr.bf16.gmra.mrb[0].mxu0 %v2047
        %v2086 = vpop.f32.mrb[0].mxu0
        %v2087 = vadd.f32 0.0, %v2086
        %v2088 = vpop.f32.mrb[0].mxu0
        %v2089 = vpop.f32.mrb[0].mxu0
        %v2090 = vadd.f32 0.0, %v2089
        %v2091 = vpop.f32.mrb[0].mxu0
        %2092 = vmatprep.mubr.bf16.mxu0 0
        %2093 = vmatmul.mubr.bf16.gmra.mrb[0].mxu0 %v2050
        %v2094 = vpop.f32.mrb[0].mxu0
        %v2095 = vadd.f32 0.0, %v2094
        %v2096 = vpop.f32.mrb[0].mxu0
        %v2097 = vpop.f32.mrb[0].mxu0
        %v2098 = vadd.f32 0.0, %v2097
        %v2099 = vpop.f32.mrb[0].mxu0
        %2100 = vdwg.mxu0
        %v2101 = vadd.f32 %v1287, %v2087
        %v2102 = vadd.f32 %v1288, %v2090
        %v2103 = vadd.f32 %v1289, %v2095
        %v2104 = vadd.f32 %v1290, %v2098
        %v2106 = vshrl.u32 %v715, 16
        %v2108 = vrot.slane %v2106, 4
        %v2109 = vshll.u32 %v715, 16
        %v2111 = vrot.slane %v2109, 5
        %v2112 = vor.u32 %v2108, %v2111
        %v2113 = vrot.slane %v2112, 4
        %v2115 = vshll.u32 %v716, 16
        %v2117 = vrot.slane %v2115, 5
        %v2118 = vsel %vm733, %v2113, %v2117
        %v2120 = vshrl.u32 %v717, 16
        %v2122 = vrot.slane %v2120, 4
        %v2123 = vshll.u32 %v717, 16
        %v2125 = vrot.slane %v2123, 5
        %v2126 = vor.u32 %v2122, %v2125
        %v2127 = vrot.slane %v2126, 4
        %v2129 = vshll.u32 %v718, 16
        %v2131 = vrot.slane %v2129, 5
        %v2132 = vsel %vm733, %v2127, %v2131
        %v2134 = vshrl.u32 %v719, 16
        %v2136 = vrot.slane %v2134, 4
        %v2137 = vshll.u32 %v719, 16
        %v2139 = vrot.slane %v2137, 5
        %v2140 = vor.u32 %v2136, %v2139
        %v2141 = vrot.slane %v2140, 4
        %v2143 = vshll.u32 %v720, 16
        %v2145 = vrot.slane %v2143, 5
        %v2146 = vsel %vm733, %v2141, %v2145
        %v2148 = vshrl.u32 %v721, 16
        %v2150 = vrot.slane %v2148, 4
        %v2151 = vshll.u32 %v721, 16
        %v2153 = vrot.slane %v2151, 5
        %v2154 = vor.u32 %v2150, %v2153
        %v2155 = vrot.slane %v2154, 4
        %v2157 = vshll.u32 %v722, 16
        %v2159 = vrot.slane %v2157, 5
        %v2160 = vsel %vm733, %v2155, %v2159
        %s2161 = scalar_lea.vmem %s692, 272
        %v2162 = vld [vmem:[%s2161] sm:$0xf]
        %v2163 = vld [vmem:[%s2161 + $0x4] sm:$0xf]
        %v2164 = vld [vmem:[%s2161 + $0x8] sm:$0xf]
        %v2165 = vld [vmem:[%s2161 + $0xc] sm:$0xf]
        %v2166 = vunpack.c.l.b16 %v2118
        %v2167 = vunpack.c.l.b16 %v2132
        %v2168 = vunpack.c.l.b16 %v2146
        %v2169 = vunpack.c.l.b16 %v2160
        %v2170 = vpack.c.b16 %v2167, %v2166
        %v2171 = vpack.c.b16 %v2169, %v2168
        %v2176 = vunpack.c.l.b16 %v2162
        %v2177 = vunpack.c.l.b16 %v2163
        %v2178 = vunpack.c.l.b16 %v2164
        %v2179 = vunpack.c.l.b16 %v2165
        %v2180 = vpack.c.b16 %v2177, %v2176
        %v2181 = vpack.c.b16 %v2179, %v2178
        %v2185 = vsel %vm813, %v2170, 0
        %v2188 = vsel %vm813, %v2171, 0
        %2190 = vmatprep.subr.bf16.mxu0 0
        %2191 = vmatpush1.bf16.msra.mxu0 %v2180
        %2192 = vmatprep.subr.bf16.mxu0 0
        %2193 = vmatpush1.bf16.msra.mxu0 %v2181
        %2194 = vmatprep.subr.bf16.mxu0 0
        %2195 = vmatpush1.bf16.msra.mxu0 0
        %2196 = vmatprep.subr.bf16.mxu0 0
        %2197 = vmatpush1.bf16.msra.mxu0 0
        %2198 = vmatprep.subr.bf16.mxu0 0
        %2199 = vmatpush1.bf16.msra.mxu0 0
        %2200 = vmatprep.subr.bf16.mxu0 0
        %2201 = vmatpush1.bf16.msra.mxu0 0
        %2202 = vmatprep.subr.bf16.mxu0 0
        %2203 = vmatpush1.bf16.msra.mxu0 0
        %2204 = vmatprep.subr.bf16.mxu0 0
        %2205 = vmatpush1.bf16.msra.mxu0 0
        %2206 = vmatprep.subr.bf16.mxu0 0
        %2207 = vmatpush1.bf16.msra.mxu0 0
        %2208 = vmatprep.subr.bf16.mxu0 0
        %2209 = vmatpush1.bf16.msra.mxu0 0
        %2210 = vmatprep.subr.bf16.mxu0 0
        %2211 = vmatpush1.bf16.msra.mxu0 0
        %2212 = vmatprep.subr.bf16.mxu0 0
        %2213 = vmatpush1.bf16.msra.mxu0 0
        %2214 = vmatprep.subr.bf16.mxu0 0
        %2215 = vmatpush1.bf16.msra.mxu0 0
        %2216 = vmatprep.subr.bf16.mxu0 0
        %2217 = vmatpush1.bf16.msra.mxu0 0
        %2218 = vmatprep.subr.bf16.mxu0 0
        %2219 = vmatpush1.bf16.msra.mxu0 0
        %2220 = vmatprep.subr.bf16.mxu0 0
        %2221 = vmatpush1.bf16.msra.mxu0 0
        %2222 = vmatprep.mubr.bf16.mxu0 0
        %2223 = vmatmul.mubr.bf16.gmra.mrb[0].mxu0 %v2185
        %v2224 = vpop.f32.mrb[0].mxu0
        %v2225 = vadd.f32 0.0, %v2224
        %v2226 = vpop.f32.mrb[0].mxu0
        %v2227 = vpop.f32.mrb[0].mxu0
        %v2228 = vadd.f32 0.0, %v2227
        %v2229 = vpop.f32.mrb[0].mxu0
        %2230 = vmatprep.mubr.bf16.mxu0 0
        %2231 = vmatmul.mubr.bf16.gmra.mrb[0].mxu0 %v2188
        %v2232 = vpop.f32.mrb[0].mxu0
        %v2233 = vadd.f32 0.0, %v2232
        %v2234 = vpop.f32.mrb[0].mxu0
        %v2235 = vpop.f32.mrb[0].mxu0
        %v2236 = vadd.f32 0.0, %v2235
        %v2237 = vpop.f32.mrb[0].mxu0
        %2238 = vdwg.mxu0
        %v2239 = vadd.f32 %v2101, %v2225
        %v2240 = vadd.f32 %v2102, %v2228
        %v2241 = vadd.f32 %v2103, %v2233
        %v2242 = vadd.f32 %v2104, %v2236
        %s2243 = scalar_lea.vmem %s692, 320
        %v2244 = vld [vmem:[%s2243] sm:$0xf]
        %v2245 = vld [vmem:[%s2243 + $0x4] sm:$0xf]
        %v2246 = vld [vmem:[%s2243 + $0x8] sm:$0xf]
        %v2247 = vld [vmem:[%s2243 + $0xc] sm:$0xf]
        %v2252 = vunpack.c.l.b16 %v2244
        %v2253 = vunpack.c.l.b16 %v2245
        %v2254 = vunpack.c.l.b16 %v2246
        %v2255 = vunpack.c.l.b16 %v2247
        %v2256 = vpack.c.b16 %v2253, %v2252
        %v2257 = vpack.c.b16 %v2255, %v2254
        %2260 = vmatprep.subr.bf16.mxu0 0
        %2261 = vmatpush1.bf16.msra.mxu0 %v2256
        %2262 = vmatprep.subr.bf16.mxu0 0
        %2263 = vmatpush1.bf16.msra.mxu0 %v2257
        %2264 = vmatprep.subr.bf16.mxu0 0
        %2265 = vmatpush1.bf16.msra.mxu0 0
        %2266 = vmatprep.subr.bf16.mxu0 0
        %2267 = vmatpush1.bf16.msra.mxu0 0
        %2268 = vmatprep.subr.bf16.mxu0 0
        %2269 = vmatpush1.bf16.msra.mxu0 0
        %2270 = vmatprep.subr.bf16.mxu0 0
        %2271 = vmatpush1.bf16.msra.mxu0 0
        %2272 = vmatprep.subr.bf16.mxu0 0
        %2273 = vmatpush1.bf16.msra.mxu0 0
        %2274 = vmatprep.subr.bf16.mxu0 0
        %2275 = vmatpush1.bf16.msra.mxu0 0
        %2276 = vmatprep.subr.bf16.mxu0 0
        %2277 = vmatpush1.bf16.msra.mxu0 0
        %2278 = vmatprep.subr.bf16.mxu0 0
        %2279 = vmatpush1.bf16.msra.mxu0 0
        %2280 = vmatprep.subr.bf16.mxu0 0
        %2281 = vmatpush1.bf16.msra.mxu0 0
        %2282 = vmatprep.subr.bf16.mxu0 0
        %2283 = vmatpush1.bf16.msra.mxu0 0
        %2284 = vmatprep.subr.bf16.mxu0 0
        %2285 = vmatpush1.bf16.msra.mxu0 0
        %2286 = vmatprep.subr.bf16.mxu0 0
        %2287 = vmatpush1.bf16.msra.mxu0 0
        %2288 = vmatprep.subr.bf16.mxu0 0
        %2289 = vmatpush1.bf16.msra.mxu0 0
        %2290 = vmatprep.subr.bf16.mxu0 0
        %2291 = vmatpush1.bf16.msra.mxu0 0
        %2292 = vmatprep.mubr.bf16.mxu0 0
        %2293 = vmatmul.mubr.bf16.gmra.mrb[0].mxu0 %v2185
        %v2294 = vpop.f32.mrb[0].mxu0
        %v2295 = vadd.f32 0.0, %v2294
        %v2296 = vpop.f32.mrb[0].mxu0
        %v2297 = vpop.f32.mrb[0].mxu0
        %v2298 = vadd.f32 0.0, %v2297
        %v2299 = vpop.f32.mrb[0].mxu0
        %2300 = vmatprep.mubr.bf16.mxu0 0
        %2301 = vmatmul.mubr.bf16.gmra.mrb[0].mxu0 %v2188
        %v2302 = vpop.f32.mrb[0].mxu0
        %v2303 = vadd.f32 0.0, %v2302
        %v2304 = vpop.f32.mrb[0].mxu0
        %v2305 = vpop.f32.mrb[0].mxu0
        %v2306 = vadd.f32 0.0, %v2305
        %v2307 = vpop.f32.mrb[0].mxu0
        %2308 = vdwg.mxu0
        %v2309 = vadd.f32 %v1573, %v2295
        %v2310 = vadd.f32 %v1574, %v2298
        %v2311 = vadd.f32 %v1575, %v2303
        %v2312 = vadd.f32 %v1576, %v2306
        %v2317 = vrot.slane %v715, 5
        %v2318 = vrot.slane %v2317, 4
        %v2319 = vrot.slane %v716, 5
        %v2320 = vsel %vm957, %v2318, %v2319
        %v2321 = vrot.slane %v717, 5
        %v2322 = vrot.slane %v2321, 4
        %v2323 = vrot.slane %v718, 5
        %v2324 = vsel %vm957, %v2322, %v2323
        %v2325 = vrot.slane %v719, 5
        %v2326 = vrot.slane %v2325, 4
        %v2327 = vrot.slane %v720, 5
        %v2328 = vsel %vm957, %v2326, %v2327
        %v2329 = vrot.slane %v721, 5
        %v2330 = vrot.slane %v2329, 4
        %v2331 = vrot.slane %v722, 5
        %v2332 = vsel %vm957, %v2330, %v2331
        %s2333 = scalar_lea.vmem %s692, 336
        %v2334 = vld [vmem:[%s2333] sm:$0xf]
        %v2335 = vld [vmem:[%s2333 + $0x4] sm:$0xf]
        %v2336 = vld [vmem:[%s2333 + $0x8] sm:$0xf]
        %v2337 = vld [vmem:[%s2333 + $0xc] sm:$0xf]
        %v2338 = vunpack.c.l.b16 %v2320
        %v2339 = vunpack.c.l.b16 %v2324
        %v2340 = vunpack.c.l.b16 %v2328
        %v2341 = vunpack.c.l.b16 %v2332
        %v2342 = vpack.c.b16 %v2339, %v2338
        %v2343 = vpack.c.b16 %v2341, %v2340
        %v2348 = vunpack.c.l.b16 %v2334
        %v2349 = vunpack.c.l.b16 %v2335
        %v2350 = vunpack.c.l.b16 %v2336
        %v2351 = vunpack.c.l.b16 %v2337
        %v2352 = vpack.c.b16 %v2349, %v2348
        %v2353 = vpack.c.b16 %v2351, %v2350
        %v2357 = vsel %vm813, %v2342, 0
        %v2360 = vsel %vm813, %v2343, 0
        %2362 = vmatprep.subr.bf16.mxu0 0
        %2363 = vmatpush1.bf16.msra.mxu0 %v2352
        %2364 = vmatprep.subr.bf16.mxu0 0
        %2365 = vmatpush1.bf16.msra.mxu0 %v2353
        %2366 = vmatprep.subr.bf16.mxu0 0
        %2367 = vmatpush1.bf16.msra.mxu0 0
        %2368 = vmatprep.subr.bf16.mxu0 0
        %2369 = vmatpush1.bf16.msra.mxu0 0
        %2370 = vmatprep.subr.bf16.mxu0 0
        %2371 = vmatpush1.bf16.msra.mxu0 0
        %2372 = vmatprep.subr.bf16.mxu0 0
        %2373 = vmatpush1.bf16.msra.mxu0 0
        %2374 = vmatprep.subr.bf16.mxu0 0
        %2375 = vmatpush1.bf16.msra.mxu0 0
        %2376 = vmatprep.subr.bf16.mxu0 0
        %2377 = vmatpush1.bf16.msra.mxu0 0
        %2378 = vmatprep.subr.bf16.mxu0 0
        %2379 = vmatpush1.bf16.msra.mxu0 0
        %2380 = vmatprep.subr.bf16.mxu0 0
        %2381 = vmatpush1.bf16.msra.mxu0 0
        %2382 = vmatprep.subr.bf16.mxu0 0
        %2383 = vmatpush1.bf16.msra.mxu0 0
        %2384 = vmatprep.subr.bf16.mxu0 0
        %2385 = vmatpush1.bf16.msra.mxu0 0
        %2386 = vmatprep.subr.bf16.mxu0 0
        %2387 = vmatpush1.bf16.msra.mxu0 0
        %2388 = vmatprep.subr.bf16.mxu0 0
        %2389 = vmatpush1.bf16.msra.mxu0 0
        %2390 = vmatprep.subr.bf16.mxu0 0
        %2391 = vmatpush1.bf16.msra.mxu0 0
        %2392 = vmatprep.subr.bf16.mxu0 0
        %2393 = vmatpush1.bf16.msra.mxu0 0
        %2394 = vmatprep.mubr.bf16.mxu0 0
        %2395 = vmatmul.mubr.bf16.gmra.mrb[0].mxu0 %v2357
        %v2396 = vpop.f32.mrb[0].mxu0
        %v2397 = vadd.f32 0.0, %v2396
        %v2398 = vpop.f32.mrb[0].mxu0
        %v2399 = vpop.f32.mrb[0].mxu0
        %v2400 = vadd.f32 0.0, %v2399
        %v2401 = vpop.f32.mrb[0].mxu0
        %2402 = vmatprep.mubr.bf16.mxu0 0
        %2403 = vmatmul.mubr.bf16.gmra.mrb[0].mxu0 %v2360
        %v2404 = vpop.f32.mrb[0].mxu0
        %v2405 = vadd.f32 0.0, %v2404
        %v2406 = vpop.f32.mrb[0].mxu0
        %v2407 = vpop.f32.mrb[0].mxu0
        %v2408 = vadd.f32 0.0, %v2407
        %v2409 = vpop.f32.mrb[0].mxu0
        %2410 = vdwg.mxu0
        %v2411 = vadd.f32 %v2309, %v2397
        %v2412 = vadd.f32 %v2310, %v2400
        %v2413 = vadd.f32 %v2311, %v2405
        %v2414 = vadd.f32 %v2312, %v2408
        %s2415 = scalar_lea.vmem %s692, 288
        %v2416 = vld [vmem:[%s2415] sm:$0xf]
        %v2417 = vld [vmem:[%s2415 + $0x4] sm:$0xf]
        %v2418 = vld [vmem:[%s2415 + $0x8] sm:$0xf]
        %v2419 = vld [vmem:[%s2415 + $0xc] sm:$0xf]
        %v2421 = vunpack.c.l.b16 %v723
        %v2422 = vpack.c.b16 %v2030, %v2029
        %v2423 = vpack.c.b16 %v2421, %v2031
        %v2428 = vunpack.c.l.b16 %v2416
        %v2429 = vunpack.c.l.b16 %v2417
        %v2430 = vunpack.c.l.b16 %v2418
        %v2431 = vunpack.c.l.b16 %v2419
        %v2432 = vpack.c.b16 %v2429, %v2428
        %v2433 = vpack.c.b16 %v2431, %v2430
        %v2437 = vsel %vm813, %v2422, 0
        %v2440 = vsel %vm813, %v2423, 0
        %2442 = vmatprep.subr.bf16.mxu0 0
        %2443 = vmatpush1.bf16.msra.mxu0 %v2432
        %2444 = vmatprep.subr.bf16.mxu0 0
        %2445 = vmatpush1.bf16.msra.mxu0 %v2433
        %2446 = vmatprep.subr.bf16.mxu0 0
        %2447 = vmatpush1.bf16.msra.mxu0 0
        %2448 = vmatprep.subr.bf16.mxu0 0
        %2449 = vmatpush1.bf16.msra.mxu0 0
        %2450 = vmatprep.subr.bf16.mxu0 0
        %2451 = vmatpush1.bf16.msra.mxu0 0
        %2452 = vmatprep.subr.bf16.mxu0 0
        %2453 = vmatpush1.bf16.msra.mxu0 0
        %2454 = vmatprep.subr.bf16.mxu0 0
        %2455 = vmatpush1.bf16.msra.mxu0 0
        %2456 = vmatprep.subr.bf16.mxu0 0
        %2457 = vmatpush1.bf16.msra.mxu0 0
        %2458 = vmatprep.subr.bf16.mxu0 0
        %2459 = vmatpush1.bf16.msra.mxu0 0
        %2460 = vmatprep.subr.bf16.mxu0 0
        %2461 = vmatpush1.bf16.msra.mxu0 0
        %2462 = vmatprep.subr.bf16.mxu0 0
        %2463 = vmatpush1.bf16.msra.mxu0 0
        %2464 = vmatprep.subr.bf16.mxu0 0
        %2465 = vmatpush1.bf16.msra.mxu0 0
        %2466 = vmatprep.subr.bf16.mxu0 0
        %2467 = vmatpush1.bf16.msra.mxu0 0
        %2468 = vmatprep.subr.bf16.mxu0 0
        %2469 = vmatpush1.bf16.msra.mxu0 0
        %2470 = vmatprep.subr.bf16.mxu0 0
        %2471 = vmatpush1.bf16.msra.mxu0 0
        %2472 = vmatprep.subr.bf16.mxu0 0
        %2473 = vmatpush1.bf16.msra.mxu0 0
        %2474 = vmatprep.mubr.bf16.mxu0 0
        %2475 = vmatmul.mubr.bf16.gmra.mrb[0].mxu0 %v2437
        %v2476 = vpop.f32.mrb[0].mxu0
        %v2477 = vadd.f32 0.0, %v2476
        %v2478 = vpop.f32.mrb[0].mxu0
        %v2479 = vpop.f32.mrb[0].mxu0
        %v2480 = vadd.f32 0.0, %v2479
        %v2481 = vpop.f32.mrb[0].mxu0
        %2482 = vmatprep.mubr.bf16.mxu0 0
        %2483 = vmatmul.mubr.bf16.gmra.mrb[0].mxu0 %v2440
        %v2484 = vpop.f32.mrb[0].mxu0
        %v2485 = vadd.f32 0.0, %v2484
        %v2486 = vpop.f32.mrb[0].mxu0
        %v2487 = vpop.f32.mrb[0].mxu0
        %v2488 = vadd.f32 0.0, %v2487
        %v2489 = vpop.f32.mrb[0].mxu0
        %2490 = vdwg.mxu0
        %v2491 = vadd.f32 %v2239, %v2477
        %v2492 = vadd.f32 %v2240, %v2480
        %v2493 = vadd.f32 %v2241, %v2485
        %v2494 = vadd.f32 %v2242, %v2488
        %s2495 = scalar_lea.vmem %s692, 384
        %v2496 = vld [vmem:[%s2495] sm:$0xf]
        %v2497 = vld [vmem:[%s2495 + $0x4] sm:$0xf]
        %v2498 = vld [vmem:[%s2495 + $0x8] sm:$0xf]
        %v2499 = vld [vmem:[%s2495 + $0xc] sm:$0xf]
        %v2504 = vunpack.c.l.b16 %v2496
        %v2505 = vunpack.c.l.b16 %v2497
        %v2506 = vunpack.c.l.b16 %v2498
        %v2507 = vunpack.c.l.b16 %v2499
        %v2508 = vpack.c.b16 %v2505, %v2504
        %v2509 = vpack.c.b16 %v2507, %v2506
        %2512 = vmatprep.subr.bf16.mxu0 0
        %2513 = vmatpush1.bf16.msra.mxu0 %v2508
        %2514 = vmatprep.subr.bf16.mxu0 0
        %2515 = vmatpush1.bf16.msra.mxu0 %v2509
        %2516 = vmatprep.subr.bf16.mxu0 0
        %2517 = vmatpush1.bf16.msra.mxu0 0
        %2518 = vmatprep.subr.bf16.mxu0 0
        %2519 = vmatpush1.bf16.msra.mxu0 0
        %2520 = vmatprep.subr.bf16.mxu0 0
        %2521 = vmatpush1.bf16.msra.mxu0 0
        %2522 = vmatprep.subr.bf16.mxu0 0
        %2523 = vmatpush1.bf16.msra.mxu0 0
        %2524 = vmatprep.subr.bf16.mxu0 0
        %2525 = vmatpush1.bf16.msra.mxu0 0
        %2526 = vmatprep.subr.bf16.mxu0 0
        %2527 = vmatpush1.bf16.msra.mxu0 0
        %2528 = vmatprep.subr.bf16.mxu0 0
        %2529 = vmatpush1.bf16.msra.mxu0 0
        %2530 = vmatprep.subr.bf16.mxu0 0
        %2531 = vmatpush1.bf16.msra.mxu0 0
        %2532 = vmatprep.subr.bf16.mxu0 0
        %2533 = vmatpush1.bf16.msra.mxu0 0
        %2534 = vmatprep.subr.bf16.mxu0 0
        %2535 = vmatpush1.bf16.msra.mxu0 0
        %2536 = vmatprep.subr.bf16.mxu0 0
        %2537 = vmatpush1.bf16.msra.mxu0 0
        %2538 = vmatprep.subr.bf16.mxu0 0
        %2539 = vmatpush1.bf16.msra.mxu0 0
        %2540 = vmatprep.subr.bf16.mxu0 0
        %2541 = vmatpush1.bf16.msra.mxu0 0
        %2542 = vmatprep.subr.bf16.mxu0 0
        %2543 = vmatpush1.bf16.msra.mxu0 0
        %2544 = vmatprep.mubr.bf16.mxu0 0
        %2545 = vmatmul.mubr.bf16.gmra.mrb[0].mxu0 %v2437
        %v2546 = vpop.f32.mrb[0].mxu0
        %v2547 = vadd.f32 0.0, %v2546
        %v2548 = vpop.f32.mrb[0].mxu0
        %v2549 = vpop.f32.mrb[0].mxu0
        %v2550 = vadd.f32 0.0, %v2549
        %v2551 = vpop.f32.mrb[0].mxu0
        %2552 = vmatprep.mubr.bf16.mxu0 0
        %2553 = vmatmul.mubr.bf16.gmra.mrb[0].mxu0 %v2440
        %v2554 = vpop.f32.mrb[0].mxu0
        %v2555 = vadd.f32 0.0, %v2554
        %v2556 = vpop.f32.mrb[0].mxu0
        %v2557 = vpop.f32.mrb[0].mxu0
        %v2558 = vadd.f32 0.0, %v2557
        %v2559 = vpop.f32.mrb[0].mxu0
        %2560 = vdwg.mxu0
        %v2561 = vadd.f32 %v1865, %v2547
        %v2562 = vadd.f32 %v1866, %v2550
        %v2563 = vadd.f32 %v1867, %v2555
        %v2564 = vadd.f32 %v1868, %v2558
        %v2566 = vshrl.u32 %v723, 16
        %v2568 = vrot.slane %v2566, 4
        %v2569 = vshll.u32 %v723, 16
        %v2571 = vrot.slane %v2569, 5
        %v2572 = vor.u32 %v2568, %v2571
        %v2573 = vrot.slane %v2572, 4
        %v2575 = vshll.u32 %v724, 16
        %v2577 = vrot.slane %v2575, 5
        %v2578 = vsel %vm733, %v2573, %v2577
        %s2579 = scalar_lea.vmem %s692, 304
        %v2580 = vld [vmem:[%s2579] sm:$0xf]
        %v2581 = vld [vmem:[%s2579 + $0x4] sm:$0xf]
        %v2582 = vld [vmem:[%s2579 + $0x8] sm:$0xf]
        %v2583 = vld [vmem:[%s2579 + $0xc] sm:$0xf]
        %v2584 = vunpack.c.l.b16 %v2578
        %v2585 = vpack.c.b16 %v2168, %v2167
        %v2586 = vpack.c.b16 %v2584, %v2169
        %v2591 = vunpack.c.l.b16 %v2580
        %v2592 = vunpack.c.l.b16 %v2581
        %v2593 = vunpack.c.l.b16 %v2582
        %v2594 = vunpack.c.l.b16 %v2583
        %v2595 = vpack.c.b16 %v2592, %v2591
        %v2596 = vpack.c.b16 %v2594, %v2593
        %v2600 = vsel %vm813, %v2585, 0
        %v2603 = vsel %vm813, %v2586, 0
        %2605 = vmatprep.subr.bf16.mxu0 0
        %2606 = vmatpush1.bf16.msra.mxu0 %v2595
        %2607 = vmatprep.subr.bf16.mxu0 0
        %2608 = vmatpush1.bf16.msra.mxu0 %v2596
        %2609 = vmatprep.subr.bf16.mxu0 0
        %2610 = vmatpush1.bf16.msra.mxu0 0
        %2611 = vmatprep.subr.bf16.mxu0 0
        %2612 = vmatpush1.bf16.msra.mxu0 0
        %2613 = vmatprep.subr.bf16.mxu0 0
        %2614 = vmatpush1.bf16.msra.mxu0 0
        %2615 = vmatprep.subr.bf16.mxu0 0
        %2616 = vmatpush1.bf16.msra.mxu0 0
        %2617 = vmatprep.subr.bf16.mxu0 0
        %2618 = vmatpush1.bf16.msra.mxu0 0
        %2619 = vmatprep.subr.bf16.mxu0 0
        %2620 = vmatpush1.bf16.msra.mxu0 0
        %2621 = vmatprep.subr.bf16.mxu0 0
        %2622 = vmatpush1.bf16.msra.mxu0 0
        %2623 = vmatprep.subr.bf16.mxu0 0
        %2624 = vmatpush1.bf16.msra.mxu0 0
        %2625 = vmatprep.subr.bf16.mxu0 0
        %2626 = vmatpush1.bf16.msra.mxu0 0
        %2627 = vmatprep.subr.bf16.mxu0 0
        %2628 = vmatpush1.bf16.msra.mxu0 0
        %2629 = vmatprep.subr.bf16.mxu0 0
        %2630 = vmatpush1.bf16.msra.mxu0 0
        %2631 = vmatprep.subr.bf16.mxu0 0
        %2632 = vmatpush1.bf16.msra.mxu0 0
        %2633 = vmatprep.subr.bf16.mxu0 0
        %2634 = vmatpush1.bf16.msra.mxu0 0
        %2635 = vmatprep.subr.bf16.mxu0 0
        %2636 = vmatpush1.bf16.msra.mxu0 0
        %2637 = vmatprep.mubr.bf16.mxu0 0
        %2638 = vmatmul.mubr.bf16.gmra.mrb[0].mxu0 %v2600
        %v2639 = vpop.f32.mrb[0].mxu0
        %v2640 = vadd.f32 0.0, %v2639
        %v2641 = vpop.f32.mrb[0].mxu0
        %v2642 = vpop.f32.mrb[0].mxu0
        %v2643 = vadd.f32 0.0, %v2642
        %v2644 = vpop.f32.mrb[0].mxu0
        %2645 = vmatprep.mubr.bf16.mxu0 0
        %2646 = vmatmul.mubr.bf16.gmra.mrb[0].mxu0 %v2603
        %v2647 = vpop.f32.mrb[0].mxu0
        %v2648 = vadd.f32 0.0, %v2647
        %v2649 = vpop.f32.mrb[0].mxu0
        %v2650 = vpop.f32.mrb[0].mxu0
        %v2651 = vadd.f32 0.0, %v2650
        %v2652 = vpop.f32.mrb[0].mxu0
        %2653 = vdwg.mxu0
        %v2654 = vadd.f32 %v2491, %v2640
        %v2655 = vadd.f32 %v2492, %v2643
        %v2656 = vadd.f32 %v2493, %v2648
        %v2657 = vadd.f32 %v2494, %v2651
        %s2658 = scalar_lea.vmem %s692, 352
        %v2659 = vld [vmem:[%s2658] sm:$0xf]
        %v2660 = vld [vmem:[%s2658 + $0x4] sm:$0xf]
        %v2661 = vld [vmem:[%s2658 + $0x8] sm:$0xf]
        %v2662 = vld [vmem:[%s2658 + $0xc] sm:$0xf]
        %v2667 = vunpack.c.l.b16 %v2659
        %v2668 = vunpack.c.l.b16 %v2660
        %v2669 = vunpack.c.l.b16 %v2661
        %v2670 = vunpack.c.l.b16 %v2662
        %v2671 = vpack.c.b16 %v2668, %v2667
        %v2672 = vpack.c.b16 %v2670, %v2669
        %2675 = vmatprep.subr.bf16.mxu0 0
        %2676 = vmatpush1.bf16.msra.mxu0 %v2671
        %2677 = vmatprep.subr.bf16.mxu0 0
        %2678 = vmatpush1.bf16.msra.mxu0 %v2672
        %2679 = vmatprep.subr.bf16.mxu0 0
        %2680 = vmatpush1.bf16.msra.mxu0 0
        %2681 = vmatprep.subr.bf16.mxu0 0
        %2682 = vmatpush1.bf16.msra.mxu0 0
        %2683 = vmatprep.subr.bf16.mxu0 0
        %2684 = vmatpush1.bf16.msra.mxu0 0
        %2685 = vmatprep.subr.bf16.mxu0 0
        %2686 = vmatpush1.bf16.msra.mxu0 0
        %2687 = vmatprep.subr.bf16.mxu0 0
        %2688 = vmatpush1.bf16.msra.mxu0 0
        %2689 = vmatprep.subr.bf16.mxu0 0
        %2690 = vmatpush1.bf16.msra.mxu0 0
        %2691 = vmatprep.subr.bf16.mxu0 0
        %2692 = vmatpush1.bf16.msra.mxu0 0
        %2693 = vmatprep.subr.bf16.mxu0 0
        %2694 = vmatpush1.bf16.msra.mxu0 0
        %2695 = vmatprep.subr.bf16.mxu0 0
        %2696 = vmatpush1.bf16.msra.mxu0 0
        %2697 = vmatprep.subr.bf16.mxu0 0
        %2698 = vmatpush1.bf16.msra.mxu0 0
        %2699 = vmatprep.subr.bf16.mxu0 0
        %2700 = vmatpush1.bf16.msra.mxu0 0
        %2701 = vmatprep.subr.bf16.mxu0 0
        %2702 = vmatpush1.bf16.msra.mxu0 0
        %2703 = vmatprep.subr.bf16.mxu0 0
        %2704 = vmatpush1.bf16.msra.mxu0 0
        %2705 = vmatprep.subr.bf16.mxu0 0
        %2706 = vmatpush1.bf16.msra.mxu0 0
        %2707 = vmatprep.mubr.bf16.mxu0 0
        %2708 = vmatmul.mubr.bf16.gmra.mrb[0].mxu0 %v2600
        %v2709 = vpop.f32.mrb[0].mxu0
        %v2710 = vadd.f32 0.0, %v2709
        %v2711 = vpop.f32.mrb[0].mxu0
        %v2712 = vpop.f32.mrb[0].mxu0
        %v2713 = vadd.f32 0.0, %v2712
        %v2714 = vpop.f32.mrb[0].mxu0
        %2715 = vmatprep.mubr.bf16.mxu0 0
        %2716 = vmatmul.mubr.bf16.gmra.mrb[0].mxu0 %v2603
        %v2717 = vpop.f32.mrb[0].mxu0
        %v2718 = vadd.f32 0.0, %v2717
        %v2719 = vpop.f32.mrb[0].mxu0
        %v2720 = vpop.f32.mrb[0].mxu0
        %v2721 = vadd.f32 0.0, %v2720
        %v2722 = vpop.f32.mrb[0].mxu0
        %2723 = vdwg.mxu0
        %v2724 = vadd.f32 %v2411, %v2710
        %v2725 = vadd.f32 %v2412, %v2713
        %v2726 = vadd.f32 %v2413, %v2718
        %v2727 = vadd.f32 %v2414, %v2721
        %s2728 = scalar_lea.vmem %s692, 400
        %v2729 = vld [vmem:[%s2728] sm:$0xf]
        %v2730 = vld [vmem:[%s2728 + $0x4] sm:$0xf]
        %v2731 = vld [vmem:[%s2728 + $0x8] sm:$0xf]
        %v2732 = vld [vmem:[%s2728 + $0xc] sm:$0xf]
        %v2737 = vunpack.c.l.b16 %v2729
        %v2738 = vunpack.c.l.b16 %v2730
        %v2739 = vunpack.c.l.b16 %v2731
        %v2740 = vunpack.c.l.b16 %v2732
        %v2741 = vpack.c.b16 %v2738, %v2737
        %v2742 = vpack.c.b16 %v2740, %v2739
        %2745 = vmatprep.subr.bf16.mxu0 0
        %2746 = vmatpush1.bf16.msra.mxu0 %v2741
        %2747 = vmatprep.subr.bf16.mxu0 0
        %2748 = vmatpush1.bf16.msra.mxu0 %v2742
        %2749 = vmatprep.subr.bf16.mxu0 0
        %2750 = vmatpush1.bf16.msra.mxu0 0
        %2751 = vmatprep.subr.bf16.mxu0 0
        %2752 = vmatpush1.bf16.msra.mxu0 0
        %2753 = vmatprep.subr.bf16.mxu0 0
        %2754 = vmatpush1.bf16.msra.mxu0 0
        %2755 = vmatprep.subr.bf16.mxu0 0
        %2756 = vmatpush1.bf16.msra.mxu0 0
        %2757 = vmatprep.subr.bf16.mxu0 0
        %2758 = vmatpush1.bf16.msra.mxu0 0
        %2759 = vmatprep.subr.bf16.mxu0 0
        %2760 = vmatpush1.bf16.msra.mxu0 0
        %2761 = vmatprep.subr.bf16.mxu0 0
        %2762 = vmatpush1.bf16.msra.mxu0 0
        %2763 = vmatprep.subr.bf16.mxu0 0
        %2764 = vmatpush1.bf16.msra.mxu0 0
        %2765 = vmatprep.subr.bf16.mxu0 0
        %2766 = vmatpush1.bf16.msra.mxu0 0
        %2767 = vmatprep.subr.bf16.mxu0 0
        %2768 = vmatpush1.bf16.msra.mxu0 0
        %2769 = vmatprep.subr.bf16.mxu0 0
        %2770 = vmatpush1.bf16.msra.mxu0 0
        %2771 = vmatprep.subr.bf16.mxu0 0
        %2772 = vmatpush1.bf16.msra.mxu0 0
        %2773 = vmatprep.subr.bf16.mxu0 0
        %2774 = vmatpush1.bf16.msra.mxu0 0
        %2775 = vmatprep.subr.bf16.mxu0 0
        %2776 = vmatpush1.bf16.msra.mxu0 0
        %2777 = vmatprep.mubr.bf16.mxu0 0
        %2778 = vmatmul.mubr.bf16.gmra.mrb[0].mxu0 %v2600
        %v2779 = vpop.f32.mrb[0].mxu0
        %v2780 = vadd.f32 0.0, %v2779
        %v2781 = vpop.f32.mrb[0].mxu0
        %v2782 = vpop.f32.mrb[0].mxu0
        %v2783 = vadd.f32 0.0, %v2782
        %v2784 = vpop.f32.mrb[0].mxu0
        %2785 = vmatprep.mubr.bf16.mxu0 0
        %2786 = vmatmul.mubr.bf16.gmra.mrb[0].mxu0 %v2603
        %v2787 = vpop.f32.mrb[0].mxu0
        %v2788 = vadd.f32 0.0, %v2787
        %v2789 = vpop.f32.mrb[0].mxu0
        %v2790 = vpop.f32.mrb[0].mxu0
        %v2791 = vadd.f32 0.0, %v2790
        %v2792 = vpop.f32.mrb[0].mxu0
        %2793 = vdwg.mxu0
        %v2794 = vadd.f32 %v2561, %v2780
        %v2795 = vadd.f32 %v2562, %v2783
        %v2796 = vadd.f32 %v2563, %v2788
        %v2797 = vadd.f32 %v2564, %v2791
        %s2798 = scalar_lea.vmem %s692, 448
        %v2799 = vld [vmem:[%s2798] sm:$0xf]
        %v2800 = vld [vmem:[%s2798 + $0x4] sm:$0xf]
        %v2801 = vld [vmem:[%s2798 + $0x8] sm:$0xf]
        %v2802 = vld [vmem:[%s2798 + $0xc] sm:$0xf]
        %v2807 = vunpack.c.l.b16 %v2799
        %v2808 = vunpack.c.l.b16 %v2800
        %v2809 = vunpack.c.l.b16 %v2801
        %v2810 = vunpack.c.l.b16 %v2802
        %v2811 = vpack.c.b16 %v2808, %v2807
        %v2812 = vpack.c.b16 %v2810, %v2809
        %2815 = vmatprep.subr.bf16.mxu0 0
        %2816 = vmatpush1.bf16.msra.mxu0 %v2811
        %2817 = vmatprep.subr.bf16.mxu0 0
        %2818 = vmatpush1.bf16.msra.mxu0 %v2812
        %2819 = vmatprep.subr.bf16.mxu0 0
        %2820 = vmatpush1.bf16.msra.mxu0 0
        %2821 = vmatprep.subr.bf16.mxu0 0
        %2822 = vmatpush1.bf16.msra.mxu0 0
        %2823 = vmatprep.subr.bf16.mxu0 0
        %2824 = vmatpush1.bf16.msra.mxu0 0
        %2825 = vmatprep.subr.bf16.mxu0 0
        %2826 = vmatpush1.bf16.msra.mxu0 0
        %2827 = vmatprep.subr.bf16.mxu0 0
        %2828 = vmatpush1.bf16.msra.mxu0 0
        %2829 = vmatprep.subr.bf16.mxu0 0
        %2830 = vmatpush1.bf16.msra.mxu0 0
        %2831 = vmatprep.subr.bf16.mxu0 0
        %2832 = vmatpush1.bf16.msra.mxu0 0
        %2833 = vmatprep.subr.bf16.mxu0 0
        %2834 = vmatpush1.bf16.msra.mxu0 0
        %2835 = vmatprep.subr.bf16.mxu0 0
        %2836 = vmatpush1.bf16.msra.mxu0 0
        %2837 = vmatprep.subr.bf16.mxu0 0
        %2838 = vmatpush1.bf16.msra.mxu0 0
        %2839 = vmatprep.subr.bf16.mxu0 0
        %2840 = vmatpush1.bf16.msra.mxu0 0
        %2841 = vmatprep.subr.bf16.mxu0 0
        %2842 = vmatpush1.bf16.msra.mxu0 0
        %2843 = vmatprep.subr.bf16.mxu0 0
        %2844 = vmatpush1.bf16.msra.mxu0 0
        %2845 = vmatprep.subr.bf16.mxu0 0
        %2846 = vmatpush1.bf16.msra.mxu0 0
        %2847 = vmatprep.mubr.bf16.mxu0 0
        %2848 = vmatmul.mubr.bf16.gmra.mrb[0].mxu0 %v2600
        %v2849 = vpop.f32.mrb[0].mxu0
        %v2850 = vadd.f32 0.0, %v2849
        %v2851 = vpop.f32.mrb[0].mxu0
        %v2852 = vpop.f32.mrb[0].mxu0
        %v2853 = vadd.f32 0.0, %v2852
        %v2854 = vpop.f32.mrb[0].mxu0
        %2855 = vmatprep.mubr.bf16.mxu0 0
        %2856 = vmatmul.mubr.bf16.gmra.mrb[0].mxu0 %v2603
        %v2857 = vpop.f32.mrb[0].mxu0
        %v2858 = vadd.f32 0.0, %v2857
        %v2859 = vpop.f32.mrb[0].mxu0
        %v2860 = vpop.f32.mrb[0].mxu0
        %v2861 = vadd.f32 0.0, %v2860
        %v2862 = vpop.f32.mrb[0].mxu0
        %2863 = vdwg.mxu0
        %v2864 = vadd.f32 %v2015, %v2850
        %v2865 = vadd.f32 %v2016, %v2853
        %v2866 = vadd.f32 %v2017, %v2858
        %v2867 = vadd.f32 %v2018, %v2861
        %v2869 = vrot.slane %v723, 5
        %v2870 = vrot.slane %v2869, 4
        %v2871 = vrot.slane %v724, 5
        %v2872 = vsel %vm957, %v2870, %v2871
        %s2873 = scalar_lea.vmem %s692, 368
        %v2874 = vld [vmem:[%s2873] sm:$0xf]
        %v2875 = vld [vmem:[%s2873 + $0x4] sm:$0xf]
        %v2876 = vld [vmem:[%s2873 + $0x8] sm:$0xf]
        %v2877 = vld [vmem:[%s2873 + $0xc] sm:$0xf]
        %v2878 = vunpack.c.l.b16 %v2872
        %v2879 = vpack.c.b16 %v2340, %v2339
        %v2880 = vpack.c.b16 %v2878, %v2341
        %v2885 = vunpack.c.l.b16 %v2874
        %v2886 = vunpack.c.l.b16 %v2875
        %v2887 = vunpack.c.l.b16 %v2876
        %v2888 = vunpack.c.l.b16 %v2877
        %v2889 = vpack.c.b16 %v2886, %v2885
        %v2890 = vpack.c.b16 %v2888, %v2887
        %v2894 = vsel %vm813, %v2879, 0
        %v2897 = vsel %vm813, %v2880, 0
        %2899 = vmatprep.subr.bf16.mxu0 0
        %2900 = vmatpush1.bf16.msra.mxu0 %v2889
        %2901 = vmatprep.subr.bf16.mxu0 0
        %2902 = vmatpush1.bf16.msra.mxu0 %v2890
        %2903 = vmatprep.subr.bf16.mxu0 0
        %2904 = vmatpush1.bf16.msra.mxu0 0
        %2905 = vmatprep.subr.bf16.mxu0 0
        %2906 = vmatpush1.bf16.msra.mxu0 0
        %2907 = vmatprep.subr.bf16.mxu0 0
        %2908 = vmatpush1.bf16.msra.mxu0 0
        %2909 = vmatprep.subr.bf16.mxu0 0
        %2910 = vmatpush1.bf16.msra.mxu0 0
        %2911 = vmatprep.subr.bf16.mxu0 0
        %2912 = vmatpush1.bf16.msra.mxu0 0
        %2913 = vmatprep.subr.bf16.mxu0 0
        %2914 = vmatpush1.bf16.msra.mxu0 0
        %2915 = vmatprep.subr.bf16.mxu0 0
        %2916 = vmatpush1.bf16.msra.mxu0 0
        %2917 = vmatprep.subr.bf16.mxu0 0
        %2918 = vmatpush1.bf16.msra.mxu0 0
        %2919 = vmatprep.subr.bf16.mxu0 0
        %2920 = vmatpush1.bf16.msra.mxu0 0
        %2921 = vmatprep.subr.bf16.mxu0 0
        %2922 = vmatpush1.bf16.msra.mxu0 0
        %2923 = vmatprep.subr.bf16.mxu0 0
        %2924 = vmatpush1.bf16.msra.mxu0 0
        %2925 = vmatprep.subr.bf16.mxu0 0
        %2926 = vmatpush1.bf16.msra.mxu0 0
        %2927 = vmatprep.subr.bf16.mxu0 0
        %2928 = vmatpush1.bf16.msra.mxu0 0
        %2929 = vmatprep.subr.bf16.mxu0 0
        %2930 = vmatpush1.bf16.msra.mxu0 0
        %2931 = vmatprep.mubr.bf16.mxu0 0
        %2932 = vmatmul.mubr.bf16.gmra.mrb[0].mxu0 %v2894
        %v2933 = vpop.f32.mrb[0].mxu0
        %v2934 = vadd.f32 0.0, %v2933
        %v2935 = vpop.f32.mrb[0].mxu0
        %v2936 = vpop.f32.mrb[0].mxu0
        %v2937 = vadd.f32 0.0, %v2936
        %v2938 = vpop.f32.mrb[0].mxu0
        %2939 = vmatprep.mubr.bf16.mxu0 0
        %2940 = vmatmul.mubr.bf16.gmra.mrb[0].mxu0 %v2897
        %v2941 = vpop.f32.mrb[0].mxu0
        %v2942 = vadd.f32 0.0, %v2941
        %v2943 = vpop.f32.mrb[0].mxu0
        %v2944 = vpop.f32.mrb[0].mxu0
        %v2945 = vadd.f32 0.0, %v2944
        %v2946 = vpop.f32.mrb[0].mxu0
        %2947 = vdwg.mxu0
        %v2948 = vadd.f32 %v2724, %v2934
        %v2949 = vadd.f32 %v2725, %v2937
        %v2950 = vadd.f32 %v2726, %v2942
        %v2951 = vadd.f32 %v2727, %v2945
        %s2952 = scalar_lea.vmem %s692, 464
        %v2953 = vld [vmem:[%s2952] sm:$0xf]
        %v2954 = vld [vmem:[%s2952 + $0x4] sm:$0xf]
        %v2955 = vld [vmem:[%s2952 + $0x8] sm:$0xf]
        %v2956 = vld [vmem:[%s2952 + $0xc] sm:$0xf]
        %v2961 = vunpack.c.l.b16 %v2953
        %v2962 = vunpack.c.l.b16 %v2954
        %v2963 = vunpack.c.l.b16 %v2955
        %v2964 = vunpack.c.l.b16 %v2956
        %v2965 = vpack.c.b16 %v2962, %v2961
        %v2966 = vpack.c.b16 %v2964, %v2963
        %2969 = vmatprep.subr.bf16.mxu0 0
        %2970 = vmatpush1.bf16.msra.mxu0 %v2965
        %2971 = vmatprep.subr.bf16.mxu0 0
        %2972 = vmatpush1.bf16.msra.mxu0 %v2966
        %2973 = vmatprep.subr.bf16.mxu0 0
        %2974 = vmatpush1.bf16.msra.mxu0 0
        %2975 = vmatprep.subr.bf16.mxu0 0
        %2976 = vmatpush1.bf16.msra.mxu0 0
        %2977 = vmatprep.subr.bf16.mxu0 0
        %2978 = vmatpush1.bf16.msra.mxu0 0
        %2979 = vmatprep.subr.bf16.mxu0 0
        %2980 = vmatpush1.bf16.msra.mxu0 0
        %2981 = vmatprep.subr.bf16.mxu0 0
        %2982 = vmatpush1.bf16.msra.mxu0 0
        %2983 = vmatprep.subr.bf16.mxu0 0
        %2984 = vmatpush1.bf16.msra.mxu0 0
        %2985 = vmatprep.subr.bf16.mxu0 0
        %2986 = vmatpush1.bf16.msra.mxu0 0
        %2987 = vmatprep.subr.bf16.mxu0 0
        %2988 = vmatpush1.bf16.msra.mxu0 0
        %2989 = vmatprep.subr.bf16.mxu0 0
        %2990 = vmatpush1.bf16.msra.mxu0 0
        %2991 = vmatprep.subr.bf16.mxu0 0
        %2992 = vmatpush1.bf16.msra.mxu0 0
        %2993 = vmatprep.subr.bf16.mxu0 0
        %2994 = vmatpush1.bf16.msra.mxu0 0
        %2995 = vmatprep.subr.bf16.mxu0 0
        %2996 = vmatpush1.bf16.msra.mxu0 0
        %2997 = vmatprep.subr.bf16.mxu0 0
        %2998 = vmatpush1.bf16.msra.mxu0 0
        %2999 = vmatprep.subr.bf16.mxu0 0
        %3000 = vmatpush1.bf16.msra.mxu0 0
        %3001 = vmatprep.mubr.bf16.mxu0 0
        %3002 = vmatmul.mubr.bf16.gmra.mrb[0].mxu0 %v2894
        %v3003 = vpop.f32.mrb[0].mxu0
        %v3004 = vadd.f32 0.0, %v3003
        %v3005 = vpop.f32.mrb[0].mxu0
        %v3006 = vpop.f32.mrb[0].mxu0
        %v3007 = vadd.f32 0.0, %v3006
        %v3008 = vpop.f32.mrb[0].mxu0
        %3009 = vmatprep.mubr.bf16.mxu0 0
        %3010 = vmatmul.mubr.bf16.gmra.mrb[0].mxu0 %v2897
        %v3011 = vpop.f32.mrb[0].mxu0
        %v3012 = vadd.f32 0.0, %v3011
        %v3013 = vpop.f32.mrb[0].mxu0
        %v3014 = vpop.f32.mrb[0].mxu0
        %v3015 = vadd.f32 0.0, %v3014
        %v3016 = vpop.f32.mrb[0].mxu0
        %3017 = vdwg.mxu0
        %v3018 = vadd.f32 %v2864, %v3004
        %v3019 = vadd.f32 %v2865, %v3007
        %v3020 = vadd.f32 %v2866, %v3012
        %v3021 = vadd.f32 %v2867, %v3015
        %s3022 = scalar_lea.vmem %s692, 416
        %v3023 = vld [vmem:[%s3022] sm:$0xf]
        %v3024 = vld [vmem:[%s3022 + $0x4] sm:$0xf]
        %v3025 = vld [vmem:[%s3022 + $0x8] sm:$0xf]
        %v3026 = vld [vmem:[%s3022 + $0xc] sm:$0xf]
        %v3028 = vunpack.c.l.b16 %v725
        %v3029 = vpack.c.b16 %v3028, %v2421
        %v3034 = vunpack.c.l.b16 %v3023
        %v3035 = vunpack.c.l.b16 %v3024
        %v3036 = vunpack.c.l.b16 %v3025
        %v3037 = vunpack.c.l.b16 %v3026
        %v3038 = vpack.c.b16 %v3035, %v3034
        %v3039 = vpack.c.b16 %v3037, %v3036
        %v3043 = vsel %vm813, %v3029, 0
        %3045 = vmatprep.subr.bf16.mxu0 0
        %3046 = vmatpush1.bf16.msra.mxu0 %v3038
        %3047 = vmatprep.subr.bf16.mxu0 0
        %3048 = vmatpush1.bf16.msra.mxu0 %v3039
        %3049 = vmatprep.subr.bf16.mxu0 0
        %3050 = vmatpush1.bf16.msra.mxu0 0
        %3051 = vmatprep.subr.bf16.mxu0 0
        %3052 = vmatpush1.bf16.msra.mxu0 0
        %3053 = vmatprep.subr.bf16.mxu0 0
        %3054 = vmatpush1.bf16.msra.mxu0 0
        %3055 = vmatprep.subr.bf16.mxu0 0
        %3056 = vmatpush1.bf16.msra.mxu0 0
        %3057 = vmatprep.subr.bf16.mxu0 0
        %3058 = vmatpush1.bf16.msra.mxu0 0
        %3059 = vmatprep.subr.bf16.mxu0 0
        %3060 = vmatpush1.bf16.msra.mxu0 0
        %3061 = vmatprep.subr.bf16.mxu0 0
        %3062 = vmatpush1.bf16.msra.mxu0 0
        %3063 = vmatprep.subr.bf16.mxu0 0
        %3064 = vmatpush1.bf16.msra.mxu0 0
        %3065 = vmatprep.subr.bf16.mxu0 0
        %3066 = vmatpush1.bf16.msra.mxu0 0
        %3067 = vmatprep.subr.bf16.mxu0 0
        %3068 = vmatpush1.bf16.msra.mxu0 0
        %3069 = vmatprep.subr.bf16.mxu0 0
        %3070 = vmatpush1.bf16.msra.mxu0 0
        %3071 = vmatprep.subr.bf16.mxu0 0
        %3072 = vmatpush1.bf16.msra.mxu0 0
        %3073 = vmatprep.subr.bf16.mxu0 0
        %3074 = vmatpush1.bf16.msra.mxu0 0
        %3075 = vmatprep.subr.bf16.mxu0 0
        %3076 = vmatpush1.bf16.msra.mxu0 0
        %3077 = vmatprep.mubr.bf16.mxu0 0
        %3078 = vmatmul.mubr.bf16.gmra.mrb[0].mxu0 %v2050
        %v3079 = vpop.f32.mrb[0].mxu0
        %v3080 = vadd.f32 0.0, %v3079
        %v3081 = vpop.f32.mrb[0].mxu0
        %v3082 = vpop.f32.mrb[0].mxu0
        %v3083 = vadd.f32 0.0, %v3082
        %v3084 = vpop.f32.mrb[0].mxu0
        %3085 = vmatprep.mubr.bf16.mxu0 0
        %3086 = vmatmul.mubr.bf16.gmra.mrb[0].mxu0 %v3043
        %v3087 = vpop.f32.mrb[0].mxu0
        %v3088 = vadd.f32 0.0, %v3087
        %v3089 = vpop.f32.mrb[0].mxu0
        %v3090 = vpop.f32.mrb[0].mxu0
        %v3091 = vadd.f32 0.0, %v3090
        %v3092 = vpop.f32.mrb[0].mxu0
        %3093 = vdwg.mxu0
        %v3094 = vadd.f32 %v2794, %v3080
        %v3095 = vadd.f32 %v2795, %v3083
        %v3096 = vadd.f32 %v2796, %v3088
        %v3097 = vadd.f32 %v2797, %v3091
        %v3099 = vshrl.u32 %v725, 16
        %v3101 = vrot.slane %v3099, 4
        %v3102 = vshll.u32 %v725, 16
        %v3104 = vrot.slane %v3102, 5
        %v3105 = vor.u32 %v3101, %v3104
        %v3106 = vrot.slane %v3105, 4
        %v3108 = vshll.u32 %v726, 16
        %v3110 = vrot.slane %v3108, 5
        %v3111 = vsel %vm733, %v3106, %v3110
        %s3112 = scalar_lea.vmem %s692, 432
        %v3113 = vld [vmem:[%s3112] sm:$0xf]
        %v3114 = vld [vmem:[%s3112 + $0x4] sm:$0xf]
        %v3115 = vld [vmem:[%s3112 + $0x8] sm:$0xf]
        %v3116 = vld [vmem:[%s3112 + $0xc] sm:$0xf]
        %v3117 = vunpack.c.l.b16 %v3111
        %v3118 = vpack.c.b16 %v3117, %v2584
        %v3123 = vunpack.c.l.b16 %v3113
        %v3124 = vunpack.c.l.b16 %v3114
        %v3125 = vunpack.c.l.b16 %v3115
        %v3126 = vunpack.c.l.b16 %v3116
        %v3127 = vpack.c.b16 %v3124, %v3123
        %v3128 = vpack.c.b16 %v3126, %v3125
        %v3132 = vsel %vm813, %v3118, 0
        %3134 = vmatprep.subr.bf16.mxu0 0
        %3135 = vmatpush1.bf16.msra.mxu0 %v3127
        %3136 = vmatprep.subr.bf16.mxu0 0
        %3137 = vmatpush1.bf16.msra.mxu0 %v3128
        %3138 = vmatprep.subr.bf16.mxu0 0
        %3139 = vmatpush1.bf16.msra.mxu0 0
        %3140 = vmatprep.subr.bf16.mxu0 0
        %3141 = vmatpush1.bf16.msra.mxu0 0
        %3142 = vmatprep.subr.bf16.mxu0 0
        %3143 = vmatpush1.bf16.msra.mxu0 0
        %3144 = vmatprep.subr.bf16.mxu0 0
        %3145 = vmatpush1.bf16.msra.mxu0 0
        %3146 = vmatprep.subr.bf16.mxu0 0
        %3147 = vmatpush1.bf16.msra.mxu0 0
        %3148 = vmatprep.subr.bf16.mxu0 0
        %3149 = vmatpush1.bf16.msra.mxu0 0
        %3150 = vmatprep.subr.bf16.mxu0 0
        %3151 = vmatpush1.bf16.msra.mxu0 0
        %3152 = vmatprep.subr.bf16.mxu0 0
        %3153 = vmatpush1.bf16.msra.mxu0 0
        %3154 = vmatprep.subr.bf16.mxu0 0
        %3155 = vmatpush1.bf16.msra.mxu0 0
        %3156 = vmatprep.subr.bf16.mxu0 0
        %3157 = vmatpush1.bf16.msra.mxu0 0
        %3158 = vmatprep.subr.bf16.mxu0 0
        %3159 = vmatpush1.bf16.msra.mxu0 0
        %3160 = vmatprep.subr.bf16.mxu0 0
        %3161 = vmatpush1.bf16.msra.mxu0 0
        %3162 = vmatprep.subr.bf16.mxu0 0
        %3163 = vmatpush1.bf16.msra.mxu0 0
        %3164 = vmatprep.subr.bf16.mxu0 0
        %3165 = vmatpush1.bf16.msra.mxu0 0
        %3166 = vmatprep.mubr.bf16.mxu0 0
        %3167 = vmatmul.mubr.bf16.gmra.mrb[0].mxu0 %v2188
        %v3168 = vpop.f32.mrb[0].mxu0
        %v3169 = vadd.f32 0.0, %v3168
        %v3170 = vpop.f32.mrb[0].mxu0
        %v3171 = vpop.f32.mrb[0].mxu0
        %v3172 = vadd.f32 0.0, %v3171
        %v3173 = vpop.f32.mrb[0].mxu0
        %3174 = vmatprep.mubr.bf16.mxu0 0
        %3175 = vmatmul.mubr.bf16.gmra.mrb[0].mxu0 %v3132
        %v3176 = vpop.f32.mrb[0].mxu0
        %v3177 = vadd.f32 0.0, %v3176
        %v3178 = vpop.f32.mrb[0].mxu0
        %v3179 = vpop.f32.mrb[0].mxu0
        %v3180 = vadd.f32 0.0, %v3179
        %v3181 = vpop.f32.mrb[0].mxu0
        %3182 = vdwg.mxu0
        %v3183 = vadd.f32 %v3094, %v3169
        %v3184 = vadd.f32 %v3095, %v3172
        %v3185 = vadd.f32 %v3096, %v3177
        %v3186 = vadd.f32 %v3097, %v3180
        %s3187 = scalar_lea.vmem %s692, 480
        %v3188 = vld [vmem:[%s3187] sm:$0xf]
        %v3189 = vld [vmem:[%s3187 + $0x4] sm:$0xf]
        %v3190 = vld [vmem:[%s3187 + $0x8] sm:$0xf]
        %v3191 = vld [vmem:[%s3187 + $0xc] sm:$0xf]
        %v3196 = vunpack.c.l.b16 %v3188
        %v3197 = vunpack.c.l.b16 %v3189
        %v3198 = vunpack.c.l.b16 %v3190
        %v3199 = vunpack.c.l.b16 %v3191
        %v3200 = vpack.c.b16 %v3197, %v3196
        %v3201 = vpack.c.b16 %v3199, %v3198
        %3204 = vmatprep.subr.bf16.mxu0 0
        %3205 = vmatpush1.bf16.msra.mxu0 %v3200
        %3206 = vmatprep.subr.bf16.mxu0 0
        %3207 = vmatpush1.bf16.msra.mxu0 %v3201
        %3208 = vmatprep.subr.bf16.mxu0 0
        %3209 = vmatpush1.bf16.msra.mxu0 0
        %3210 = vmatprep.subr.bf16.mxu0 0
        %3211 = vmatpush1.bf16.msra.mxu0 0
        %3212 = vmatprep.subr.bf16.mxu0 0
        %3213 = vmatpush1.bf16.msra.mxu0 0
        %3214 = vmatprep.subr.bf16.mxu0 0
        %3215 = vmatpush1.bf16.msra.mxu0 0
        %3216 = vmatprep.subr.bf16.mxu0 0
        %3217 = vmatpush1.bf16.msra.mxu0 0
        %3218 = vmatprep.subr.bf16.mxu0 0
        %3219 = vmatpush1.bf16.msra.mxu0 0
        %3220 = vmatprep.subr.bf16.mxu0 0
        %3221 = vmatpush1.bf16.msra.mxu0 0
        %3222 = vmatprep.subr.bf16.mxu0 0
        %3223 = vmatpush1.bf16.msra.mxu0 0
        %3224 = vmatprep.subr.bf16.mxu0 0
        %3225 = vmatpush1.bf16.msra.mxu0 0
        %3226 = vmatprep.subr.bf16.mxu0 0
        %3227 = vmatpush1.bf16.msra.mxu0 0
        %3228 = vmatprep.subr.bf16.mxu0 0
        %3229 = vmatpush1.bf16.msra.mxu0 0
        %3230 = vmatprep.subr.bf16.mxu0 0
        %3231 = vmatpush1.bf16.msra.mxu0 0
        %3232 = vmatprep.subr.bf16.mxu0 0
        %3233 = vmatpush1.bf16.msra.mxu0 0
        %3234 = vmatprep.subr.bf16.mxu0 0
        %3235 = vmatpush1.bf16.msra.mxu0 0
        %3236 = vmatprep.mubr.bf16.mxu0 0
        %3237 = vmatmul.mubr.bf16.gmra.mrb[0].mxu0 %v2188
        %v3238 = vpop.f32.mrb[0].mxu0
        %v3239 = vadd.f32 0.0, %v3238
        %v3240 = vpop.f32.mrb[0].mxu0
        %v3241 = vpop.f32.mrb[0].mxu0
        %v3242 = vadd.f32 0.0, %v3241
        %v3243 = vpop.f32.mrb[0].mxu0
        %3244 = vmatprep.mubr.bf16.mxu0 0
        %3245 = vmatmul.mubr.bf16.gmra.mrb[0].mxu0 %v3132
        %v3246 = vpop.f32.mrb[0].mxu0
        %v3247 = vadd.f32 0.0, %v3246
        %v3248 = vpop.f32.mrb[0].mxu0
        %v3249 = vpop.f32.mrb[0].mxu0
        %v3250 = vadd.f32 0.0, %v3249
        %v3251 = vpop.f32.mrb[0].mxu0
        %3252 = vdwg.mxu0
        %v3253 = vadd.f32 %v3018, %v3239
        %v3254 = vadd.f32 %v3019, %v3242
        %v3255 = vadd.f32 %v3020, %v3247
        %v3256 = vadd.f32 %v3021, %v3250
        %v3258 = vrot.slane %v725, 5
        %v3259 = vrot.slane %v3258, 4
        %v3260 = vrot.slane %v726, 5
        %v3261 = vsel %vm957, %v3259, %v3260
        %s3262 = scalar_lea.vmem %s692, 496
        %v3263 = vld [vmem:[%s3262] sm:$0xf]
        %v3264 = vld [vmem:[%s3262 + $0x4] sm:$0xf]
        %v3265 = vld [vmem:[%s3262 + $0x8] sm:$0xf]
        %v3266 = vld [vmem:[%s3262 + $0xc] sm:$0xf]
        %v3267 = vunpack.c.l.b16 %v3261
        %v3268 = vpack.c.b16 %v3267, %v2878
        %v3273 = vunpack.c.l.b16 %v3263
        %v3274 = vunpack.c.l.b16 %v3264
        %v3275 = vunpack.c.l.b16 %v3265
        %v3276 = vunpack.c.l.b16 %v3266
        %v3277 = vpack.c.b16 %v3274, %v3273
        %v3278 = vpack.c.b16 %v3276, %v3275
        %v3282 = vsel %vm813, %v3268, 0
        %3284 = vmatprep.subr.bf16.mxu0 0
        %3285 = vmatpush1.bf16.msra.mxu0 %v3277
        %3286 = vmatprep.subr.bf16.mxu0 0
        %3287 = vmatpush1.bf16.msra.mxu0 %v3278
        %3288 = vmatprep.subr.bf16.mxu0 0
        %3289 = vmatpush1.bf16.msra.mxu0 0
        %3290 = vmatprep.subr.bf16.mxu0 0
        %3291 = vmatpush1.bf16.msra.mxu0 0
        %3292 = vmatprep.subr.bf16.mxu0 0
        %3293 = vmatpush1.bf16.msra.mxu0 0
        %3294 = vmatprep.subr.bf16.mxu0 0
        %3295 = vmatpush1.bf16.msra.mxu0 0
        %3296 = vmatprep.subr.bf16.mxu0 0
        %3297 = vmatpush1.bf16.msra.mxu0 0
        %3298 = vmatprep.subr.bf16.mxu0 0
        %3299 = vmatpush1.bf16.msra.mxu0 0
        %3300 = vmatprep.subr.bf16.mxu0 0
        %3301 = vmatpush1.bf16.msra.mxu0 0
        %3302 = vmatprep.subr.bf16.mxu0 0
        %3303 = vmatpush1.bf16.msra.mxu0 0
        %3304 = vmatprep.subr.bf16.mxu0 0
        %3305 = vmatpush1.bf16.msra.mxu0 0
        %3306 = vmatprep.subr.bf16.mxu0 0
        %3307 = vmatpush1.bf16.msra.mxu0 0
        %3308 = vmatprep.subr.bf16.mxu0 0
        %3309 = vmatpush1.bf16.msra.mxu0 0
        %3310 = vmatprep.subr.bf16.mxu0 0
        %3311 = vmatpush1.bf16.msra.mxu0 0
        %3312 = vmatprep.subr.bf16.mxu0 0
        %3313 = vmatpush1.bf16.msra.mxu0 0
        %3314 = vmatprep.subr.bf16.mxu0 0
        %3315 = vmatpush1.bf16.msra.mxu0 0
        %3316 = vmatprep.mubr.bf16.mxu0 0
        %3317 = vmatmul.mubr.bf16.gmra.mrb[0].mxu0 %v2360
        %v3318 = vpop.f32.mrb[0].mxu0
        %v3319 = vadd.f32 0.0, %v3318
        %v3320 = vpop.f32.mrb[0].mxu0
        %v3321 = vpop.f32.mrb[0].mxu0
        %v3322 = vadd.f32 0.0, %v3321
        %v3323 = vpop.f32.mrb[0].mxu0
        %3324 = vmatprep.mubr.bf16.mxu0 0
        %3325 = vmatmul.mubr.bf16.gmra.mrb[0].mxu0 %v3282
        %v3326 = vpop.f32.mrb[0].mxu0
        %v3327 = vadd.f32 0.0, %v3326
        %v3328 = vpop.f32.mrb[0].mxu0
        %v3329 = vpop.f32.mrb[0].mxu0
        %v3330 = vadd.f32 0.0, %v3329
        %v3331 = vpop.f32.mrb[0].mxu0
        %3332 = vdwg.mxu0
        %v3333 = vadd.f32 %v3253, %v3319
        %v3334 = vadd.f32 %v3254, %v3322
        %v3335 = vadd.f32 %v3255, %v3327
        %v3336 = vadd.f32 %v3256, %v3330
        %v3338 = vlaneseq
        %v3339 = vshrl.u32 %v3338, 7
        %v3340 = vsub.s32 0, %v3339
        %v3341 = vrot.slane %v702, %v3340
        %v3343 = vadd.f32 %v2654, %v3341
        %v3344 = vadd.f32 %v2655, %v3341
        %v3345 = vadd.f32 %v2656, %v3341
        %v3346 = vadd.f32 %v2657, %v3341
        %v3347 = vpack.c.bf16 %v3344, %v3343
        %v3348 = vpack.c.bf16 %v3346, %v3345
        %v3349 = vadd.f32 %v2948, %v3341
        %v3350 = vadd.f32 %v2949, %v3341
        %v3351 = vadd.f32 %v2950, %v3341
        %v3352 = vadd.f32 %v2951, %v3341
        %v3353 = vpack.c.bf16 %v3350, %v3349
        %v3354 = vpack.c.bf16 %v3352, %v3351
        %v3355 = vadd.f32 %v3183, %v3341
        %v3356 = vadd.f32 %v3184, %v3341
        %v3357 = vadd.f32 %v3185, %v3341
        %v3358 = vadd.f32 %v3186, %v3341
        %v3359 = vpack.c.bf16 %v3356, %v3355
        %v3360 = vpack.c.bf16 %v3358, %v3357
        %v3361 = vadd.f32 %v3333, %v3341
        %v3362 = vadd.f32 %v3334, %v3341
        %v3363 = vadd.f32 %v3335, %v3341
        %v3364 = vadd.f32 %v3336, %v3341
        %v3365 = vpack.c.bf16 %v3362, %v3361
        %v3366 = vpack.c.bf16 %v3364, %v3363
        %v3369 = vcombine.high %v3347, %v3347
        %v3371 = vunpack.c.l.s4 1966171168
        %v3372 = vunpack.c.0.s8 %v3371
        %v3373 = vlaneseq
        %v3374 = vshrl.u32 %v3373, 7
        %v3375 = vsub.s32 %v3372, %v3374
        %v3376 = vrot.slane %v3347, %v3375
        %v3378 = vunpack.c.l.s4 1966171168
        %v3379 = vunpack.c.0.s8 %v3378
        %v3380 = vlaneseq
        %v3381 = vshrl.u32 %v3380, 7
        %v3382 = vsub.s32 %v3379, %v3381
        %v3383 = vrot.slane %v3369, %v3382
        %v3384 = vcombine.high %v3376, %v3376
        %v3385 = vcombine.high %v3383, %v3383
        %v3387 = vunpack.c.l.s4 1966171168
        %v3388 = vunpack.c.0.s8 %v3387
        %v3389 = vlaneseq
        %v3390 = vshrl.u32 %v3389, 7
        %v3391 = vsub.s32 %v3388, %v3390
        %v3392 = vrot.slane %v3376, %v3391
        %v3394 = vunpack.c.l.s4 1966171168
        %v3395 = vunpack.c.0.s8 %v3394
        %v3396 = vlaneseq
        %v3397 = vshrl.u32 %v3396, 7
        %v3398 = vsub.s32 %v3395, %v3397
        %v3399 = vrot.slane %v3383, %v3398
        %v3401 = vunpack.c.l.s4 1966171168
        %v3402 = vunpack.c.0.s8 %v3401
        %v3403 = vlaneseq
        %v3404 = vshrl.u32 %v3403, 7
        %v3405 = vsub.s32 %v3402, %v3404
        %v3406 = vrot.slane %v3384, %v3405
        %v3408 = vunpack.c.l.s4 1966171168
        %v3409 = vunpack.c.0.s8 %v3408
        %v3410 = vlaneseq
        %v3411 = vshrl.u32 %v3410, 7
        %v3412 = vsub.s32 %v3409, %v3411
        %v3413 = vrot.slane %v3385, %v3412
        %v3414 = vcombine.high %v3392, %v3392
        %v3415 = vcombine.high %v3399, %v3399
        %v3416 = vcombine.high %v3406, %v3406
        %v3417 = vcombine.high %v3413, %v3413
        %v3418 = vcombine.high %v3348, %v3348
        %v3420 = vunpack.c.l.s4 1966171168
        %v3421 = vunpack.c.0.s8 %v3420
        %v3422 = vlaneseq
        %v3423 = vshrl.u32 %v3422, 7
        %v3424 = vsub.s32 %v3421, %v3423
        %v3425 = vrot.slane %v3348, %v3424
        %v3427 = vunpack.c.l.s4 1966171168
        %v3428 = vunpack.c.0.s8 %v3427
        %v3429 = vlaneseq
        %v3430 = vshrl.u32 %v3429, 7
        %v3431 = vsub.s32 %v3428, %v3430
        %v3432 = vrot.slane %v3418, %v3431
        %v3433 = vcombine.high %v3425, %v3425
        %v3434 = vcombine.high %v3432, %v3432
        %v3436 = vunpack.c.l.s4 1966171168
        %v3437 = vunpack.c.0.s8 %v3436
        %v3438 = vlaneseq
        %v3439 = vshrl.u32 %v3438, 7
        %v3440 = vsub.s32 %v3437, %v3439
        %v3441 = vrot.slane %v3425, %v3440
        %v3443 = vunpack.c.l.s4 1966171168
        %v3444 = vunpack.c.0.s8 %v3443
        %v3445 = vlaneseq
        %v3446 = vshrl.u32 %v3445, 7
        %v3447 = vsub.s32 %v3444, %v3446
        %v3448 = vrot.slane %v3432, %v3447
        %v3450 = vunpack.c.l.s4 1966171168
        %v3451 = vunpack.c.0.s8 %v3450
        %v3452 = vlaneseq
        %v3453 = vshrl.u32 %v3452, 7
        %v3454 = vsub.s32 %v3451, %v3453
        %v3455 = vrot.slane %v3433, %v3454
        %v3457 = vunpack.c.l.s4 1966171168
        %v3458 = vunpack.c.0.s8 %v3457
        %v3459 = vlaneseq
        %v3460 = vshrl.u32 %v3459, 7
        %v3461 = vsub.s32 %v3458, %v3460
        %v3462 = vrot.slane %v3434, %v3461
        %v3463 = vcombine.high %v3441, %v3441
        %v3464 = vcombine.high %v3448, %v3448
        %v3465 = vcombine.high %v3455, %v3455
        %v3466 = vcombine.high %v3462, %v3462
        %v3467 = vunpack.i.l.s16 %v3392
        %v3468 = vunpack.i.h.s16 %v3392
        %v3469 = vunpack.i.l.s16 %v3406
        %v3470 = vunpack.i.h.s16 %v3406
        %v3471 = vunpack.i.l.s16 %v3414
        %v3472 = vunpack.i.h.s16 %v3414
        %v3473 = vunpack.i.l.s16 %v3416
        %v3474 = vunpack.i.h.s16 %v3416
        %v3475 = vunpack.i.l.s16 %v3399
        %v3476 = vunpack.i.h.s16 %v3399
        %v3477 = vunpack.i.l.s16 %v3413
        %v3478 = vunpack.i.h.s16 %v3413
        %v3479 = vunpack.i.l.s16 %v3415
        %v3480 = vunpack.i.h.s16 %v3415
        %v3481 = vunpack.i.l.s16 %v3417
        %v3482 = vunpack.i.h.s16 %v3417
        %v3483 = vunpack.i.l.s16 %v3441
        %v3484 = vunpack.i.h.s16 %v3441
        %v3485 = vunpack.i.l.s16 %v3455
        %v3486 = vunpack.i.h.s16 %v3455
        %v3487 = vunpack.i.l.s16 %v3463
        %v3488 = vunpack.i.h.s16 %v3463
        %v3489 = vunpack.i.l.s16 %v3465
        %v3490 = vunpack.i.h.s16 %v3465
        %v3491 = vunpack.i.l.s16 %v3448
        %v3492 = vunpack.i.h.s16 %v3448
        %v3493 = vunpack.i.l.s16 %v3462
        %v3494 = vunpack.i.h.s16 %v3462
        %v3495 = vunpack.i.l.s16 %v3464
        %v3496 = vunpack.i.h.s16 %v3464
        %v3497 = vunpack.i.l.s16 %v3466
        %v3498 = vunpack.i.h.s16 %v3466
        %v3501 = vcombine.high %v3353, %v3353
        %v3503 = vunpack.c.l.s4 1966171168
        %v3504 = vunpack.c.0.s8 %v3503
        %v3505 = vlaneseq
        %v3506 = vshrl.u32 %v3505, 7
        %v3507 = vsub.s32 %v3504, %v3506
        %v3508 = vrot.slane %v3353, %v3507
        %v3510 = vunpack.c.l.s4 1966171168
        %v3511 = vunpack.c.0.s8 %v3510
        %v3512 = vlaneseq
        %v3513 = vshrl.u32 %v3512, 7
        %v3514 = vsub.s32 %v3511, %v3513
        %v3515 = vrot.slane %v3501, %v3514
        %v3516 = vcombine.high %v3508, %v3508
        %v3517 = vcombine.high %v3515, %v3515
        %v3519 = vunpack.c.l.s4 1966171168
        %v3520 = vunpack.c.0.s8 %v3519
        %v3521 = vlaneseq
        %v3522 = vshrl.u32 %v3521, 7
        %v3523 = vsub.s32 %v3520, %v3522
        %v3524 = vrot.slane %v3508, %v3523
        %v3526 = vunpack.c.l.s4 1966171168
        %v3527 = vunpack.c.0.s8 %v3526
        %v3528 = vlaneseq
        %v3529 = vshrl.u32 %v3528, 7
        %v3530 = vsub.s32 %v3527, %v3529
        %v3531 = vrot.slane %v3515, %v3530
        %v3533 = vunpack.c.l.s4 1966171168
        %v3534 = vunpack.c.0.s8 %v3533
        %v3535 = vlaneseq
        %v3536 = vshrl.u32 %v3535, 7
        %v3537 = vsub.s32 %v3534, %v3536
        %v3538 = vrot.slane %v3516, %v3537
        %v3540 = vunpack.c.l.s4 1966171168
        %v3541 = vunpack.c.0.s8 %v3540
        %v3542 = vlaneseq
        %v3543 = vshrl.u32 %v3542, 7
        %v3544 = vsub.s32 %v3541, %v3543
        %v3545 = vrot.slane %v3517, %v3544
        %v3546 = vcombine.high %v3524, %v3524
        %v3547 = vcombine.high %v3531, %v3531
        %v3548 = vcombine.high %v3538, %v3538
        %v3549 = vcombine.high %v3545, %v3545
        %v3550 = vcombine.high %v3354, %v3354
        %v3552 = vunpack.c.l.s4 1966171168
        %v3553 = vunpack.c.0.s8 %v3552
        %v3554 = vlaneseq
        %v3555 = vshrl.u32 %v3554, 7
        %v3556 = vsub.s32 %v3553, %v3555
        %v3557 = vrot.slane %v3354, %v3556
        %v3559 = vunpack.c.l.s4 1966171168
        %v3560 = vunpack.c.0.s8 %v3559
        %v3561 = vlaneseq
        %v3562 = vshrl.u32 %v3561, 7
        %v3563 = vsub.s32 %v3560, %v3562
        %v3564 = vrot.slane %v3550, %v3563
        %v3565 = vcombine.high %v3557, %v3557
        %v3566 = vcombine.high %v3564, %v3564
        %v3568 = vunpack.c.l.s4 1966171168
        %v3569 = vunpack.c.0.s8 %v3568
        %v3570 = vlaneseq
        %v3571 = vshrl.u32 %v3570, 7
        %v3572 = vsub.s32 %v3569, %v3571
        %v3573 = vrot.slane %v3557, %v3572
        %v3575 = vunpack.c.l.s4 1966171168
        %v3576 = vunpack.c.0.s8 %v3575
        %v3577 = vlaneseq
        %v3578 = vshrl.u32 %v3577, 7
        %v3579 = vsub.s32 %v3576, %v3578
        %v3580 = vrot.slane %v3564, %v3579
        %v3582 = vunpack.c.l.s4 1966171168
        %v3583 = vunpack.c.0.s8 %v3582
        %v3584 = vlaneseq
        %v3585 = vshrl.u32 %v3584, 7
        %v3586 = vsub.s32 %v3583, %v3585
        %v3587 = vrot.slane %v3565, %v3586
        %v3589 = vunpack.c.l.s4 1966171168
        %v3590 = vunpack.c.0.s8 %v3589
        %v3591 = vlaneseq
        %v3592 = vshrl.u32 %v3591, 7
        %v3593 = vsub.s32 %v3590, %v3592
        %v3594 = vrot.slane %v3566, %v3593
        %v3595 = vcombine.high %v3573, %v3573
        %v3596 = vcombine.high %v3580, %v3580
        %v3597 = vcombine.high %v3587, %v3587
        %v3598 = vcombine.high %v3594, %v3594
        %v3599 = vunpack.i.l.s16 %v3524
        %v3600 = vunpack.i.h.s16 %v3524
        %v3601 = vunpack.i.l.s16 %v3538
        %v3602 = vunpack.i.h.s16 %v3538
        %v3603 = vunpack.i.l.s16 %v3546
        %v3604 = vunpack.i.h.s16 %v3546
        %v3605 = vunpack.i.l.s16 %v3548
        %v3606 = vunpack.i.h.s16 %v3548
        %v3607 = vunpack.i.l.s16 %v3531
        %v3608 = vunpack.i.h.s16 %v3531
        %v3609 = vunpack.i.l.s16 %v3545
        %v3610 = vunpack.i.h.s16 %v3545
        %v3611 = vunpack.i.l.s16 %v3547
        %v3612 = vunpack.i.h.s16 %v3547
        %v3613 = vunpack.i.l.s16 %v3549
        %v3614 = vunpack.i.h.s16 %v3549
        %v3615 = vunpack.i.l.s16 %v3573
        %v3616 = vunpack.i.h.s16 %v3573
        %v3617 = vunpack.i.l.s16 %v3587
        %v3618 = vunpack.i.h.s16 %v3587
        %v3619 = vunpack.i.l.s16 %v3595
        %v3620 = vunpack.i.h.s16 %v3595
        %v3621 = vunpack.i.l.s16 %v3597
        %v3622 = vunpack.i.h.s16 %v3597
        %v3623 = vunpack.i.l.s16 %v3580
        %v3624 = vunpack.i.h.s16 %v3580
        %v3625 = vunpack.i.l.s16 %v3594
        %v3626 = vunpack.i.h.s16 %v3594
        %v3627 = vunpack.i.l.s16 %v3596
        %v3628 = vunpack.i.h.s16 %v3596
        %v3629 = vunpack.i.l.s16 %v3598
        %v3630 = vunpack.i.h.s16 %v3598
        %v3631 = vpack.i.b16 %v3467, %v3467
        %v3632 = vpack.i.b16 %v3468, %v3468
        %v3633 = vpack.i.b16 %v3469, %v3469
        %v3634 = vpack.i.b16 %v3470, %v3470
        %v3635 = vpack.i.b16 %v3471, %v3471
        %v3636 = vpack.i.b16 %v3472, %v3472
        %v3637 = vpack.i.b16 %v3473, %v3473
        %v3638 = vpack.i.b16 %v3474, %v3474
        %v3639 = vpack.i.b16 %v3475, %v3475
        %v3640 = vpack.i.b16 %v3476, %v3476
        %v3641 = vpack.i.b16 %v3477, %v3477
        %v3642 = vpack.i.b16 %v3478, %v3478
        %v3643 = vpack.i.b16 %v3479, %v3479
        %v3644 = vpack.i.b16 %v3480, %v3480
        %v3645 = vpack.i.b16 %v3481, %v3481
        %v3646 = vpack.i.b16 %v3482, %v3482
        %v3647 = vpack.i.b16 %v3483, %v3483
        %v3648 = vpack.i.b16 %v3484, %v3484
        %v3649 = vpack.i.b16 %v3485, %v3485
        %v3650 = vpack.i.b16 %v3486, %v3486
        %v3651 = vpack.i.b16 %v3487, %v3487
        %v3652 = vpack.i.b16 %v3488, %v3488
        %v3653 = vpack.i.b16 %v3489, %v3489
        %v3654 = vpack.i.b16 %v3490, %v3490
        %v3655 = vpack.i.b16 %v3491, %v3491
        %v3656 = vpack.i.b16 %v3492, %v3492
        %v3657 = vpack.i.b16 %v3493, %v3493
        %v3658 = vpack.i.b16 %v3494, %v3494
        %v3659 = vpack.i.b16 %v3495, %v3495
        %v3660 = vpack.i.b16 %v3496, %v3496
        %v3661 = vpack.i.b16 %v3497, %v3497
        %v3662 = vpack.i.b16 %v3498, %v3498
        %v3663 = vlaneseq
        %v3664 = vshrl.u32 %v3663, 7
        %v3665 = vsub.s32 0, %v3664
        %v3666 = vrot.slane %v3631, %v3665
        %v3667 = vlaneseq
        %v3668 = vshrl.u32 %v3667, 7
        %v3669 = vsub.s32 0, %v3668
        %v3670 = vrot.slane %v3632, %v3669
        %v3671 = vlaneseq
        %v3672 = vshrl.u32 %v3671, 7
        %v3673 = vsub.s32 0, %v3672
        %v3674 = vrot.slane %v3633, %v3673
        %v3675 = vlaneseq
        %v3676 = vshrl.u32 %v3675, 7
        %v3677 = vsub.s32 0, %v3676
        %v3678 = vrot.slane %v3634, %v3677
        %v3679 = vlaneseq
        %v3680 = vshrl.u32 %v3679, 7
        %v3681 = vsub.s32 0, %v3680
        %v3682 = vrot.slane %v3635, %v3681
        %v3683 = vlaneseq
        %v3684 = vshrl.u32 %v3683, 7
        %v3685 = vsub.s32 0, %v3684
        %v3686 = vrot.slane %v3636, %v3685
        %v3687 = vlaneseq
        %v3688 = vshrl.u32 %v3687, 7
        %v3689 = vsub.s32 0, %v3688
        %v3690 = vrot.slane %v3637, %v3689
        %v3691 = vlaneseq
        %v3692 = vshrl.u32 %v3691, 7
        %v3693 = vsub.s32 0, %v3692
        %v3694 = vrot.slane %v3638, %v3693
        %v3695 = vlaneseq
        %v3696 = vshrl.u32 %v3695, 7
        %v3697 = vsub.s32 0, %v3696
        %v3698 = vrot.slane %v3639, %v3697
        %v3699 = vlaneseq
        %v3700 = vshrl.u32 %v3699, 7
        %v3701 = vsub.s32 0, %v3700
        %v3702 = vrot.slane %v3640, %v3701
        %v3703 = vlaneseq
        %v3704 = vshrl.u32 %v3703, 7
        %v3705 = vsub.s32 0, %v3704
        %v3706 = vrot.slane %v3641, %v3705
        %v3707 = vlaneseq
        %v3708 = vshrl.u32 %v3707, 7
        %v3709 = vsub.s32 0, %v3708
        %v3710 = vrot.slane %v3642, %v3709
        %v3711 = vlaneseq
        %v3712 = vshrl.u32 %v3711, 7
        %v3713 = vsub.s32 0, %v3712
        %v3714 = vrot.slane %v3643, %v3713
        %v3715 = vlaneseq
        %v3716 = vshrl.u32 %v3715, 7
        %v3717 = vsub.s32 0, %v3716
        %v3718 = vrot.slane %v3644, %v3717
        %v3719 = vlaneseq
        %v3720 = vshrl.u32 %v3719, 7
        %v3721 = vsub.s32 0, %v3720
        %v3722 = vrot.slane %v3645, %v3721
        %v3723 = vlaneseq
        %v3724 = vshrl.u32 %v3723, 7
        %v3725 = vsub.s32 0, %v3724
        %v3726 = vrot.slane %v3646, %v3725
        %v3727 = vlaneseq
        %v3728 = vshrl.u32 %v3727, 7
        %v3729 = vsub.s32 0, %v3728
        %v3730 = vrot.slane %v3647, %v3729
        %v3731 = vlaneseq
        %v3732 = vshrl.u32 %v3731, 7
        %v3733 = vsub.s32 0, %v3732
        %v3734 = vrot.slane %v3648, %v3733
        %v3735 = vlaneseq
        %v3736 = vshrl.u32 %v3735, 7
        %v3737 = vsub.s32 0, %v3736
        %v3738 = vrot.slane %v3649, %v3737
        %v3739 = vlaneseq
        %v3740 = vshrl.u32 %v3739, 7
        %v3741 = vsub.s32 0, %v3740
        %v3742 = vrot.slane %v3650, %v3741
        %v3743 = vlaneseq
        %v3744 = vshrl.u32 %v3743, 7
        %v3745 = vsub.s32 0, %v3744
        %v3746 = vrot.slane %v3651, %v3745
        %v3747 = vlaneseq
        %v3748 = vshrl.u32 %v3747, 7
        %v3749 = vsub.s32 0, %v3748
        %v3750 = vrot.slane %v3652, %v3749
        %v3751 = vlaneseq
        %v3752 = vshrl.u32 %v3751, 7
        %v3753 = vsub.s32 0, %v3752
        %v3754 = vrot.slane %v3653, %v3753
        %v3755 = vlaneseq
        %v3756 = vshrl.u32 %v3755, 7
        %v3757 = vsub.s32 0, %v3756
        %v3758 = vrot.slane %v3654, %v3757
        %v3759 = vlaneseq
        %v3760 = vshrl.u32 %v3759, 7
        %v3761 = vsub.s32 0, %v3760
        %v3762 = vrot.slane %v3655, %v3761
        %v3763 = vlaneseq
        %v3764 = vshrl.u32 %v3763, 7
        %v3765 = vsub.s32 0, %v3764
        %v3766 = vrot.slane %v3656, %v3765
        %v3767 = vlaneseq
        %v3768 = vshrl.u32 %v3767, 7
        %v3769 = vsub.s32 0, %v3768
        %v3770 = vrot.slane %v3657, %v3769
        %v3771 = vlaneseq
        %v3772 = vshrl.u32 %v3771, 7
        %v3773 = vsub.s32 0, %v3772
        %v3774 = vrot.slane %v3658, %v3773
        %v3775 = vlaneseq
        %v3776 = vshrl.u32 %v3775, 7
        %v3777 = vsub.s32 0, %v3776
        %v3778 = vrot.slane %v3659, %v3777
        %v3779 = vlaneseq
        %v3780 = vshrl.u32 %v3779, 7
        %v3781 = vsub.s32 0, %v3780
        %v3782 = vrot.slane %v3660, %v3781
        %v3783 = vlaneseq
        %v3784 = vshrl.u32 %v3783, 7
        %v3785 = vsub.s32 0, %v3784
        %v3786 = vrot.slane %v3661, %v3785
        %v3787 = vlaneseq
        %v3788 = vshrl.u32 %v3787, 7
        %v3789 = vsub.s32 0, %v3788
        %v3790 = vrot.slane %v3662, %v3789
        %v3823 = vpack.i.b16 %v3599, %v3599
        %v3824 = vpack.i.b16 %v3600, %v3600
        %v3825 = vpack.i.b16 %v3601, %v3601
        %v3826 = vpack.i.b16 %v3602, %v3602
        %v3827 = vpack.i.b16 %v3603, %v3603
        %v3828 = vpack.i.b16 %v3604, %v3604
        %v3829 = vpack.i.b16 %v3605, %v3605
        %v3830 = vpack.i.b16 %v3606, %v3606
        %v3831 = vpack.i.b16 %v3607, %v3607
        %v3832 = vpack.i.b16 %v3608, %v3608
        %v3833 = vpack.i.b16 %v3609, %v3609
        %v3834 = vpack.i.b16 %v3610, %v3610
        %v3835 = vpack.i.b16 %v3611, %v3611
        %v3836 = vpack.i.b16 %v3612, %v3612
        %v3837 = vpack.i.b16 %v3613, %v3613
        %v3838 = vpack.i.b16 %v3614, %v3614
        %v3839 = vpack.i.b16 %v3615, %v3615
        %v3840 = vpack.i.b16 %v3616, %v3616
        %v3841 = vpack.i.b16 %v3617, %v3617
        %v3842 = vpack.i.b16 %v3618, %v3618
        %v3843 = vpack.i.b16 %v3619, %v3619
        %v3844 = vpack.i.b16 %v3620, %v3620
        %v3845 = vpack.i.b16 %v3621, %v3621
        %v3846 = vpack.i.b16 %v3622, %v3622
        %v3847 = vpack.i.b16 %v3623, %v3623
        %v3848 = vpack.i.b16 %v3624, %v3624
        %v3849 = vpack.i.b16 %v3625, %v3625
        %v3850 = vpack.i.b16 %v3626, %v3626
        %v3851 = vpack.i.b16 %v3627, %v3627
        %v3852 = vpack.i.b16 %v3628, %v3628
        %v3853 = vpack.i.b16 %v3629, %v3629
        %v3854 = vpack.i.b16 %v3630, %v3630
        %v3855 = vlaneseq
        %v3856 = vshrl.u32 %v3855, 7
        %v3857 = vsub.s32 0, %v3856
        %v3858 = vrot.slane %v3823, %v3857
        %v3859 = vlaneseq
        %v3860 = vshrl.u32 %v3859, 7
        %v3861 = vsub.s32 0, %v3860
        %v3862 = vrot.slane %v3824, %v3861
        %v3863 = vlaneseq
        %v3864 = vshrl.u32 %v3863, 7
        %v3865 = vsub.s32 0, %v3864
        %v3866 = vrot.slane %v3825, %v3865
        %v3867 = vlaneseq
        %v3868 = vshrl.u32 %v3867, 7
        %v3869 = vsub.s32 0, %v3868
        %v3870 = vrot.slane %v3826, %v3869
        %v3871 = vlaneseq
        %v3872 = vshrl.u32 %v3871, 7
        %v3873 = vsub.s32 0, %v3872
        %v3874 = vrot.slane %v3827, %v3873
        %v3875 = vlaneseq
        %v3876 = vshrl.u32 %v3875, 7
        %v3877 = vsub.s32 0, %v3876
        %v3878 = vrot.slane %v3828, %v3877
        %v3879 = vlaneseq
        %v3880 = vshrl.u32 %v3879, 7
        %v3881 = vsub.s32 0, %v3880
        %v3882 = vrot.slane %v3829, %v3881
        %v3883 = vlaneseq
        %v3884 = vshrl.u32 %v3883, 7
        %v3885 = vsub.s32 0, %v3884
        %v3886 = vrot.slane %v3830, %v3885
        %v3887 = vlaneseq
        %v3888 = vshrl.u32 %v3887, 7
        %v3889 = vsub.s32 0, %v3888
        %v3890 = vrot.slane %v3831, %v3889
        %v3891 = vlaneseq
        %v3892 = vshrl.u32 %v3891, 7
        %v3893 = vsub.s32 0, %v3892
        %v3894 = vrot.slane %v3832, %v3893
        %v3895 = vlaneseq
        %v3896 = vshrl.u32 %v3895, 7
        %v3897 = vsub.s32 0, %v3896
        %v3898 = vrot.slane %v3833, %v3897
        %v3899 = vlaneseq
        %v3900 = vshrl.u32 %v3899, 7
        %v3901 = vsub.s32 0, %v3900
        %v3902 = vrot.slane %v3834, %v3901
        %v3903 = vlaneseq
        %v3904 = vshrl.u32 %v3903, 7
        %v3905 = vsub.s32 0, %v3904
        %v3906 = vrot.slane %v3835, %v3905
        %v3907 = vlaneseq
        %v3908 = vshrl.u32 %v3907, 7
        %v3909 = vsub.s32 0, %v3908
        %v3910 = vrot.slane %v3836, %v3909
        %v3911 = vlaneseq
        %v3912 = vshrl.u32 %v3911, 7
        %v3913 = vsub.s32 0, %v3912
        %v3914 = vrot.slane %v3837, %v3913
        %v3915 = vlaneseq
        %v3916 = vshrl.u32 %v3915, 7
        %v3917 = vsub.s32 0, %v3916
        %v3918 = vrot.slane %v3838, %v3917
        %v3919 = vlaneseq
        %v3920 = vshrl.u32 %v3919, 7
        %v3921 = vsub.s32 0, %v3920
        %v3922 = vrot.slane %v3839, %v3921
        %v3923 = vlaneseq
        %v3924 = vshrl.u32 %v3923, 7
        %v3925 = vsub.s32 0, %v3924
        %v3926 = vrot.slane %v3840, %v3925
        %v3927 = vlaneseq
        %v3928 = vshrl.u32 %v3927, 7
        %v3929 = vsub.s32 0, %v3928
        %v3930 = vrot.slane %v3841, %v3929
        %v3931 = vlaneseq
        %v3932 = vshrl.u32 %v3931, 7
        %v3933 = vsub.s32 0, %v3932
        %v3934 = vrot.slane %v3842, %v3933
        %v3935 = vlaneseq
        %v3936 = vshrl.u32 %v3935, 7
        %v3937 = vsub.s32 0, %v3936
        %v3938 = vrot.slane %v3843, %v3937
        %v3939 = vlaneseq
        %v3940 = vshrl.u32 %v3939, 7
        %v3941 = vsub.s32 0, %v3940
        %v3942 = vrot.slane %v3844, %v3941
        %v3943 = vlaneseq
        %v3944 = vshrl.u32 %v3943, 7
        %v3945 = vsub.s32 0, %v3944
        %v3946 = vrot.slane %v3845, %v3945
        %v3947 = vlaneseq
        %v3948 = vshrl.u32 %v3947, 7
        %v3949 = vsub.s32 0, %v3948
        %v3950 = vrot.slane %v3846, %v3949
        %v3951 = vlaneseq
        %v3952 = vshrl.u32 %v3951, 7
        %v3953 = vsub.s32 0, %v3952
        %v3954 = vrot.slane %v3847, %v3953
        %v3955 = vlaneseq
        %v3956 = vshrl.u32 %v3955, 7
        %v3957 = vsub.s32 0, %v3956
        %v3958 = vrot.slane %v3848, %v3957
        %v3959 = vlaneseq
        %v3960 = vshrl.u32 %v3959, 7
        %v3961 = vsub.s32 0, %v3960
        %v3962 = vrot.slane %v3849, %v3961
        %v3963 = vlaneseq
        %v3964 = vshrl.u32 %v3963, 7
        %v3965 = vsub.s32 0, %v3964
        %v3966 = vrot.slane %v3850, %v3965
        %v3967 = vlaneseq
        %v3968 = vshrl.u32 %v3967, 7
        %v3969 = vsub.s32 0, %v3968
        %v3970 = vrot.slane %v3851, %v3969
        %v3971 = vlaneseq
        %v3972 = vshrl.u32 %v3971, 7
        %v3973 = vsub.s32 0, %v3972
        %v3974 = vrot.slane %v3852, %v3973
        %v3975 = vlaneseq
        %v3976 = vshrl.u32 %v3975, 7
        %v3977 = vsub.s32 0, %v3976
        %v3978 = vrot.slane %v3853, %v3977
        %v3979 = vlaneseq
        %v3980 = vshrl.u32 %v3979, 7
        %v3981 = vsub.s32 0, %v3980
        %v3982 = vrot.slane %v3854, %v3981
        %vm4015 = vcmask 1040384
        %vm4016 = vsmask.f32 256
        %vm4017 = vmand %vm4015, %vm4016
        %v4018 = vsel %vm4017, %v3666, %v3858
        %v4019 = vsel %vm4017, %v3670, %v3862
        %v4020 = vsel %vm4017, %v3674, %v3866
        %v4021 = vsel %vm4017, %v3678, %v3870
        %v4022 = vsel %vm4017, %v3682, %v3874
        %v4023 = vsel %vm4017, %v3686, %v3878
        %v4024 = vsel %vm4017, %v3690, %v3882
        %v4025 = vsel %vm4017, %v3694, %v3886
        %v4026 = vsel %vm4017, %v3698, %v3890
        %v4027 = vsel %vm4017, %v3702, %v3894
        %v4028 = vsel %vm4017, %v3706, %v3898
        %v4029 = vsel %vm4017, %v3710, %v3902
        %v4030 = vsel %vm4017, %v3714, %v3906
        %v4031 = vsel %vm4017, %v3718, %v3910
        %v4032 = vsel %vm4017, %v3722, %v3914
        %v4033 = vsel %vm4017, %v3726, %v3918
        %v4034 = vsel %vm4017, %v3730, %v3922
        %v4035 = vsel %vm4017, %v3734, %v3926
        %v4036 = vsel %vm4017, %v3738, %v3930
        %v4037 = vsel %vm4017, %v3742, %v3934
        %v4038 = vsel %vm4017, %v3746, %v3938
        %v4039 = vsel %vm4017, %v3750, %v3942
        %v4040 = vsel %vm4017, %v3754, %v3946
        %v4041 = vsel %vm4017, %v3758, %v3950
        %v4042 = vsel %vm4017, %v3762, %v3954
        %v4043 = vsel %vm4017, %v3766, %v3958
        %v4044 = vsel %vm4017, %v3770, %v3962
        %v4045 = vsel %vm4017, %v3774, %v3966
        %v4046 = vsel %vm4017, %v3778, %v3970
        %v4047 = vsel %vm4017, %v3782, %v3974
        %v4048 = vsel %vm4017, %v3786, %v3978
        %v4049 = vsel %vm4017, %v3790, %v3982
        %v4052 = vcombine.high %v3359, %v3359
        %v4054 = vunpack.c.l.s4 1966171168
        %v4055 = vunpack.c.0.s8 %v4054
        %v4056 = vlaneseq
        %v4057 = vshrl.u32 %v4056, 7
        %v4058 = vsub.s32 %v4055, %v4057
        %v4059 = vrot.slane %v3359, %v4058
        %v4061 = vunpack.c.l.s4 1966171168
        %v4062 = vunpack.c.0.s8 %v4061
        %v4063 = vlaneseq
        %v4064 = vshrl.u32 %v4063, 7
        %v4065 = vsub.s32 %v4062, %v4064
        %v4066 = vrot.slane %v4052, %v4065
        %v4067 = vcombine.high %v4059, %v4059
        %v4068 = vcombine.high %v4066, %v4066
        %v4070 = vunpack.c.l.s4 1966171168
        %v4071 = vunpack.c.0.s8 %v4070
        %v4072 = vlaneseq
        %v4073 = vshrl.u32 %v4072, 7
        %v4074 = vsub.s32 %v4071, %v4073
        %v4075 = vrot.slane %v4059, %v4074
        %v4077 = vunpack.c.l.s4 1966171168
        %v4078 = vunpack.c.0.s8 %v4077
        %v4079 = vlaneseq
        %v4080 = vshrl.u32 %v4079, 7
        %v4081 = vsub.s32 %v4078, %v4080
        %v4082 = vrot.slane %v4066, %v4081
        %v4084 = vunpack.c.l.s4 1966171168
        %v4085 = vunpack.c.0.s8 %v4084
        %v4086 = vlaneseq
        %v4087 = vshrl.u32 %v4086, 7
        %v4088 = vsub.s32 %v4085, %v4087
        %v4089 = vrot.slane %v4067, %v4088
        %v4091 = vunpack.c.l.s4 1966171168
        %v4092 = vunpack.c.0.s8 %v4091
        %v4093 = vlaneseq
        %v4094 = vshrl.u32 %v4093, 7
        %v4095 = vsub.s32 %v4092, %v4094
        %v4096 = vrot.slane %v4068, %v4095
        %v4097 = vcombine.high %v4075, %v4075
        %v4098 = vcombine.high %v4082, %v4082
        %v4099 = vcombine.high %v4089, %v4089
        %v4100 = vcombine.high %v4096, %v4096
        %v4101 = vcombine.high %v3360, %v3360
        %v4103 = vunpack.c.l.s4 1966171168
        %v4104 = vunpack.c.0.s8 %v4103
        %v4105 = vlaneseq
        %v4106 = vshrl.u32 %v4105, 7
        %v4107 = vsub.s32 %v4104, %v4106
        %v4108 = vrot.slane %v3360, %v4107
        %v4110 = vunpack.c.l.s4 1966171168
        %v4111 = vunpack.c.0.s8 %v4110
        %v4112 = vlaneseq
        %v4113 = vshrl.u32 %v4112, 7
        %v4114 = vsub.s32 %v4111, %v4113
        %v4115 = vrot.slane %v4101, %v4114
        %v4116 = vcombine.high %v4108, %v4108
        %v4117 = vcombine.high %v4115, %v4115
        %v4119 = vunpack.c.l.s4 1966171168
        %v4120 = vunpack.c.0.s8 %v4119
        %v4121 = vlaneseq
        %v4122 = vshrl.u32 %v4121, 7
        %v4123 = vsub.s32 %v4120, %v4122
        %v4124 = vrot.slane %v4108, %v4123
        %v4126 = vunpack.c.l.s4 1966171168
        %v4127 = vunpack.c.0.s8 %v4126
        %v4128 = vlaneseq
        %v4129 = vshrl.u32 %v4128, 7
        %v4130 = vsub.s32 %v4127, %v4129
        %v4131 = vrot.slane %v4115, %v4130
        %v4133 = vunpack.c.l.s4 1966171168
        %v4134 = vunpack.c.0.s8 %v4133
        %v4135 = vlaneseq
        %v4136 = vshrl.u32 %v4135, 7
        %v4137 = vsub.s32 %v4134, %v4136
        %v4138 = vrot.slane %v4116, %v4137
        %v4140 = vunpack.c.l.s4 1966171168
        %v4141 = vunpack.c.0.s8 %v4140
        %v4142 = vlaneseq
        %v4143 = vshrl.u32 %v4142, 7
        %v4144 = vsub.s32 %v4141, %v4143
        %v4145 = vrot.slane %v4117, %v4144
        %v4146 = vcombine.high %v4124, %v4124
        %v4147 = vcombine.high %v4131, %v4131
        %v4148 = vcombine.high %v4138, %v4138
        %v4149 = vcombine.high %v4145, %v4145
        %v4150 = vunpack.i.l.s16 %v4075
        %v4151 = vunpack.i.h.s16 %v4075
        %v4152 = vunpack.i.l.s16 %v4089
        %v4153 = vunpack.i.h.s16 %v4089
        %v4154 = vunpack.i.l.s16 %v4097
        %v4155 = vunpack.i.h.s16 %v4097
        %v4156 = vunpack.i.l.s16 %v4099
        %v4157 = vunpack.i.h.s16 %v4099
        %v4158 = vunpack.i.l.s16 %v4082
        %v4159 = vunpack.i.h.s16 %v4082
        %v4160 = vunpack.i.l.s16 %v4096
        %v4161 = vunpack.i.h.s16 %v4096
        %v4162 = vunpack.i.l.s16 %v4098
        %v4163 = vunpack.i.h.s16 %v4098
        %v4164 = vunpack.i.l.s16 %v4100
        %v4165 = vunpack.i.h.s16 %v4100
        %v4166 = vunpack.i.l.s16 %v4124
        %v4167 = vunpack.i.h.s16 %v4124
        %v4168 = vunpack.i.l.s16 %v4138
        %v4169 = vunpack.i.h.s16 %v4138
        %v4170 = vunpack.i.l.s16 %v4146
        %v4171 = vunpack.i.h.s16 %v4146
        %v4172 = vunpack.i.l.s16 %v4148
        %v4173 = vunpack.i.h.s16 %v4148
        %v4174 = vunpack.i.l.s16 %v4131
        %v4175 = vunpack.i.h.s16 %v4131
        %v4176 = vunpack.i.l.s16 %v4145
        %v4177 = vunpack.i.h.s16 %v4145
        %v4178 = vunpack.i.l.s16 %v4147
        %v4179 = vunpack.i.h.s16 %v4147
        %v4180 = vunpack.i.l.s16 %v4149
        %v4181 = vunpack.i.h.s16 %v4149
        %v4184 = vcombine.high %v3365, %v3365
        %v4186 = vunpack.c.l.s4 1966171168
        %v4187 = vunpack.c.0.s8 %v4186
        %v4188 = vlaneseq
        %v4189 = vshrl.u32 %v4188, 7
        %v4190 = vsub.s32 %v4187, %v4189
        %v4191 = vrot.slane %v3365, %v4190
        %v4193 = vunpack.c.l.s4 1966171168
        %v4194 = vunpack.c.0.s8 %v4193
        %v4195 = vlaneseq
        %v4196 = vshrl.u32 %v4195, 7
        %v4197 = vsub.s32 %v4194, %v4196
        %v4198 = vrot.slane %v4184, %v4197
        %v4199 = vcombine.high %v4191, %v4191
        %v4200 = vcombine.high %v4198, %v4198
        %v4202 = vunpack.c.l.s4 1966171168
        %v4203 = vunpack.c.0.s8 %v4202
        %v4204 = vlaneseq
        %v4205 = vshrl.u32 %v4204, 7
        %v4206 = vsub.s32 %v4203, %v4205
        %v4207 = vrot.slane %v4191, %v4206
        %v4209 = vunpack.c.l.s4 1966171168
        %v4210 = vunpack.c.0.s8 %v4209
        %v4211 = vlaneseq
        %v4212 = vshrl.u32 %v4211, 7
        %v4213 = vsub.s32 %v4210, %v4212
        %v4214 = vrot.slane %v4198, %v4213
        %v4216 = vunpack.c.l.s4 1966171168
        %v4217 = vunpack.c.0.s8 %v4216
        %v4218 = vlaneseq
        %v4219 = vshrl.u32 %v4218, 7
        %v4220 = vsub.s32 %v4217, %v4219
        %v4221 = vrot.slane %v4199, %v4220
        %v4223 = vunpack.c.l.s4 1966171168
        %v4224 = vunpack.c.0.s8 %v4223
        %v4225 = vlaneseq
        %v4226 = vshrl.u32 %v4225, 7
        %v4227 = vsub.s32 %v4224, %v4226
        %v4228 = vrot.slane %v4200, %v4227
        %v4229 = vcombine.high %v4207, %v4207
        %v4230 = vcombine.high %v4214, %v4214
        %v4231 = vcombine.high %v4221, %v4221
        %v4232 = vcombine.high %v4228, %v4228
        %v4233 = vcombine.high %v3366, %v3366
        %v4235 = vunpack.c.l.s4 1966171168
        %v4236 = vunpack.c.0.s8 %v4235
        %v4237 = vlaneseq
        %v4238 = vshrl.u32 %v4237, 7
        %v4239 = vsub.s32 %v4236, %v4238
        %v4240 = vrot.slane %v3366, %v4239
        %v4242 = vunpack.c.l.s4 1966171168
        %v4243 = vunpack.c.0.s8 %v4242
        %v4244 = vlaneseq
        %v4245 = vshrl.u32 %v4244, 7
        %v4246 = vsub.s32 %v4243, %v4245
        %v4247 = vrot.slane %v4233, %v4246
        %v4248 = vcombine.high %v4240, %v4240
        %v4249 = vcombine.high %v4247, %v4247
        %v4251 = vunpack.c.l.s4 1966171168
        %v4252 = vunpack.c.0.s8 %v4251
        %v4253 = vlaneseq
        %v4254 = vshrl.u32 %v4253, 7
        %v4255 = vsub.s32 %v4252, %v4254
        %v4256 = vrot.slane %v4240, %v4255
        %v4258 = vunpack.c.l.s4 1966171168
        %v4259 = vunpack.c.0.s8 %v4258
        %v4260 = vlaneseq
        %v4261 = vshrl.u32 %v4260, 7
        %v4262 = vsub.s32 %v4259, %v4261
        %v4263 = vrot.slane %v4247, %v4262
        %v4265 = vunpack.c.l.s4 1966171168
        %v4266 = vunpack.c.0.s8 %v4265
        %v4267 = vlaneseq
        %v4268 = vshrl.u32 %v4267, 7
        %v4269 = vsub.s32 %v4266, %v4268
        %v4270 = vrot.slane %v4248, %v4269
        %v4272 = vunpack.c.l.s4 1966171168
        %v4273 = vunpack.c.0.s8 %v4272
        %v4274 = vlaneseq
        %v4275 = vshrl.u32 %v4274, 7
        %v4276 = vsub.s32 %v4273, %v4275
        %v4277 = vrot.slane %v4249, %v4276
        %v4278 = vcombine.high %v4256, %v4256
        %v4279 = vcombine.high %v4263, %v4263
        %v4280 = vcombine.high %v4270, %v4270
        %v4281 = vcombine.high %v4277, %v4277
        %v4282 = vunpack.i.l.s16 %v4207
        %v4283 = vunpack.i.h.s16 %v4207
        %v4284 = vunpack.i.l.s16 %v4221
        %v4285 = vunpack.i.h.s16 %v4221
        %v4286 = vunpack.i.l.s16 %v4229
        %v4287 = vunpack.i.h.s16 %v4229
        %v4288 = vunpack.i.l.s16 %v4231
        %v4289 = vunpack.i.h.s16 %v4231
        %v4290 = vunpack.i.l.s16 %v4214
        %v4291 = vunpack.i.h.s16 %v4214
        %v4292 = vunpack.i.l.s16 %v4228
        %v4293 = vunpack.i.h.s16 %v4228
        %v4294 = vunpack.i.l.s16 %v4230
        %v4295 = vunpack.i.h.s16 %v4230
        %v4296 = vunpack.i.l.s16 %v4232
        %v4297 = vunpack.i.h.s16 %v4232
        %v4298 = vunpack.i.l.s16 %v4256
        %v4299 = vunpack.i.h.s16 %v4256
        %v4300 = vunpack.i.l.s16 %v4270
        %v4301 = vunpack.i.h.s16 %v4270
        %v4302 = vunpack.i.l.s16 %v4278
        %v4303 = vunpack.i.h.s16 %v4278
        %v4304 = vunpack.i.l.s16 %v4280
        %v4305 = vunpack.i.h.s16 %v4280
        %v4306 = vunpack.i.l.s16 %v4263
        %v4307 = vunpack.i.h.s16 %v4263
        %v4308 = vunpack.i.l.s16 %v4277
        %v4309 = vunpack.i.h.s16 %v4277
        %v4310 = vunpack.i.l.s16 %v4279
        %v4311 = vunpack.i.h.s16 %v4279
        %v4312 = vunpack.i.l.s16 %v4281
        %v4313 = vunpack.i.h.s16 %v4281
        %v4314 = vpack.i.b16 %v4150, %v4150
        %v4315 = vpack.i.b16 %v4151, %v4151
        %v4316 = vpack.i.b16 %v4152, %v4152
        %v4317 = vpack.i.b16 %v4153, %v4153
        %v4318 = vpack.i.b16 %v4154, %v4154
        %v4319 = vpack.i.b16 %v4155, %v4155
        %v4320 = vpack.i.b16 %v4156, %v4156
        %v4321 = vpack.i.b16 %v4157, %v4157
        %v4322 = vpack.i.b16 %v4158, %v4158
        %v4323 = vpack.i.b16 %v4159, %v4159
        %v4324 = vpack.i.b16 %v4160, %v4160
        %v4325 = vpack.i.b16 %v4161, %v4161
        %v4326 = vpack.i.b16 %v4162, %v4162
        %v4327 = vpack.i.b16 %v4163, %v4163
        %v4328 = vpack.i.b16 %v4164, %v4164
        %v4329 = vpack.i.b16 %v4165, %v4165
        %v4330 = vpack.i.b16 %v4166, %v4166
        %v4331 = vpack.i.b16 %v4167, %v4167
        %v4332 = vpack.i.b16 %v4168, %v4168
        %v4333 = vpack.i.b16 %v4169, %v4169
        %v4334 = vpack.i.b16 %v4170, %v4170
        %v4335 = vpack.i.b16 %v4171, %v4171
        %v4336 = vpack.i.b16 %v4172, %v4172
        %v4337 = vpack.i.b16 %v4173, %v4173
        %v4338 = vpack.i.b16 %v4174, %v4174
        %v4339 = vpack.i.b16 %v4175, %v4175
        %v4340 = vpack.i.b16 %v4176, %v4176
        %v4341 = vpack.i.b16 %v4177, %v4177
        %v4342 = vpack.i.b16 %v4178, %v4178
        %v4343 = vpack.i.b16 %v4179, %v4179
        %v4344 = vpack.i.b16 %v4180, %v4180
        %v4345 = vpack.i.b16 %v4181, %v4181
        %v4346 = vlaneseq
        %v4347 = vshrl.u32 %v4346, 7
        %v4348 = vsub.s32 0, %v4347
        %v4349 = vrot.slane %v4314, %v4348
        %v4350 = vlaneseq
        %v4351 = vshrl.u32 %v4350, 7
        %v4352 = vsub.s32 0, %v4351
        %v4353 = vrot.slane %v4315, %v4352
        %v4354 = vlaneseq
        %v4355 = vshrl.u32 %v4354, 7
        %v4356 = vsub.s32 0, %v4355
        %v4357 = vrot.slane %v4316, %v4356
        %v4358 = vlaneseq
        %v4359 = vshrl.u32 %v4358, 7
        %v4360 = vsub.s32 0, %v4359
        %v4361 = vrot.slane %v4317, %v4360
        %v4362 = vlaneseq
        %v4363 = vshrl.u32 %v4362, 7
        %v4364 = vsub.s32 0, %v4363
        %v4365 = vrot.slane %v4318, %v4364
        %v4366 = vlaneseq
        %v4367 = vshrl.u32 %v4366, 7
        %v4368 = vsub.s32 0, %v4367
        %v4369 = vrot.slane %v4319, %v4368
        %v4370 = vlaneseq
        %v4371 = vshrl.u32 %v4370, 7
        %v4372 = vsub.s32 0, %v4371
        %v4373 = vrot.slane %v4320, %v4372
        %v4374 = vlaneseq
        %v4375 = vshrl.u32 %v4374, 7
        %v4376 = vsub.s32 0, %v4375
        %v4377 = vrot.slane %v4321, %v4376
        %v4378 = vlaneseq
        %v4379 = vshrl.u32 %v4378, 7
        %v4380 = vsub.s32 0, %v4379
        %v4381 = vrot.slane %v4322, %v4380
        %v4382 = vlaneseq
        %v4383 = vshrl.u32 %v4382, 7
        %v4384 = vsub.s32 0, %v4383
        %v4385 = vrot.slane %v4323, %v4384
        %v4386 = vlaneseq
        %v4387 = vshrl.u32 %v4386, 7
        %v4388 = vsub.s32 0, %v4387
        %v4389 = vrot.slane %v4324, %v4388
        %v4390 = vlaneseq
        %v4391 = vshrl.u32 %v4390, 7
        %v4392 = vsub.s32 0, %v4391
        %v4393 = vrot.slane %v4325, %v4392
        %v4394 = vlaneseq
        %v4395 = vshrl.u32 %v4394, 7
        %v4396 = vsub.s32 0, %v4395
        %v4397 = vrot.slane %v4326, %v4396
        %v4398 = vlaneseq
        %v4399 = vshrl.u32 %v4398, 7
        %v4400 = vsub.s32 0, %v4399
        %v4401 = vrot.slane %v4327, %v4400
        %v4402 = vlaneseq
        %v4403 = vshrl.u32 %v4402, 7
        %v4404 = vsub.s32 0, %v4403
        %v4405 = vrot.slane %v4328, %v4404
        %v4406 = vlaneseq
        %v4407 = vshrl.u32 %v4406, 7
        %v4408 = vsub.s32 0, %v4407
        %v4409 = vrot.slane %v4329, %v4408
        %v4410 = vlaneseq
        %v4411 = vshrl.u32 %v4410, 7
        %v4412 = vsub.s32 0, %v4411
        %v4413 = vrot.slane %v4330, %v4412
        %v4414 = vlaneseq
        %v4415 = vshrl.u32 %v4414, 7
        %v4416 = vsub.s32 0, %v4415
        %v4417 = vrot.slane %v4331, %v4416
        %v4418 = vlaneseq
        %v4419 = vshrl.u32 %v4418, 7
        %v4420 = vsub.s32 0, %v4419
        %v4421 = vrot.slane %v4332, %v4420
        %v4422 = vlaneseq
        %v4423 = vshrl.u32 %v4422, 7
        %v4424 = vsub.s32 0, %v4423
        %v4425 = vrot.slane %v4333, %v4424
        %v4426 = vlaneseq
        %v4427 = vshrl.u32 %v4426, 7
        %v4428 = vsub.s32 0, %v4427
        %v4429 = vrot.slane %v4334, %v4428
        %v4430 = vlaneseq
        %v4431 = vshrl.u32 %v4430, 7
        %v4432 = vsub.s32 0, %v4431
        %v4433 = vrot.slane %v4335, %v4432
        %v4434 = vlaneseq
        %v4435 = vshrl.u32 %v4434, 7
        %v4436 = vsub.s32 0, %v4435
        %v4437 = vrot.slane %v4336, %v4436
        %v4438 = vlaneseq
        %v4439 = vshrl.u32 %v4438, 7
        %v4440 = vsub.s32 0, %v4439
        %v4441 = vrot.slane %v4337, %v4440
        %v4442 = vlaneseq
        %v4443 = vshrl.u32 %v4442, 7
        %v4444 = vsub.s32 0, %v4443
        %v4445 = vrot.slane %v4338, %v4444
        %v4446 = vlaneseq
        %v4447 = vshrl.u32 %v4446, 7
        %v4448 = vsub.s32 0, %v4447
        %v4449 = vrot.slane %v4339, %v4448
        %v4450 = vlaneseq
        %v4451 = vshrl.u32 %v4450, 7
        %v4452 = vsub.s32 0, %v4451
        %v4453 = vrot.slane %v4340, %v4452
        %v4454 = vlaneseq
        %v4455 = vshrl.u32 %v4454, 7
        %v4456 = vsub.s32 0, %v4455
        %v4457 = vrot.slane %v4341, %v4456
        %v4458 = vlaneseq
        %v4459 = vshrl.u32 %v4458, 7
        %v4460 = vsub.s32 0, %v4459
        %v4461 = vrot.slane %v4342, %v4460
        %v4462 = vlaneseq
        %v4463 = vshrl.u32 %v4462, 7
        %v4464 = vsub.s32 0, %v4463
        %v4465 = vrot.slane %v4343, %v4464
        %v4466 = vlaneseq
        %v4467 = vshrl.u32 %v4466, 7
        %v4468 = vsub.s32 0, %v4467
        %v4469 = vrot.slane %v4344, %v4468
        %v4470 = vlaneseq
        %v4471 = vshrl.u32 %v4470, 7
        %v4472 = vsub.s32 0, %v4471
        %v4473 = vrot.slane %v4345, %v4472
        %v4506 = vpack.i.b16 %v4282, %v4282
        %v4507 = vpack.i.b16 %v4283, %v4283
        %v4508 = vpack.i.b16 %v4284, %v4284
        %v4509 = vpack.i.b16 %v4285, %v4285
        %v4510 = vpack.i.b16 %v4286, %v4286
        %v4511 = vpack.i.b16 %v4287, %v4287
        %v4512 = vpack.i.b16 %v4288, %v4288
        %v4513 = vpack.i.b16 %v4289, %v4289
        %v4514 = vpack.i.b16 %v4290, %v4290
        %v4515 = vpack.i.b16 %v4291, %v4291
        %v4516 = vpack.i.b16 %v4292, %v4292
        %v4517 = vpack.i.b16 %v4293, %v4293
        %v4518 = vpack.i.b16 %v4294, %v4294
        %v4519 = vpack.i.b16 %v4295, %v4295
        %v4520 = vpack.i.b16 %v4296, %v4296
        %v4521 = vpack.i.b16 %v4297, %v4297
        %v4522 = vpack.i.b16 %v4298, %v4298
        %v4523 = vpack.i.b16 %v4299, %v4299
        %v4524 = vpack.i.b16 %v4300, %v4300
        %v4525 = vpack.i.b16 %v4301, %v4301
        %v4526 = vpack.i.b16 %v4302, %v4302
        %v4527 = vpack.i.b16 %v4303, %v4303
        %v4528 = vpack.i.b16 %v4304, %v4304
        %v4529 = vpack.i.b16 %v4305, %v4305
        %v4530 = vpack.i.b16 %v4306, %v4306
        %v4531 = vpack.i.b16 %v4307, %v4307
        %v4532 = vpack.i.b16 %v4308, %v4308
        %v4533 = vpack.i.b16 %v4309, %v4309
        %v4534 = vpack.i.b16 %v4310, %v4310
        %v4535 = vpack.i.b16 %v4311, %v4311
        %v4536 = vpack.i.b16 %v4312, %v4312
        %v4537 = vpack.i.b16 %v4313, %v4313
        %v4538 = vlaneseq
        %v4539 = vshrl.u32 %v4538, 7
        %v4540 = vsub.s32 0, %v4539
        %v4541 = vrot.slane %v4506, %v4540
        %v4542 = vlaneseq
        %v4543 = vshrl.u32 %v4542, 7
        %v4544 = vsub.s32 0, %v4543
        %v4545 = vrot.slane %v4507, %v4544
        %v4546 = vlaneseq
        %v4547 = vshrl.u32 %v4546, 7
        %v4548 = vsub.s32 0, %v4547
        %v4549 = vrot.slane %v4508, %v4548
        %v4550 = vlaneseq
        %v4551 = vshrl.u32 %v4550, 7
        %v4552 = vsub.s32 0, %v4551
        %v4553 = vrot.slane %v4509, %v4552
        %v4554 = vlaneseq
        %v4555 = vshrl.u32 %v4554, 7
        %v4556 = vsub.s32 0, %v4555
        %v4557 = vrot.slane %v4510, %v4556
        %v4558 = vlaneseq
        %v4559 = vshrl.u32 %v4558, 7
        %v4560 = vsub.s32 0, %v4559
        %v4561 = vrot.slane %v4511, %v4560
        %v4562 = vlaneseq
        %v4563 = vshrl.u32 %v4562, 7
        %v4564 = vsub.s32 0, %v4563
        %v4565 = vrot.slane %v4512, %v4564
        %v4566 = vlaneseq
        %v4567 = vshrl.u32 %v4566, 7
        %v4568 = vsub.s32 0, %v4567
        %v4569 = vrot.slane %v4513, %v4568
        %v4570 = vlaneseq
        %v4571 = vshrl.u32 %v4570, 7
        %v4572 = vsub.s32 0, %v4571
        %v4573 = vrot.slane %v4514, %v4572
        %v4574 = vlaneseq
        %v4575 = vshrl.u32 %v4574, 7
        %v4576 = vsub.s32 0, %v4575
        %v4577 = vrot.slane %v4515, %v4576
        %v4578 = vlaneseq
        %v4579 = vshrl.u32 %v4578, 7
        %v4580 = vsub.s32 0, %v4579
        %v4581 = vrot.slane %v4516, %v4580
        %v4582 = vlaneseq
        %v4583 = vshrl.u32 %v4582, 7
        %v4584 = vsub.s32 0, %v4583
        %v4585 = vrot.slane %v4517, %v4584
        %v4586 = vlaneseq
        %v4587 = vshrl.u32 %v4586, 7
        %v4588 = vsub.s32 0, %v4587
        %v4589 = vrot.slane %v4518, %v4588
        %v4590 = vlaneseq
        %v4591 = vshrl.u32 %v4590, 7
        %v4592 = vsub.s32 0, %v4591
        %v4593 = vrot.slane %v4519, %v4592
        %v4594 = vlaneseq
        %v4595 = vshrl.u32 %v4594, 7
        %v4596 = vsub.s32 0, %v4595
        %v4597 = vrot.slane %v4520, %v4596
        %v4598 = vlaneseq
        %v4599 = vshrl.u32 %v4598, 7
        %v4600 = vsub.s32 0, %v4599
        %v4601 = vrot.slane %v4521, %v4600
        %v4602 = vlaneseq
        %v4603 = vshrl.u32 %v4602, 7
        %v4604 = vsub.s32 0, %v4603
        %v4605 = vrot.slane %v4522, %v4604
        %v4606 = vlaneseq
        %v4607 = vshrl.u32 %v4606, 7
        %v4608 = vsub.s32 0, %v4607
        %v4609 = vrot.slane %v4523, %v4608
        %v4610 = vlaneseq
        %v4611 = vshrl.u32 %v4610, 7
        %v4612 = vsub.s32 0, %v4611
        %v4613 = vrot.slane %v4524, %v4612
        %v4614 = vlaneseq
        %v4615 = vshrl.u32 %v4614, 7
        %v4616 = vsub.s32 0, %v4615
        %v4617 = vrot.slane %v4525, %v4616
        %v4618 = vlaneseq
        %v4619 = vshrl.u32 %v4618, 7
        %v4620 = vsub.s32 0, %v4619
        %v4621 = vrot.slane %v4526, %v4620
        %v4622 = vlaneseq
        %v4623 = vshrl.u32 %v4622, 7
        %v4624 = vsub.s32 0, %v4623
        %v4625 = vrot.slane %v4527, %v4624
        %v4626 = vlaneseq
        %v4627 = vshrl.u32 %v4626, 7
        %v4628 = vsub.s32 0, %v4627
        %v4629 = vrot.slane %v4528, %v4628
        %v4630 = vlaneseq
        %v4631 = vshrl.u32 %v4630, 7
        %v4632 = vsub.s32 0, %v4631
        %v4633 = vrot.slane %v4529, %v4632
        %v4634 = vlaneseq
        %v4635 = vshrl.u32 %v4634, 7
        %v4636 = vsub.s32 0, %v4635
        %v4637 = vrot.slane %v4530, %v4636
        %v4638 = vlaneseq
        %v4639 = vshrl.u32 %v4638, 7
        %v4640 = vsub.s32 0, %v4639
        %v4641 = vrot.slane %v4531, %v4640
        %v4642 = vlaneseq
        %v4643 = vshrl.u32 %v4642, 7
        %v4644 = vsub.s32 0, %v4643
        %v4645 = vrot.slane %v4532, %v4644
        %v4646 = vlaneseq
        %v4647 = vshrl.u32 %v4646, 7
        %v4648 = vsub.s32 0, %v4647
        %v4649 = vrot.slane %v4533, %v4648
        %v4650 = vlaneseq
        %v4651 = vshrl.u32 %v4650, 7
        %v4652 = vsub.s32 0, %v4651
        %v4653 = vrot.slane %v4534, %v4652
        %v4654 = vlaneseq
        %v4655 = vshrl.u32 %v4654, 7
        %v4656 = vsub.s32 0, %v4655
        %v4657 = vrot.slane %v4535, %v4656
        %v4658 = vlaneseq
        %v4659 = vshrl.u32 %v4658, 7
        %v4660 = vsub.s32 0, %v4659
        %v4661 = vrot.slane %v4536, %v4660
        %v4662 = vlaneseq
        %v4663 = vshrl.u32 %v4662, 7
        %v4664 = vsub.s32 0, %v4663
        %v4665 = vrot.slane %v4537, %v4664
        %v4698 = vsel %vm4017, %v4349, %v4541
        %v4699 = vsel %vm4017, %v4353, %v4545
        %v4700 = vsel %vm4017, %v4357, %v4549
        %v4701 = vsel %vm4017, %v4361, %v4553
        %v4702 = vsel %vm4017, %v4365, %v4557
        %v4703 = vsel %vm4017, %v4369, %v4561
        %v4704 = vsel %vm4017, %v4373, %v4565
        %v4705 = vsel %vm4017, %v4377, %v4569
        %v4706 = vsel %vm4017, %v4381, %v4573
        %v4707 = vsel %vm4017, %v4385, %v4577
        %v4708 = vsel %vm4017, %v4389, %v4581
        %v4709 = vsel %vm4017, %v4393, %v4585
        %v4710 = vsel %vm4017, %v4397, %v4589
        %v4711 = vsel %vm4017, %v4401, %v4593
        %v4712 = vsel %vm4017, %v4405, %v4597
        %v4713 = vsel %vm4017, %v4409, %v4601
        %v4714 = vsel %vm4017, %v4413, %v4605
        %v4715 = vsel %vm4017, %v4417, %v4609
        %v4716 = vsel %vm4017, %v4421, %v4613
        %v4717 = vsel %vm4017, %v4425, %v4617
        %v4718 = vsel %vm4017, %v4429, %v4621
        %v4719 = vsel %vm4017, %v4433, %v4625
        %v4720 = vsel %vm4017, %v4437, %v4629
        %v4721 = vsel %vm4017, %v4441, %v4633
        %v4722 = vsel %vm4017, %v4445, %v4637
        %v4723 = vsel %vm4017, %v4449, %v4641
        %v4724 = vsel %vm4017, %v4453, %v4645
        %v4725 = vsel %vm4017, %v4457, %v4649
        %v4726 = vsel %vm4017, %v4461, %v4653
        %v4727 = vsel %vm4017, %v4465, %v4657
        %v4728 = vsel %vm4017, %v4469, %v4661
        %v4729 = vsel %vm4017, %v4473, %v4665
        %v4794 = vcombine.low %v4018, %v4020
        %v4795 = vcombine.low %v4019, %v4021
        %v4797 = vunpack.c.l.s4 1935823168
        %v4798 = vunpack.c.0.s8 %v4797
        %v4799 = vlaneseq
        %v4800 = vshrl.u32 %v4799, 7
        %v4801 = vsub.s32 %v4798, %v4800
        %v4802 = vrot.slane %v4794, %v4801
        %v4804 = vunpack.c.l.s4 1935823168
        %v4805 = vunpack.c.0.s8 %v4804
        %v4806 = vlaneseq
        %v4807 = vshrl.u32 %v4806, 7
        %v4808 = vsub.s32 %v4805, %v4807
        %v4809 = vrot.slane %v4795, %v4808
        %v4810 = vcombine.low %v4802, %v4809
        %v4812 = vunpack.c.l.s4 1935823168
        %v4813 = vunpack.c.0.s8 %v4812
        %v4814 = vlaneseq
        %v4815 = vshrl.u32 %v4814, 7
        %v4816 = vsub.s32 %v4813, %v4815
        %v4817 = vrot.slane %v4810, %v4816
        %v4818 = vcombine.low %v4022, %v4024
        %v4819 = vcombine.low %v4023, %v4025
        %v4821 = vunpack.c.l.s4 1935823168
        %v4822 = vunpack.c.0.s8 %v4821
        %v4823 = vlaneseq
        %v4824 = vshrl.u32 %v4823, 7
        %v4825 = vsub.s32 %v4822, %v4824
        %v4826 = vrot.slane %v4818, %v4825
        %v4828 = vunpack.c.l.s4 1935823168
        %v4829 = vunpack.c.0.s8 %v4828
        %v4830 = vlaneseq
        %v4831 = vshrl.u32 %v4830, 7
        %v4832 = vsub.s32 %v4829, %v4831
        %v4833 = vrot.slane %v4819, %v4832
        %v4834 = vcombine.low %v4826, %v4833
        %v4836 = vunpack.c.l.s4 1935823168
        %v4837 = vunpack.c.0.s8 %v4836
        %v4838 = vlaneseq
        %v4839 = vshrl.u32 %v4838, 7
        %v4840 = vsub.s32 %v4837, %v4839
        %v4841 = vrot.slane %v4834, %v4840
        %v4842 = vcombine.low %v4698, %v4700
        %v4843 = vcombine.low %v4699, %v4701
        %v4845 = vunpack.c.l.s4 1935823168
        %v4846 = vunpack.c.0.s8 %v4845
        %v4847 = vlaneseq
        %v4848 = vshrl.u32 %v4847, 7
        %v4849 = vsub.s32 %v4846, %v4848
        %v4850 = vrot.slane %v4842, %v4849
        %v4852 = vunpack.c.l.s4 1935823168
        %v4853 = vunpack.c.0.s8 %v4852
        %v4854 = vlaneseq
        %v4855 = vshrl.u32 %v4854, 7
        %v4856 = vsub.s32 %v4853, %v4855
        %v4857 = vrot.slane %v4843, %v4856
        %v4858 = vcombine.low %v4850, %v4857
        %v4860 = vunpack.c.l.s4 1935823168
        %v4861 = vunpack.c.0.s8 %v4860
        %v4862 = vlaneseq
        %v4863 = vshrl.u32 %v4862, 7
        %v4864 = vsub.s32 %v4861, %v4863
        %v4865 = vrot.slane %v4858, %v4864
        %v4866 = vcombine.low %v4702, %v4704
        %v4867 = vcombine.low %v4703, %v4705
        %v4869 = vunpack.c.l.s4 1935823168
        %v4870 = vunpack.c.0.s8 %v4869
        %v4871 = vlaneseq
        %v4872 = vshrl.u32 %v4871, 7
        %v4873 = vsub.s32 %v4870, %v4872
        %v4874 = vrot.slane %v4866, %v4873
        %v4876 = vunpack.c.l.s4 1935823168
        %v4877 = vunpack.c.0.s8 %v4876
        %v4878 = vlaneseq
        %v4879 = vshrl.u32 %v4878, 7
        %v4880 = vsub.s32 %v4877, %v4879
        %v4881 = vrot.slane %v4867, %v4880
        %v4882 = vcombine.low %v4874, %v4881
        %v4884 = vunpack.c.l.s4 1935823168
        %v4885 = vunpack.c.0.s8 %v4884
        %v4886 = vlaneseq
        %v4887 = vshrl.u32 %v4886, 7
        %v4888 = vsub.s32 %v4885, %v4887
        %v4889 = vrot.slane %v4882, %v4888
        %v4890 = vcombine.low %v4026, %v4028
        %v4891 = vcombine.low %v4027, %v4029
        %v4893 = vunpack.c.l.s4 1935823168
        %v4894 = vunpack.c.0.s8 %v4893
        %v4895 = vlaneseq
        %v4896 = vshrl.u32 %v4895, 7
        %v4897 = vsub.s32 %v4894, %v4896
        %v4898 = vrot.slane %v4890, %v4897
        %v4900 = vunpack.c.l.s4 1935823168
        %v4901 = vunpack.c.0.s8 %v4900
        %v4902 = vlaneseq
        %v4903 = vshrl.u32 %v4902, 7
        %v4904 = vsub.s32 %v4901, %v4903
        %v4905 = vrot.slane %v4891, %v4904
        %v4906 = vcombine.low %v4898, %v4905
        %v4908 = vunpack.c.l.s4 1935823168
        %v4909 = vunpack.c.0.s8 %v4908
        %v4910 = vlaneseq
        %v4911 = vshrl.u32 %v4910, 7
        %v4912 = vsub.s32 %v4909, %v4911
        %v4913 = vrot.slane %v4906, %v4912
        %v4914 = vcombine.low %v4030, %v4032
        %v4915 = vcombine.low %v4031, %v4033
        %v4917 = vunpack.c.l.s4 1935823168
        %v4918 = vunpack.c.0.s8 %v4917
        %v4919 = vlaneseq
        %v4920 = vshrl.u32 %v4919, 7
        %v4921 = vsub.s32 %v4918, %v4920
        %v4922 = vrot.slane %v4914, %v4921
        %v4924 = vunpack.c.l.s4 1935823168
        %v4925 = vunpack.c.0.s8 %v4924
        %v4926 = vlaneseq
        %v4927 = vshrl.u32 %v4926, 7
        %v4928 = vsub.s32 %v4925, %v4927
        %v4929 = vrot.slane %v4915, %v4928
        %v4930 = vcombine.low %v4922, %v4929
        %v4932 = vunpack.c.l.s4 1935823168
        %v4933 = vunpack.c.0.s8 %v4932
        %v4934 = vlaneseq
        %v4935 = vshrl.u32 %v4934, 7
        %v4936 = vsub.s32 %v4933, %v4935
        %v4937 = vrot.slane %v4930, %v4936
        %v4938 = vcombine.low %v4706, %v4708
        %v4939 = vcombine.low %v4707, %v4709
        %v4941 = vunpack.c.l.s4 1935823168
        %v4942 = vunpack.c.0.s8 %v4941
        %v4943 = vlaneseq
        %v4944 = vshrl.u32 %v4943, 7
        %v4945 = vsub.s32 %v4942, %v4944
        %v4946 = vrot.slane %v4938, %v4945
        %v4948 = vunpack.c.l.s4 1935823168
        %v4949 = vunpack.c.0.s8 %v4948
        %v4950 = vlaneseq
        %v4951 = vshrl.u32 %v4950, 7
        %v4952 = vsub.s32 %v4949, %v4951
        %v4953 = vrot.slane %v4939, %v4952
        %v4954 = vcombine.low %v4946, %v4953
        %v4956 = vunpack.c.l.s4 1935823168
        %v4957 = vunpack.c.0.s8 %v4956
        %v4958 = vlaneseq
        %v4959 = vshrl.u32 %v4958, 7
        %v4960 = vsub.s32 %v4957, %v4959
        %v4961 = vrot.slane %v4954, %v4960
        %v4962 = vcombine.low %v4710, %v4712
        %v4963 = vcombine.low %v4711, %v4713
        %v4965 = vunpack.c.l.s4 1935823168
        %v4966 = vunpack.c.0.s8 %v4965
        %v4967 = vlaneseq
        %v4968 = vshrl.u32 %v4967, 7
        %v4969 = vsub.s32 %v4966, %v4968
        %v4970 = vrot.slane %v4962, %v4969
        %v4972 = vunpack.c.l.s4 1935823168
        %v4973 = vunpack.c.0.s8 %v4972
        %v4974 = vlaneseq
        %v4975 = vshrl.u32 %v4974, 7
        %v4976 = vsub.s32 %v4973, %v4975
        %v4977 = vrot.slane %v4963, %v4976
        %v4978 = vcombine.low %v4970, %v4977
        %v4980 = vunpack.c.l.s4 1935823168
        %v4981 = vunpack.c.0.s8 %v4980
        %v4982 = vlaneseq
        %v4983 = vshrl.u32 %v4982, 7
        %v4984 = vsub.s32 %v4981, %v4983
        %v4985 = vrot.slane %v4978, %v4984
        %v4986 = vcombine.low %v4034, %v4036
        %v4987 = vcombine.low %v4035, %v4037
        %v4989 = vunpack.c.l.s4 1935823168
        %v4990 = vunpack.c.0.s8 %v4989
        %v4991 = vlaneseq
        %v4992 = vshrl.u32 %v4991, 7
        %v4993 = vsub.s32 %v4990, %v4992
        %v4994 = vrot.slane %v4986, %v4993
        %v4996 = vunpack.c.l.s4 1935823168
        %v4997 = vunpack.c.0.s8 %v4996
        %v4998 = vlaneseq
        %v4999 = vshrl.u32 %v4998, 7
        %v5000 = vsub.s32 %v4997, %v4999
        %v5001 = vrot.slane %v4987, %v5000
        %v5002 = vcombine.low %v4994, %v5001
        %v5004 = vunpack.c.l.s4 1935823168
        %v5005 = vunpack.c.0.s8 %v5004
        %v5006 = vlaneseq
        %v5007 = vshrl.u32 %v5006, 7
        %v5008 = vsub.s32 %v5005, %v5007
        %v5009 = vrot.slane %v5002, %v5008
        %v5010 = vcombine.low %v4038, %v4040
        %v5011 = vcombine.low %v4039, %v4041
        %v5013 = vunpack.c.l.s4 1935823168
        %v5014 = vunpack.c.0.s8 %v5013
        %v5015 = vlaneseq
        %v5016 = vshrl.u32 %v5015, 7
        %v5017 = vsub.s32 %v5014, %v5016
        %v5018 = vrot.slane %v5010, %v5017
        %v5020 = vunpack.c.l.s4 1935823168
        %v5021 = vunpack.c.0.s8 %v5020
        %v5022 = vlaneseq
        %v5023 = vshrl.u32 %v5022, 7
        %v5024 = vsub.s32 %v5021, %v5023
        %v5025 = vrot.slane %v5011, %v5024
        %v5026 = vcombine.low %v5018, %v5025
        %v5028 = vunpack.c.l.s4 1935823168
        %v5029 = vunpack.c.0.s8 %v5028
        %v5030 = vlaneseq
        %v5031 = vshrl.u32 %v5030, 7
        %v5032 = vsub.s32 %v5029, %v5031
        %v5033 = vrot.slane %v5026, %v5032
        %v5034 = vcombine.low %v4714, %v4716
        %v5035 = vcombine.low %v4715, %v4717
        %v5037 = vunpack.c.l.s4 1935823168
        %v5038 = vunpack.c.0.s8 %v5037
        %v5039 = vlaneseq
        %v5040 = vshrl.u32 %v5039, 7
        %v5041 = vsub.s32 %v5038, %v5040
        %v5042 = vrot.slane %v5034, %v5041
        %v5044 = vunpack.c.l.s4 1935823168
        %v5045 = vunpack.c.0.s8 %v5044
        %v5046 = vlaneseq
        %v5047 = vshrl.u32 %v5046, 7
        %v5048 = vsub.s32 %v5045, %v5047
        %v5049 = vrot.slane %v5035, %v5048
        %v5050 = vcombine.low %v5042, %v5049
        %v5052 = vunpack.c.l.s4 1935823168
        %v5053 = vunpack.c.0.s8 %v5052
        %v5054 = vlaneseq
        %v5055 = vshrl.u32 %v5054, 7
        %v5056 = vsub.s32 %v5053, %v5055
        %v5057 = vrot.slane %v5050, %v5056
        %v5058 = vcombine.low %v4718, %v4720
        %v5059 = vcombine.low %v4719, %v4721
        %v5061 = vunpack.c.l.s4 1935823168
        %v5062 = vunpack.c.0.s8 %v5061
        %v5063 = vlaneseq
        %v5064 = vshrl.u32 %v5063, 7
        %v5065 = vsub.s32 %v5062, %v5064
        %v5066 = vrot.slane %v5058, %v5065
        %v5068 = vunpack.c.l.s4 1935823168
        %v5069 = vunpack.c.0.s8 %v5068
        %v5070 = vlaneseq
        %v5071 = vshrl.u32 %v5070, 7
        %v5072 = vsub.s32 %v5069, %v5071
        %v5073 = vrot.slane %v5059, %v5072
        %v5074 = vcombine.low %v5066, %v5073
        %v5076 = vunpack.c.l.s4 1935823168
        %v5077 = vunpack.c.0.s8 %v5076
        %v5078 = vlaneseq
        %v5079 = vshrl.u32 %v5078, 7
        %v5080 = vsub.s32 %v5077, %v5079
        %v5081 = vrot.slane %v5074, %v5080
        %v5082 = vcombine.low %v4042, %v4044
        %v5083 = vcombine.low %v4043, %v4045
        %v5085 = vunpack.c.l.s4 1935823168
        %v5086 = vunpack.c.0.s8 %v5085
        %v5087 = vlaneseq
        %v5088 = vshrl.u32 %v5087, 7
        %v5089 = vsub.s32 %v5086, %v5088
        %v5090 = vrot.slane %v5082, %v5089
        %v5092 = vunpack.c.l.s4 1935823168
        %v5093 = vunpack.c.0.s8 %v5092
        %v5094 = vlaneseq
        %v5095 = vshrl.u32 %v5094, 7
        %v5096 = vsub.s32 %v5093, %v5095
        %v5097 = vrot.slane %v5083, %v5096
        %v5098 = vcombine.low %v5090, %v5097
        %v5100 = vunpack.c.l.s4 1935823168
        %v5101 = vunpack.c.0.s8 %v5100
        %v5102 = vlaneseq
        %v5103 = vshrl.u32 %v5102, 7
        %v5104 = vsub.s32 %v5101, %v5103
        %v5105 = vrot.slane %v5098, %v5104
        %v5106 = vcombine.low %v4046, %v4048
        %v5107 = vcombine.low %v4047, %v4049
        %v5109 = vunpack.c.l.s4 1935823168
        %v5110 = vunpack.c.0.s8 %v5109
        %v5111 = vlaneseq
        %v5112 = vshrl.u32 %v5111, 7
        %v5113 = vsub.s32 %v5110, %v5112
        %v5114 = vrot.slane %v5106, %v5113
        %v5116 = vunpack.c.l.s4 1935823168
        %v5117 = vunpack.c.0.s8 %v5116
        %v5118 = vlaneseq
        %v5119 = vshrl.u32 %v5118, 7
        %v5120 = vsub.s32 %v5117, %v5119
        %v5121 = vrot.slane %v5107, %v5120
        %v5122 = vcombine.low %v5114, %v5121
        %v5124 = vunpack.c.l.s4 1935823168
        %v5125 = vunpack.c.0.s8 %v5124
        %v5126 = vlaneseq
        %v5127 = vshrl.u32 %v5126, 7
        %v5128 = vsub.s32 %v5125, %v5127
        %v5129 = vrot.slane %v5122, %v5128
        %v5130 = vcombine.low %v4722, %v4724
        %v5131 = vcombine.low %v4723, %v4725
        %v5133 = vunpack.c.l.s4 1935823168
        %v5134 = vunpack.c.0.s8 %v5133
        %v5135 = vlaneseq
        %v5136 = vshrl.u32 %v5135, 7
        %v5137 = vsub.s32 %v5134, %v5136
        %v5138 = vrot.slane %v5130, %v5137
        %v5140 = vunpack.c.l.s4 1935823168
        %v5141 = vunpack.c.0.s8 %v5140
        %v5142 = vlaneseq
        %v5143 = vshrl.u32 %v5142, 7
        %v5144 = vsub.s32 %v5141, %v5143
        %v5145 = vrot.slane %v5131, %v5144
        %v5146 = vcombine.low %v5138, %v5145
        %v5148 = vunpack.c.l.s4 1935823168
        %v5149 = vunpack.c.0.s8 %v5148
        %v5150 = vlaneseq
        %v5151 = vshrl.u32 %v5150, 7
        %v5152 = vsub.s32 %v5149, %v5151
        %v5153 = vrot.slane %v5146, %v5152
        %v5154 = vcombine.low %v4726, %v4728
        %v5155 = vcombine.low %v4727, %v4729
        %v5157 = vunpack.c.l.s4 1935823168
        %v5158 = vunpack.c.0.s8 %v5157
        %v5159 = vlaneseq
        %v5160 = vshrl.u32 %v5159, 7
        %v5161 = vsub.s32 %v5158, %v5160
        %v5162 = vrot.slane %v5154, %v5161
        %v5164 = vunpack.c.l.s4 1935823168
        %v5165 = vunpack.c.0.s8 %v5164
        %v5166 = vlaneseq
        %v5167 = vshrl.u32 %v5166, 7
        %v5168 = vsub.s32 %v5165, %v5167
        %v5169 = vrot.slane %v5155, %v5168
        %v5170 = vcombine.low %v5162, %v5169
        %v5172 = vunpack.c.l.s4 1935823168
        %v5173 = vunpack.c.0.s8 %v5172
        %v5174 = vlaneseq
        %v5175 = vshrl.u32 %v5174, 7
        %v5176 = vsub.s32 %v5173, %v5175
        %v5177 = vrot.slane %v5170, %v5176
        %vm5194 = vcmask 257024
        %5195 = vst.msk [vmem:[%s572] sm:$0xf] %vm5194, %v4817
        %5196 = vst.msk [vmem:[%s572 + $0x4] sm:$0xf] %vm5194, %v4841
        %5197 = vst.msk [vmem:[%s572 + $0x8] sm:$0xf] %vm5194, %v4865
        %5198 = vst.msk [vmem:[%s572 + $0xc] sm:$0xf] %vm5194, %v4889
        %5199 = vst.msk [vmem:[%s572 + $0x10] sm:$0xf] %vm5194, %v4913
        %5200 = vst.msk [vmem:[%s572 + $0x14] sm:$0xf] %vm5194, %v4937
        %5201 = vst.msk [vmem:[%s572 + $0x18] sm:$0xf] %vm5194, %v4961
        %5202 = vst.msk [vmem:[%s572 + $0x1c] sm:$0xf] %vm5194, %v4985
        %5203 = vst.msk [vmem:[%s572 + $0x20] sm:$0xf] %vm5194, %v5009
        %5204 = vst.msk [vmem:[%s572 + $0x24] sm:$0xf] %vm5194, %v5033
        %5205 = vst.msk [vmem:[%s572 + $0x28] sm:$0xf] %vm5194, %v5057
        %5206 = vst.msk [vmem:[%s572 + $0x2c] sm:$0xf] %vm5194, %v5081
        %5207 = vst.msk [vmem:[%s572 + $0x30] sm:$0xf] %vm5194, %v5105
        %5208 = vst.msk [vmem:[%s572 + $0x34] sm:$0xf] %vm5194, %v5129
        %5209 = vst.msk [vmem:[%s572 + $0x38] sm:$0xf] %vm5194, %v5153
        %5210 = vst.msk [vmem:[%s572 + $0x3c] sm:$0xf] %vm5194, %v5177
        %s5211 = sand.u32 %s275, 1
        %s5212 = scalar_lea.sflag [#allocation5], %s5211
        %s5213 = sand.u32 %s275, 1
        %s5214 = smul.addr %s5213, 64
        %s5215 = scalar_lea.vmem [#allocation4], %s5214
        // Predicated region
        $region45: #{upsample_causal3d_forward.1} parent=43 // pred_check
          %p5216 = pneg %p285
        $region46: #{upsample_causal3d_forward.1} parent=43 // pred_check_branch
          %5218 = sbr.rel (%p5216) target = $region48
        $region47: #{upsample_causal3d_forward.1} parent=43 // pred_region
          %s5219 = smul.u32 8, %s36
          %s5221 = ssub.s32 1024, 1024
          %5222 = vsyncadd %s5212, %s5221
          %s5223 = smul.addr %s5219, 2
          %s5224 = sadd.s32 %s34, %s5223
          %s5225 = smul.addr %s35, 32
          %s5226 = sadd.s32 %s5224, %s5225
          %s5227 = smul.addr %s33, 160
          %s5228 = sadd.s32 %s5226, %s5227
          %s5229 = smul.addr %s5228, 64
          %s5230 = scalar_lea.hbm %s7, %s5229
          %s5231 = sshll.u32 %s5215, 4
          %s5232 = int_to_ptr.vmem [resolvable:$true] %s5231
          %5237 = dma.vmem_to_hbm [thread:$0]  %s5232, 1024, %s5230, %s5212, 64, 64, 4
        $region48: #{upsample_causal3d_forward.1} parent=43 // pred_fallthru
          _
      $region44: #{upsample_causal3d_forward.1} parent=5 // pred_fallthru
        _
      %p5238 = scmp.le.s32.totalorder 2, %s22
      // Predicated region
      $region49: #{upsample_causal3d_forward.1} parent=5 // pred_check
        %p5239 = pneg %p5238
      $region50: #{upsample_causal3d_forward.1} parent=5 // pred_check_branch
        %5241 = sbr.rel (%p5239) target = $region52
      $region51: #{upsample_causal3d_forward.1} parent=5 // pred_region
        %s5242 = ssub.s32 %s22, 2
        // Predicated region
        $region53: #{upsample_causal3d_forward.1} parent=51 // pred_check
          %p5243 = pneg %p291
        $region54: #{upsample_causal3d_forward.1} parent=51 // pred_check_branch
          %5245 = sbr.rel (%p5243) target = $region56
        $region55: #{upsample_causal3d_forward.1} parent=51 // pred_region
          %s5246 = sand.u32 %s276, 1
          %s5247 = scalar_lea.sflag [#allocation5], %s5246
          %s5248 = sand.u32 %s276, 1
          %s5249 = smul.addr %s5248, 64
          %s5250 = scalar_lea.vmem [#allocation4], %s5249
          %5251 = dma.done %s5247, 1024
        $region56: #{upsample_causal3d_forward.1} parent=51 // pred_fallthru
          _
      $region52: #{upsample_causal3d_forward.1} parent=5 // pred_fallthru
        _
    $region6: #{upsample_causal3d_forward.1} parent=1 // loop_footer
      %s26 = sadd.s32 1, %s22
    $region7: #{upsample_causal3d_forward.1} parent=1 // loop_footer_branch
      %21 = sbr.rel target = $region3
    $region8: #{upsample_causal3d_forward.1} parent=1 // loop_exit
      _
    %5252 = vsyncpa [#allocation5], 1
    %s5253 = scalar_lea.sflag [#allocation5], 1
    %5254 = vsyncpa %s5253, 1

</llo_original>
